<compile_context>
chip_gen: v5e
topology: v5e:2x2
jax: 0.10.0
libtpu: 0.0.40
codegen_flags: <defaults>
</compile_context>

<pallas_src>
import functools
import math

import jax
import jax.numpy as jnp
from jax import lax
from jax.experimental import pallas as pl
from jax.experimental.pallas import tpu as pltpu

# ----------------------------- config (small, TPU-friendly) -----------------
BATCH = 2
SEQ = 8
HIDDEN = 128
NUM_HEADS = 4
HEAD_DIM = HIDDEN // NUM_HEADS          # 32
INTERMEDIATE = 256
VOCAB = 256
NUM_LAYERS = 2
ROPE_THETA = 10000.0
RMS_EPS = 1e-6
NOISE_STD = 0.2
PAD_TOKEN_ID = 0


# ============================== fused Pallas kernel ==========================
def eagle_fused_kernel(emb_ref, hid_ref, noise_ref, cos_ref, sin_ref, rot_ref,
                       fc_w_ref, fc_b_ref,
                       ln1_ref, wqkv_ref, wo_ref, ln2_ref, wgu_ref, wd_ref,
                       out_ref, *, num_layers, num_heads, head_dim, seq, batch,
                       eps, scale):
    hidden = num_heads * head_dim

    def rmsnorm(x, w):
        var = jnp.mean(x * x, axis=-1, keepdims=True)
        return x * lax.rsqrt(var + eps) * w

    # ---- noise + fc(concat(embeds, hidden)) as one K=2H matmul --------------
    h_noisy = hid_ref[...] + noise_ref[...]
    x = jnp.concatenate([emb_ref[...], h_noisy], axis=-1)            # (B*S, 2H)
    h = (jnp.dot(x, fc_w_ref[...], preferred_element_type=jnp.float32)
         + fc_b_ref[...])

    cosf = cos_ref[...]                                              # (B*S, H)
    sinf = sin_ref[...]
    rot = rot_ref[...]                                               # (H, H)
    row = lax.broadcasted_iota(jnp.int32, (seq, seq), 0)
    col = lax.broadcasted_iota(jnp.int32, (seq, seq), 1)
    causal = row >= col

    for li in range(num_layers):
        # ---- self-attention block ----
        res = h
        hn = rmsnorm(h, ln1_ref[li])
        qkv = jnp.dot(hn, wqkv_ref[li],
                      preferred_element_type=jnp.float32)            # (B*S, 3H)
        q = qkv[:, :hidden]
        k = qkv[:, hidden:2 * hidden]
        v = qkv[:, 2 * hidden:]
        # RoPE: rotate_half(x) == x @ rot (block-diagonal +/-1 matrix, MXU)
        q = q * cosf + jnp.dot(q, rot, preferred_element_type=jnp.float32) * sinf
        k = k * cosf + jnp.dot(k, rot, preferred_element_type=jnp.float32) * sinf

        # causal attention for every (batch, head), lane-dense reassembly
        batch_outs = []
        for b in range(batch):
            qb = q[b * seq:(b + 1) * seq, :]
            kb = k[b * seq:(b + 1) * seq, :]
            vb = v[b * seq:(b + 1) * seq, :]
            head_outs = []
            for hh in range(num_heads):
                lo = hh * head_dim
                qh = qb[:, lo:lo + head_dim]
                kh = kb[:, lo:lo + head_dim]
                vh = vb[:, lo:lo + head_dim]
                # q @ k^T without materializing the transpose
                s = lax.dot_general(qh, kh, (((1,), (1,)), ((), ())),
                                    preferred_element_type=jnp.float32) * scale
                s = jnp.where(causal, s, -1e30)
                m = jnp.max(s, axis=-1, keepdims=True)
                p = jnp.exp(s - m)
                p = p / jnp.sum(p, axis=-1, keepdims=True)
                head_outs.append(
                    jnp.dot(p, vh, preferred_element_type=jnp.float32))
            batch_outs.append(jnp.concatenate(head_outs, axis=-1))   # (S, H)
        attn = jnp.concatenate(batch_outs, axis=0)                   # (B*S, H)
        h = res + jnp.dot(attn, wo_ref[li],
                          preferred_element_type=jnp.float32)

        # ---- MLP block ----
        res = h
        hn = rmsnorm(h, ln2_ref[li])
        gu = jnp.dot(hn, wgu_ref[li],
                     preferred_element_type=jnp.float32)             # (B*S, 2I)
        inter = gu.shape[-1] // 2
        g = gu[:, :inter]
        u = gu[:, inter:]
        h = res + jnp.dot(g * jax.nn.sigmoid(g) * u, wd_ref[li],
                          preferred_element_type=jnp.float32)

    out_ref[...] = h


# ============================== RoPE tables (glue) ===========================
def rope_cos_sin(position_ids, head_dim, theta):
    inv_freq = 1.0 / (theta ** (jnp.arange(0, head_dim, 2, dtype=jnp.float32)
                                / head_dim))
    freqs = position_ids.astype(jnp.float32)[..., None] * inv_freq   # (B,S,Dh/2)
    emb = jnp.concatenate([freqs, freqs], axis=-1)                   # (B,S,Dh)
    return jnp.cos(emb), jnp.sin(emb)


def rotate_half_matrix(num_heads, head_dim):
    # (H, H) block-diagonal matrix so that x @ R == rotate_half(x) per head.
    half = head_dim // 2
    r = jnp.zeros((head_dim, head_dim), jnp.float32)
    idx = jnp.arange(half)
    r = r.at[idx + half, idx].set(-1.0)   # out[:half] = -x[half:]
    r = r.at[idx, idx + half].set(1.0)    # out[half:] =  x[:half]
    return jnp.kron(jnp.eye(num_heads, dtype=jnp.float32), r)


# ============================== EagleHead forward ============================
def eagle_head_forward(params, hidden_states, input_ids, position_ids,
                       noise_key):
    B, S, H = hidden_states.shape
    # shifted-by-one token ids, padded with pad_token_id (torch.no_grad region)
    pad_col = jnp.full((B, 1), PAD_TOKEN_ID, dtype=input_ids.dtype)
    next_ids = jnp.concatenate([input_ids[:, 1:], pad_col], axis=1)
    inputs_embeds = jnp.take(params["embed_tokens"], next_ids, axis=0)  # (B,S,H)
    position_ids = position_ids.reshape(-1, S)

    # TODO(synk): torch.rand_like RNG stream is not bit-reproducible here;
    # jax.random.uniform draws from the same uniform(-std/2, std/2) law.
    noise = (jax.random.uniform(noise_key, (B, S, H), jnp.float32) - 0.5) \
        * NOISE_STD

    cos, sin = rope_cos_sin(position_ids, HEAD_DIM, ROPE_THETA)      # (B,S,Dh)
    cos_full = jnp.tile(cos, (1, 1, NUM_HEADS)).reshape(B * S, H)
    sin_full = jnp.tile(sin, (1, 1, NUM_HEADS)).reshape(B * S, H)
    rot = rotate_half_matrix(NUM_HEADS, HEAD_DIM)

    kernel = functools.partial(
        eagle_fused_kernel, num_layers=NUM_LAYERS, num_heads=NUM_HEADS,
        head_dim=HEAD_DIM, seq=S, batch=B, eps=RMS_EPS,
        scale=1.0 / math.sqrt(HEAD_DIM))

    args = (
        inputs_embeds.reshape(-1, H).astype(jnp.float32),
        hidden_states.reshape(-1, H).astype(jnp.float32),
        noise.reshape(-1, H),
        cos_full, sin_full, rot,
        params["fc_w"], params["fc_b"],
        params["ln1"], params["wqkv"], params["wo"],
        params["ln2"], params["wgu"], params["wd"],
    )
    out2d = pl.pallas_call(
        kernel,
        out_shape=jax.ShapeDtypeStruct((B * S, H), jnp.float32),
        in_specs=[pl.BlockSpec(memory_space=pltpu.MemorySpace.VMEM)] * len(args),
        out_specs=pl.BlockSpec(memory_space=pltpu.MemorySpace.VMEM),
    )(*args)
    return out2d.reshape(B, S, H)


# ============================== parameter init ===============================
def init_params(key):
    ks = jax.random.split(key, 3 + NUM_LAYERS)
    scale = 0.02
    params = {
        "embed_tokens": scale * jax.random.normal(ks[0], (VOCAB, HIDDEN),
                                                  jnp.float32),
        # fc: Linear(2H -> H), stored as (in, out) so the kernel does x @ W.
        "fc_w": scale * jax.random.normal(ks[1], (2 * HIDDEN, HIDDEN),
                                          jnp.float32),
        "fc_b": jnp.zeros((1, HIDDEN), jnp.float32),
    }
    ln1, ln2, wqkv, wo, wgu, wd = [], [], [], [], [], []
    for li in range(NUM_LAYERS):
        lk = jax.random.split(ks[3 + li], 4)
        ln1.append(jnp.ones((1, HIDDEN), jnp.float32))
        ln2.append(jnp.ones((1, HIDDEN), jnp.float32))
        wqkv.append(scale * jax.random.normal(lk[0], (HIDDEN, 3 * HIDDEN),
                                              jnp.float32))
        wo.append(scale * jax.random.normal(lk[1], (HIDDEN, HIDDEN),
                                            jnp.float32))
        wgu.append(scale * jax.random.normal(lk[2], (HIDDEN, 2 * INTERMEDIATE),
                                             jnp.float32))
        wd.append(scale * jax.random.normal(lk[3], (INTERMEDIATE, HIDDEN),
                                            jnp.float32))
    params["ln1"] = jnp.stack(ln1)       # (L, 1, H)
    params["ln2"] = jnp.stack(ln2)       # (L, 1, H)
    params["wqkv"] = jnp.stack(wqkv)     # (L, H, 3H)
    params["wo"] = jnp.stack(wo)         # (L, H, H)
    params["wgu"] = jnp.stack(wgu)       # (L, H, 2I)
    params["wd"] = jnp.stack(wd)         # (L, I, H)
    return params


# ============================== main =========================================
if __name__ == "__main__":
    key = jax.random.PRNGKey(0)
    k_hid, k_ids, k_params, k_noise = jax.random.split(key, 4)

    hidden_states = jax.random.normal(k_hid, (BATCH, SEQ, HIDDEN), jnp.float32)
    input_ids = jax.random.randint(k_ids, (BATCH, SEQ), 0, VOCAB, jnp.int32)
    position_ids = jnp.broadcast_to(jnp.arange(SEQ, dtype=jnp.int32)[None, :],
                                    (BATCH, SEQ))
    params = init_params(k_params)

    out = jax.jit(eagle_head_forward)(params, hidden_states, input_ids,
                                      position_ids, k_noise)
    out = jax.block_until_ready(out)

    assert out.shape == (BATCH, SEQ, HIDDEN), out.shape
    assert bool(jnp.all(jnp.isfinite(out)))
    print("KERNEL_OK")
</pallas_src>

<mosaic_0001>
module attributes {stable_mosaic.version = 11 : i64} {
  func.func @eagle_fused_kernel(%arg0: memref<16x128xf32, #tpu.memory_space<vmem>>, %arg1: memref<16x128xf32, #tpu.memory_space<vmem>>, %arg2: memref<16x128xf32, #tpu.memory_space<vmem>>, %arg3: memref<16x128xf32, #tpu.memory_space<vmem>>, %arg4: memref<16x128xf32, #tpu.memory_space<vmem>>, %arg5: memref<128x128xf32, #tpu.memory_space<vmem>>, %arg6: memref<256x128xf32, #tpu.memory_space<vmem>>, %arg7: memref<1x128xf32, #tpu.memory_space<vmem>>, %arg8: memref<2x1x128xf32, #tpu.memory_space<vmem>>, %arg9: memref<2x128x384xf32, #tpu.memory_space<vmem>>, %arg10: memref<2x128x128xf32, #tpu.memory_space<vmem>>, %arg11: memref<2x1x128xf32, #tpu.memory_space<vmem>>, %arg12: memref<2x128x512xf32, #tpu.memory_space<vmem>>, %arg13: memref<2x256x128xf32, #tpu.memory_space<vmem>>, %arg14: memref<16x128xf32, #tpu.memory_space<vmem>>) attributes {dimension_semantics = [], scalar_prefetch = 0 : i64, scratch_operands = 0 : i64, tpu.core_type = #tpu.core_type<tc>} {
    %c0 = arith.constant 0 : index
    %c0_0 = arith.constant 0 : index
    %0 = vector.load %arg1[%c0, %c0_0] : memref<16x128xf32, #tpu.memory_space<vmem>>, vector<16x128xf32>
    %c0_1 = arith.constant 0 : index
    %c0_2 = arith.constant 0 : index
    %1 = vector.load %arg2[%c0_1, %c0_2] : memref<16x128xf32, #tpu.memory_space<vmem>>, vector<16x128xf32>
    %2 = arith.addf %0, %1 : vector<16x128xf32>
    %c0_3 = arith.constant 0 : index
    %c0_4 = arith.constant 0 : index
    %3 = vector.load %arg0[%c0_3, %c0_4] : memref<16x128xf32, #tpu.memory_space<vmem>>, vector<16x128xf32>
    %4 = tpu.concatenate %3, %2 in 1 : vector<16x128xf32>, vector<16x128xf32> -> vector<16x256xf32>
    %c0_5 = arith.constant 0 : index
    %c0_6 = arith.constant 0 : index
    %5 = vector.load %arg6[%c0_5, %c0_6] : memref<256x128xf32, #tpu.memory_space<vmem>>, vector<256x128xf32>
    %cst = arith.constant dense<0.000000e+00> : vector<16x128xf32>
    %6 = tpu.matmul %4, %5, %cst {dimension_numbers = #tpu.dot_dimension_numbers<[1], [0], [0], [1], [0, 0, 1, 1], [], []>} : vector<16x256xf32>, vector<256x128xf32>, vector<16x128xf32> -> vector<16x128xf32>
    %c0_7 = arith.constant 0 : index
    %c0_8 = arith.constant 0 : index
    %7 = vector.load %arg7[%c0_7, %c0_8] : memref<1x128xf32, #tpu.memory_space<vmem>>, vector<1x128xf32>
    %8 = vector.broadcast %7 : vector<1x128xf32> to vector<16x128xf32>
    %9 = arith.addf %6, %8 : vector<16x128xf32>
    %c0_9 = arith.constant 0 : index
    %c0_10 = arith.constant 0 : index
    %10 = vector.load %arg3[%c0_9, %c0_10] : memref<16x128xf32, #tpu.memory_space<vmem>>, vector<16x128xf32>
    %c0_11 = arith.constant 0 : index
    %c0_12 = arith.constant 0 : index
    %11 = vector.load %arg4[%c0_11, %c0_12] : memref<16x128xf32, #tpu.memory_space<vmem>>, vector<16x128xf32>
    %c0_13 = arith.constant 0 : index
    %c0_14 = arith.constant 0 : index
    %12 = vector.load %arg5[%c0_13, %c0_14] : memref<128x128xf32, #tpu.memory_space<vmem>>, vector<128x128xf32>
    %13 = tpu.iota {dimensions = array<i32: 0>} : vector<8x8xi32>
    %14 = tpu.iota {dimensions = array<i32: 1>} : vector<8x8xi32>
    %15 = arith.cmpi sge, %13, %14 : vector<8x8xi32>
    %c0_15 = arith.constant 0 : index
    %c0_16 = arith.constant 0 : index
    %c0_17 = arith.constant 0 : index
    %16 = vector.load %arg8[%c0_15, %c0_16, %c0_17] : memref<2x1x128xf32, #tpu.memory_space<vmem>>, vector<1x1x128xf32>
    %17 = vector.shape_cast %16 : vector<1x1x128xf32> to vector<1x128xf32>
    %18 = arith.mulf %9, %9 : vector<16x128xf32>
    %cst_18 = arith.constant dense<0.000000e+00> : vector<16xf32>
    %19 = vector.multi_reduction <add>, %18, %cst_18 [1] : vector<16x128xf32> to vector<16xf32>
    %20 = vector.shape_cast %19 : vector<16xf32> to vector<16x1xf32>
    %cst_19 = arith.constant 1.280000e+02 : f32
    %21 = vector.broadcast %cst_19 : f32 to vector<16x1xf32>
    %22 = arith.divf %20, %21 : vector<16x1xf32>
    %cst_20 = arith.constant 9.99999997E-7 : f32
    %23 = vector.broadcast %cst_20 : f32 to vector<16x1xf32>
    %24 = arith.addf %22, %23 : vector<16x1xf32>
    %25 = math.rsqrt %24 : vector<16x1xf32>
    %26 = vector.broadcast %25 : vector<16x1xf32> to vector<16x128xf32>
    %27 = arith.mulf %9, %26 : vector<16x128xf32>
    %28 = vector.broadcast %17 : vector<1x128xf32> to vector<16x128xf32>
    %29 = arith.mulf %27, %28 : vector<16x128xf32>
    %c0_21 = arith.constant 0 : index
    %c0_22 = arith.constant 0 : index
    %c0_23 = arith.constant 0 : index
    %30 = vector.load %arg9[%c0_21, %c0_22, %c0_23] : memref<2x128x384xf32, #tpu.memory_space<vmem>>, vector<1x128x384xf32>
    %31 = vector.shape_cast %30 : vector<1x128x384xf32> to vector<128x384xf32>
    %cst_24 = arith.constant dense<0.000000e+00> : vector<16x384xf32>
    %32 = tpu.matmul %29, %31, %cst_24 {dimension_numbers = #tpu.dot_dimension_numbers<[1], [0], [0], [1], [0, 0, 1, 1], [], []>} : vector<16x128xf32>, vector<128x384xf32>, vector<16x384xf32> -> vector<16x384xf32>
    %33 = vector.extract_strided_slice %32 {offsets = [0, 0], sizes = [16, 128], strides = [1, 1]} : vector<16x384xf32> to vector<16x128xf32>
    %34 = vector.extract_strided_slice %32 {offsets = [0, 128], sizes = [16, 128], strides = [1, 1]} : vector<16x384xf32> to vector<16x128xf32>
    %35 = vector.extract_strided_slice %32 {offsets = [0, 256], sizes = [16, 128], strides = [1, 1]} : vector<16x384xf32> to vector<16x128xf32>
    %36 = arith.mulf %33, %10 : vector<16x128xf32>
    %cst_25 = arith.constant dense<0.000000e+00> : vector<16x128xf32>
    %37 = tpu.matmul %33, %12, %cst_25 {dimension_numbers = #tpu.dot_dimension_numbers<[1], [0], [0], [1], [0, 0, 1, 1], [], []>} : vector<16x128xf32>, vector<128x128xf32>, vector<16x128xf32> -> vector<16x128xf32>
    %38 = arith.mulf %37, %11 : vector<16x128xf32>
    %39 = arith.addf %36, %38 : vector<16x128xf32>
    %40 = arith.mulf %34, %10 : vector<16x128xf32>
    %cst_26 = arith.constant dense<0.000000e+00> : vector<16x128xf32>
    %41 = tpu.matmul %34, %12, %cst_26 {dimension_numbers = #tpu.dot_dimension_numbers<[1], [0], [0], [1], [0, 0, 1, 1], [], []>} : vector<16x128xf32>, vector<128x128xf32>, vector<16x128xf32> -> vector<16x128xf32>
    %42 = arith.mulf %41, %11 : vector<16x128xf32>
    %43 = arith.addf %40, %42 : vector<16x128xf32>
    %44 = vector.extract_strided_slice %39 {offsets = [0, 0], sizes = [8, 128], strides = [1, 1]} : vector<16x128xf32> to vector<8x128xf32>
    %45 = vector.extract_strided_slice %43 {offsets = [0, 0], sizes = [8, 128], strides = [1, 1]} : vector<16x128xf32> to vector<8x128xf32>
    %46 = vector.extract_strided_slice %35 {offsets = [0, 0], sizes = [8, 128], strides = [1, 1]} : vector<16x128xf32> to vector<8x128xf32>
    %47 = vector.extract_strided_slice %44 {offsets = [0, 0], sizes = [8, 32], strides = [1, 1]} : vector<8x128xf32> to vector<8x32xf32>
    %48 = vector.extract_strided_slice %45 {offsets = [0, 0], sizes = [8, 32], strides = [1, 1]} : vector<8x128xf32> to vector<8x32xf32>
    %49 = vector.extract_strided_slice %46 {offsets = [0, 0], sizes = [8, 32], strides = [1, 1]} : vector<8x128xf32> to vector<8x32xf32>
    %cst_27 = arith.constant dense<0.000000e+00> : vector<8x8xf32>
    %50 = tpu.matmul %47, %48, %cst_27 {dimension_numbers = #tpu.dot_dimension_numbers<[1], [1], [0], [0], [0, 0, 1, 0], [], []>} : vector<8x32xf32>, vector<8x32xf32>, vector<8x8xf32> -> vector<8x8xf32>
    %cst_28 = arith.constant 0.176776692 : f32
    %51 = vector.broadcast %cst_28 : f32 to vector<8x8xf32>
    %52 = arith.mulf %50, %51 : vector<8x8xf32>
    %cst_29 = arith.constant -1.000000e+30 : f32
    %53 = vector.broadcast %cst_29 : f32 to vector<8x8xf32>
    %54 = arith.select %15, %52, %53 : vector<8x8xi1>, vector<8x8xf32>
    %cst_30 = arith.constant dense<0xFF800000> : vector<8xf32>
    %55 = vector.multi_reduction <maximumf>, %54, %cst_30 [1] : vector<8x8xf32> to vector<8xf32>
    %56 = vector.shape_cast %55 : vector<8xf32> to vector<8x1xf32>
    %57 = vector.broadcast %56 : vector<8x1xf32> to vector<8x8xf32>
    %58 = arith.subf %54, %57 : vector<8x8xf32>
    %59 = math.exp %58 : vector<8x8xf32>
    %cst_31 = arith.constant dense<0.000000e+00> : vector<8xf32>
    %60 = vector.multi_reduction <add>, %59, %cst_31 [1] : vector<8x8xf32> to vector<8xf32>
    %61 = vector.shape_cast %60 : vector<8xf32> to vector<8x1xf32>
    %62 = vector.broadcast %61 : vector<8x1xf32> to vector<8x8xf32>
    %63 = arith.divf %59, %62 : vector<8x8xf32>
    %cst_32 = arith.constant dense<0.000000e+00> : vector<8x32xf32>
    %64 = tpu.matmul %63, %49, %cst_32 {dimension_numbers = #tpu.dot_dimension_numbers<[1], [0], [0], [1], [0, 0, 1, 1], [], []>} : vector<8x8xf32>, vector<8x32xf32>, vector<8x32xf32> -> vector<8x32xf32>
    %65 = vector.extract_strided_slice %44 {offsets = [0, 32], sizes = [8, 32], strides = [1, 1]} : vector<8x128xf32> to vector<8x32xf32>
    %66 = vector.extract_strided_slice %45 {offsets = [0, 32], sizes = [8, 32], strides = [1, 1]} : vector<8x128xf32> to vector<8x32xf32>
    %67 = vector.extract_strided_slice %46 {offsets = [0, 32], sizes = [8, 32], strides = [1, 1]} : vector<8x128xf32> to vector<8x32xf32>
    %cst_33 = arith.constant dense<0.000000e+00> : vector<8x8xf32>
    %68 = tpu.matmul %65, %66, %cst_33 {dimension_numbers = #tpu.dot_dimension_numbers<[1], [1], [0], [0], [0, 0, 1, 0], [], []>} : vector<8x32xf32>, vector<8x32xf32>, vector<8x8xf32> -> vector<8x8xf32>
    %cst_34 = arith.constant 0.176776692 : f32
    %69 = vector.broadcast %cst_34 : f32 to vector<8x8xf32>
    %70 = arith.mulf %68, %69 : vector<8x8xf32>
    %cst_35 = arith.constant -1.000000e+30 : f32
    %71 = vector.broadcast %cst_35 : f32 to vector<8x8xf32>
    %72 = arith.select %15, %70, %71 : vector<8x8xi1>, vector<8x8xf32>
    %cst_36 = arith.constant dense<0xFF800000> : vector<8xf32>
    %73 = vector.multi_reduction <maximumf>, %72, %cst_36 [1] : vector<8x8xf32> to vector<8xf32>
    %74 = vector.shape_cast %73 : vector<8xf32> to vector<8x1xf32>
    %75 = vector.broadcast %74 : vector<8x1xf32> to vector<8x8xf32>
    %76 = arith.subf %72, %75 : vector<8x8xf32>
    %77 = math.exp %76 : vector<8x8xf32>
    %cst_37 = arith.constant dense<0.000000e+00> : vector<8xf32>
    %78 = vector.multi_reduction <add>, %77, %cst_37 [1] : vector<8x8xf32> to vector<8xf32>
    %79 = vector.shape_cast %78 : vector<8xf32> to vector<8x1xf32>
    %80 = vector.broadcast %79 : vector<8x1xf32> to vector<8x8xf32>
    %81 = arith.divf %77, %80 : vector<8x8xf32>
    %cst_38 = arith.constant dense<0.000000e+00> : vector<8x32xf32>
    %82 = tpu.matmul %81, %67, %cst_38 {dimension_numbers = #tpu.dot_dimension_numbers<[1], [0], [0], [1], [0, 0, 1, 1], [], []>} : vector<8x8xf32>, vector<8x32xf32>, vector<8x32xf32> -> vector<8x32xf32>
    %83 = vector.extract_strided_slice %44 {offsets = [0, 64], sizes = [8, 32], strides = [1, 1]} : vector<8x128xf32> to vector<8x32xf32>
    %84 = vector.extract_strided_slice %45 {offsets = [0, 64], sizes = [8, 32], strides = [1, 1]} : vector<8x128xf32> to vector<8x32xf32>
    %85 = vector.extract_strided_slice %46 {offsets = [0, 64], sizes = [8, 32], strides = [1, 1]} : vector<8x128xf32> to vector<8x32xf32>
    %cst_39 = arith.constant dense<0.000000e+00> : vector<8x8xf32>
    %86 = tpu.matmul %83, %84, %cst_39 {dimension_numbers = #tpu.dot_dimension_numbers<[1], [1], [0], [0], [0, 0, 1, 0], [], []>} : vector<8x32xf32>, vector<8x32xf32>, vector<8x8xf32> -> vector<8x8xf32>
    %cst_40 = arith.constant 0.176776692 : f32
    %87 = vector.broadcast %cst_40 : f32 to vector<8x8xf32>
    %88 = arith.mulf %86, %87 : vector<8x8xf32>
    %cst_41 = arith.constant -1.000000e+30 : f32
    %89 = vector.broadcast %cst_41 : f32 to vector<8x8xf32>
    %90 = arith.select %15, %88, %89 : vector<8x8xi1>, vector<8x8xf32>
    %cst_42 = arith.constant dense<0xFF800000> : vector<8xf32>
    %91 = vector.multi_reduction <maximumf>, %90, %cst_42 [1] : vector<8x8xf32> to vector<8xf32>
    %92 = vector.shape_cast %91 : vector<8xf32> to vector<8x1xf32>
    %93 = vector.broadcast %92 : vector<8x1xf32> to vector<8x8xf32>
    %94 = arith.subf %90, %93 : vector<8x8xf32>
    %95 = math.exp %94 : vector<8x8xf32>
    %cst_43 = arith.constant dense<0.000000e+00> : vector<8xf32>
    %96 = vector.multi_reduction <add>, %95, %cst_43 [1] : vector<8x8xf32> to vector<8xf32>
    %97 = vector.shape_cast %96 : vector<8xf32> to vector<8x1xf32>
    %98 = vector.broadcast %97 : vector<8x1xf32> to vector<8x8xf32>
    %99 = arith.divf %95, %98 : vector<8x8xf32>
    %cst_44 = arith.constant dense<0.000000e+00> : vector<8x32xf32>
    %100 = tpu.matmul %99, %85, %cst_44 {dimension_numbers = #tpu.dot_dimension_numbers<[1], [0], [0], [1], [0, 0, 1, 1], [], []>} : vector<8x8xf32>, vector<8x32xf32>, vector<8x32xf32> -> vector<8x32xf32>
    %101 = vector.extract_strided_slice %44 {offsets = [0, 96], sizes = [8, 32], strides = [1, 1]} : vector<8x128xf32> to vector<8x32xf32>
    %102 = vector.extract_strided_slice %45 {offsets = [0, 96], sizes = [8, 32], strides = [1, 1]} : vector<8x128xf32> to vector<8x32xf32>
    %103 = vector.extract_strided_slice %46 {offsets = [0, 96], sizes = [8, 32], strides = [1, 1]} : vector<8x128xf32> to vector<8x32xf32>
    %cst_45 = arith.constant dense<0.000000e+00> : vector<8x8xf32>
    %104 = tpu.matmul %101, %102, %cst_45 {dimension_numbers = #tpu.dot_dimension_numbers<[1], [1], [0], [0], [0, 0, 1, 0], [], []>} : vector<8x32xf32>, vector<8x32xf32>, vector<8x8xf32> -> vector<8x8xf32>
    %cst_46 = arith.constant 0.176776692 : f32
    %105 = vector.broadcast %cst_46 : f32 to vector<8x8xf32>
    %106 = arith.mulf %104, %105 : vector<8x8xf32>
    %cst_47 = arith.constant -1.000000e+30 : f32
    %107 = vector.broadcast %cst_47 : f32 to vector<8x8xf32>
    %108 = arith.select %15, %106, %107 : vector<8x8xi1>, vector<8x8xf32>
    %cst_48 = arith.constant dense<0xFF800000> : vector<8xf32>
    %109 = vector.multi_reduction <maximumf>, %108, %cst_48 [1] : vector<8x8xf32> to vector<8xf32>
    %110 = vector.shape_cast %109 : vector<8xf32> to vector<8x1xf32>
    %111 = vector.broadcast %110 : vector<8x1xf32> to vector<8x8xf32>
    %112 = arith.subf %108, %111 : vector<8x8xf32>
    %113 = math.exp %112 : vector<8x8xf32>
    %cst_49 = arith.constant dense<0.000000e+00> : vector<8xf32>
    %114 = vector.multi_reduction <add>, %113, %cst_49 [1] : vector<8x8xf32> to vector<8xf32>
    %115 = vector.shape_cast %114 : vector<8xf32> to vector<8x1xf32>
    %116 = vector.broadcast %115 : vector<8x1xf32> to vector<8x8xf32>
    %117 = arith.divf %113, %116 : vector<8x8xf32>
    %cst_50 = arith.constant dense<0.000000e+00> : vector<8x32xf32>
    %118 = tpu.matmul %117, %103, %cst_50 {dimension_numbers = #tpu.dot_dimension_numbers<[1], [0], [0], [1], [0, 0, 1, 1], [], []>} : vector<8x8xf32>, vector<8x32xf32>, vector<8x32xf32> -> vector<8x32xf32>
    %119 = tpu.concatenate %64, %82, %100, %118 in 1 : vector<8x32xf32>, vector<8x32xf32>, vector<8x32xf32>, vector<8x32xf32> -> vector<8x128xf32>
    %120 = vector.extract_strided_slice %39 {offsets = [8, 0], sizes = [8, 128], strides = [1, 1]} : vector<16x128xf32> to vector<8x128xf32>
    %121 = vector.extract_strided_slice %43 {offsets = [8, 0], sizes = [8, 128], strides = [1, 1]} : vector<16x128xf32> to vector<8x128xf32>
    %122 = vector.extract_strided_slice %35 {offsets = [8, 0], sizes = [8, 128], strides = [1, 1]} : vector<16x128xf32> to vector<8x128xf32>
    %123 = vector.extract_strided_slice %120 {offsets = [0, 0], sizes = [8, 32], strides = [1, 1]} : vector<8x128xf32> to vector<8x32xf32>
    %124 = vector.extract_strided_slice %121 {offsets = [0, 0], sizes = [8, 32], strides = [1, 1]} : vector<8x128xf32> to vector<8x32xf32>
    %125 = vector.extract_strided_slice %122 {offsets = [0, 0], sizes = [8, 32], strides = [1, 1]} : vector<8x128xf32> to vector<8x32xf32>
    %cst_51 = arith.constant dense<0.000000e+00> : vector<8x8xf32>
    %126 = tpu.matmul %123, %124, %cst_51 {dimension_numbers = #tpu.dot_dimension_numbers<[1], [1], [0], [0], [0, 0, 1, 0], [], []>} : vector<8x32xf32>, vector<8x32xf32>, vector<8x8xf32> -> vector<8x8xf32>
    %cst_52 = arith.constant 0.176776692 : f32
    %127 = vector.broadcast %cst_52 : f32 to vector<8x8xf32>
    %128 = arith.mulf %126, %127 : vector<8x8xf32>
    %cst_53 = arith.constant -1.000000e+30 : f32
    %129 = vector.broadcast %cst_53 : f32 to vector<8x8xf32>
    %130 = arith.select %15, %128, %129 : vector<8x8xi1>, vector<8x8xf32>
    %cst_54 = arith.constant dense<0xFF800000> : vector<8xf32>
    %131 = vector.multi_reduction <maximumf>, %130, %cst_54 [1] : vector<8x8xf32> to vector<8xf32>
    %132 = vector.shape_cast %131 : vector<8xf32> to vector<8x1xf32>
    %133 = vector.broadcast %132 : vector<8x1xf32> to vector<8x8xf32>
    %134 = arith.subf %130, %133 : vector<8x8xf32>
    %135 = math.exp %134 : vector<8x8xf32>
    %cst_55 = arith.constant dense<0.000000e+00> : vector<8xf32>
    %136 = vector.multi_reduction <add>, %135, %cst_55 [1] : vector<8x8xf32> to vector<8xf32>
    %137 = vector.shape_cast %136 : vector<8xf32> to vector<8x1xf32>
    %138 = vector.broadcast %137 : vector<8x1xf32> to vector<8x8xf32>
    %139 = arith.divf %135, %138 : vector<8x8xf32>
    %cst_56 = arith.constant dense<0.000000e+00> : vector<8x32xf32>
    %140 = tpu.matmul %139, %125, %cst_56 {dimension_numbers = #tpu.dot_dimension_numbers<[1], [0], [0], [1], [0, 0, 1, 1], [], []>} : vector<8x8xf32>, vector<8x32xf32>, vector<8x32xf32> -> vector<8x32xf32>
    %141 = vector.extract_strided_slice %120 {offsets = [0, 32], sizes = [8, 32], strides = [1, 1]} : vector<8x128xf32> to vector<8x32xf32>
    %142 = vector.extract_strided_slice %121 {offsets = [0, 32], sizes = [8, 32], strides = [1, 1]} : vector<8x128xf32> to vector<8x32xf32>
    %143 = vector.extract_strided_slice %122 {offsets = [0, 32], sizes = [8, 32], strides = [1, 1]} : vector<8x128xf32> to vector<8x32xf32>
    %cst_57 = arith.constant dense<0.000000e+00> : vector<8x8xf32>
    %144 = tpu.matmul %141, %142, %cst_57 {dimension_numbers = #tpu.dot_dimension_numbers<[1], [1], [0], [0], [0, 0, 1, 0], [], []>} : vector<8x32xf32>, vector<8x32xf32>, vector<8x8xf32> -> vector<8x8xf32>
    %cst_58 = arith.constant 0.176776692 : f32
    %145 = vector.broadcast %cst_58 : f32 to vector<8x8xf32>
    %146 = arith.mulf %144, %145 : vector<8x8xf32>
    %cst_59 = arith.constant -1.000000e+30 : f32
    %147 = vector.broadcast %cst_59 : f32 to vector<8x8xf32>
    %148 = arith.select %15, %146, %147 : vector<8x8xi1>, vector<8x8xf32>
    %cst_60 = arith.constant dense<0xFF800000> : vector<8xf32>
    %149 = vector.multi_reduction <maximumf>, %148, %cst_60 [1] : vector<8x8xf32> to vector<8xf32>
    %150 = vector.shape_cast %149 : vector<8xf32> to vector<8x1xf32>
    %151 = vector.broadcast %150 : vector<8x1xf32> to vector<8x8xf32>
    %152 = arith.subf %148, %151 : vector<8x8xf32>
    %153 = math.exp %152 : vector<8x8xf32>
    %cst_61 = arith.constant dense<0.000000e+00> : vector<8xf32>
    %154 = vector.multi_reduction <add>, %153, %cst_61 [1] : vector<8x8xf32> to vector<8xf32>
    %155 = vector.shape_cast %154 : vector<8xf32> to vector<8x1xf32>
    %156 = vector.broadcast %155 : vector<8x1xf32> to vector<8x8xf32>
    %157 = arith.divf %153, %156 : vector<8x8xf32>
    %cst_62 = arith.constant dense<0.000000e+00> : vector<8x32xf32>
    %158 = tpu.matmul %157, %143, %cst_62 {dimension_numbers = #tpu.dot_dimension_numbers<[1], [0], [0], [1], [0, 0, 1, 1], [], []>} : vector<8x8xf32>, vector<8x32xf32>, vector<8x32xf32> -> vector<8x32xf32>
    %159 = vector.extract_strided_slice %120 {offsets = [0, 64], sizes = [8, 32], strides = [1, 1]} : vector<8x128xf32> to vector<8x32xf32>
    %160 = vector.extract_strided_slice %121 {offsets = [0, 64], sizes = [8, 32], strides = [1, 1]} : vector<8x128xf32> to vector<8x32xf32>
    %161 = vector.extract_strided_slice %122 {offsets = [0, 64], sizes = [8, 32], strides = [1, 1]} : vector<8x128xf32> to vector<8x32xf32>
    %cst_63 = arith.constant dense<0.000000e+00> : vector<8x8xf32>
    %162 = tpu.matmul %159, %160, %cst_63 {dimension_numbers = #tpu.dot_dimension_numbers<[1], [1], [0], [0], [0, 0, 1, 0], [], []>} : vector<8x32xf32>, vector<8x32xf32>, vector<8x8xf32> -> vector<8x8xf32>
    %cst_64 = arith.constant 0.176776692 : f32
    %163 = vector.broadcast %cst_64 : f32 to vector<8x8xf32>
    %164 = arith.mulf %162, %163 : vector<8x8xf32>
    %cst_65 = arith.constant -1.000000e+30 : f32
    %165 = vector.broadcast %cst_65 : f32 to vector<8x8xf32>
    %166 = arith.select %15, %164, %165 : vector<8x8xi1>, vector<8x8xf32>
    %cst_66 = arith.constant dense<0xFF800000> : vector<8xf32>
    %167 = vector.multi_reduction <maximumf>, %166, %cst_66 [1] : vector<8x8xf32> to vector<8xf32>
    %168 = vector.shape_cast %167 : vector<8xf32> to vector<8x1xf32>
    %169 = vector.broadcast %168 : vector<8x1xf32> to vector<8x8xf32>
    %170 = arith.subf %166, %169 : vector<8x8xf32>
    %171 = math.exp %170 : vector<8x8xf32>
    %cst_67 = arith.constant dense<0.000000e+00> : vector<8xf32>
    %172 = vector.multi_reduction <add>, %171, %cst_67 [1] : vector<8x8xf32> to vector<8xf32>
    %173 = vector.shape_cast %172 : vector<8xf32> to vector<8x1xf32>
    %174 = vector.broadcast %173 : vector<8x1xf32> to vector<8x8xf32>
    %175 = arith.divf %171, %174 : vector<8x8xf32>
    %cst_68 = arith.constant dense<0.000000e+00> : vector<8x32xf32>
    %176 = tpu.matmul %175, %161, %cst_68 {dimension_numbers = #tpu.dot_dimension_numbers<[1], [0], [0], [1], [0, 0, 1, 1], [], []>} : vector<8x8xf32>, vector<8x32xf32>, vector<8x32xf32> -> vector<8x32xf32>
    %177 = vector.extract_strided_slice %120 {offsets = [0, 96], sizes = [8, 32], strides = [1, 1]} : vector<8x128xf32> to vector<8x32xf32>
    %178 = vector.extract_strided_slice %121 {offsets = [0, 96], sizes = [8, 32], strides = [1, 1]} : vector<8x128xf32> to vector<8x32xf32>
    %179 = vector.extract_strided_slice %122 {offsets = [0, 96], sizes = [8, 32], strides = [1, 1]} : vector<8x128xf32> to vector<8x32xf32>
    %cst_69 = arith.constant dense<0.000000e+00> : vector<8x8xf32>
    %180 = tpu.matmul %177, %178, %cst_69 {dimension_numbers = #tpu.dot_dimension_numbers<[1], [1], [0], [0], [0, 0, 1, 0], [], []>} : vector<8x32xf32>, vector<8x32xf32>, vector<8x8xf32> -> vector<8x8xf32>
    %cst_70 = arith.constant 0.176776692 : f32
    %181 = vector.broadcast %cst_70 : f32 to vector<8x8xf32>
    %182 = arith.mulf %180, %181 : vector<8x8xf32>
    %cst_71 = arith.constant -1.000000e+30 : f32
    %183 = vector.broadcast %cst_71 : f32 to vector<8x8xf32>
    %184 = arith.select %15, %182, %183 : vector<8x8xi1>, vector<8x8xf32>
    %cst_72 = arith.constant dense<0xFF800000> : vector<8xf32>
    %185 = vector.multi_reduction <maximumf>, %184, %cst_72 [1] : vector<8x8xf32> to vector<8xf32>
    %186 = vector.shape_cast %185 : vector<8xf32> to vector<8x1xf32>
    %187 = vector.broadcast %186 : vector<8x1xf32> to vector<8x8xf32>
    %188 = arith.subf %184, %187 : vector<8x8xf32>
    %189 = math.exp %188 : vector<8x8xf32>
    %cst_73 = arith.constant dense<0.000000e+00> : vector<8xf32>
    %190 = vector.multi_reduction <add>, %189, %cst_73 [1] : vector<8x8xf32> to vector<8xf32>
    %191 = vector.shape_cast %190 : vector<8xf32> to vector<8x1xf32>
    %192 = vector.broadcast %191 : vector<8x1xf32> to vector<8x8xf32>
    %193 = arith.divf %189, %192 : vector<8x8xf32>
    %cst_74 = arith.constant dense<0.000000e+00> : vector<8x32xf32>
    %194 = tpu.matmul %193, %179, %cst_74 {dimension_numbers = #tpu.dot_dimension_numbers<[1], [0], [0], [1], [0, 0, 1, 1], [], []>} : vector<8x8xf32>, vector<8x32xf32>, vector<8x32xf32> -> vector<8x32xf32>
    %195 = tpu.concatenate %140, %158, %176, %194 in 1 : vector<8x32xf32>, vector<8x32xf32>, vector<8x32xf32>, vector<8x32xf32> -> vector<8x128xf32>
    %196 = tpu.concatenate %119, %195 in 0 : vector<8x128xf32>, vector<8x128xf32> -> vector<16x128xf32>
    %c0_75 = arith.constant 0 : index
    %c0_76 = arith.constant 0 : index
    %c0_77 = arith.constant 0 : index
    %197 = vector.load %arg10[%c0_75, %c0_76, %c0_77] : memref<2x128x128xf32, #tpu.memory_space<vmem>>, vector<1x128x128xf32>
    %198 = vector.shape_cast %197 : vector<1x128x128xf32> to vector<128x128xf32>
    %cst_78 = arith.constant dense<0.000000e+00> : vector<16x128xf32>
    %199 = tpu.matmul %196, %198, %cst_78 {dimension_numbers = #tpu.dot_dimension_numbers<[1], [0], [0], [1], [0, 0, 1, 1], [], []>} : vector<16x128xf32>, vector<128x128xf32>, vector<16x128xf32> -> vector<16x128xf32>
    %200 = arith.addf %9, %199 : vector<16x128xf32>
    %c0_79 = arith.constant 0 : index
    %c0_80 = arith.constant 0 : index
    %c0_81 = arith.constant 0 : index
    %201 = vector.load %arg11[%c0_79, %c0_80, %c0_81] : memref<2x1x128xf32, #tpu.memory_space<vmem>>, vector<1x1x128xf32>
    %202 = vector.shape_cast %201 : vector<1x1x128xf32> to vector<1x128xf32>
    %203 = arith.mulf %200, %200 : vector<16x128xf32>
    %cst_82 = arith.constant dense<0.000000e+00> : vector<16xf32>
    %204 = vector.multi_reduction <add>, %203, %cst_82 [1] : vector<16x128xf32> to vector<16xf32>
    %205 = vector.shape_cast %204 : vector<16xf32> to vector<16x1xf32>
    %cst_83 = arith.constant 1.280000e+02 : f32
    %206 = vector.broadcast %cst_83 : f32 to vector<16x1xf32>
    %207 = arith.divf %205, %206 : vector<16x1xf32>
    %cst_84 = arith.constant 9.99999997E-7 : f32
    %208 = vector.broadcast %cst_84 : f32 to vector<16x1xf32>
    %209 = arith.addf %207, %208 : vector<16x1xf32>
    %210 = math.rsqrt %209 : vector<16x1xf32>
    %211 = vector.broadcast %210 : vector<16x1xf32> to vector<16x128xf32>
    %212 = arith.mulf %200, %211 : vector<16x128xf32>
    %213 = vector.broadcast %202 : vector<1x128xf32> to vector<16x128xf32>
    %214 = arith.mulf %212, %213 : vector<16x128xf32>
    %c0_85 = arith.constant 0 : index
    %c0_86 = arith.constant 0 : index
    %c0_87 = arith.constant 0 : index
    %215 = vector.load %arg12[%c0_85, %c0_86, %c0_87] : memref<2x128x512xf32, #tpu.memory_space<vmem>>, vector<1x128x512xf32>
    %216 = vector.shape_cast %215 : vector<1x128x512xf32> to vector<128x512xf32>
    %cst_88 = arith.constant dense<0.000000e+00> : vector<16x512xf32>
    %217 = tpu.matmul %214, %216, %cst_88 {dimension_numbers = #tpu.dot_dimension_numbers<[1], [0], [0], [1], [0, 0, 1, 1], [], []>} : vector<16x128xf32>, vector<128x512xf32>, vector<16x512xf32> -> vector<16x512xf32>
    %218 = vector.extract_strided_slice %217 {offsets = [0, 0], sizes = [16, 256], strides = [1, 1]} : vector<16x512xf32> to vector<16x256xf32>
    %219 = vector.extract_strided_slice %217 {offsets = [0, 256], sizes = [16, 256], strides = [1, 1]} : vector<16x512xf32> to vector<16x256xf32>
    %220 = arith.negf %218 : vector<16x256xf32>
    %221 = math.exp %220 : vector<16x256xf32>
    %cst_89 = arith.constant 1.000000e+00 : f32
    %222 = vector.broadcast %cst_89 : f32 to vector<16x256xf32>
    %223 = arith.addf %222, %221 : vector<16x256xf32>
    %224 = arith.divf %222, %223 : vector<16x256xf32>
    %225 = arith.mulf %218, %224 : vector<16x256xf32>
    %226 = arith.mulf %225, %219 : vector<16x256xf32>
    %c0_90 = arith.constant 0 : index
    %c0_91 = arith.constant 0 : index
    %c0_92 = arith.constant 0 : index
    %227 = vector.load %arg13[%c0_90, %c0_91, %c0_92] : memref<2x256x128xf32, #tpu.memory_space<vmem>>, vector<1x256x128xf32>
    %228 = vector.shape_cast %227 : vector<1x256x128xf32> to vector<256x128xf32>
    %cst_93 = arith.constant dense<0.000000e+00> : vector<16x128xf32>
    %229 = tpu.matmul %226, %228, %cst_93 {dimension_numbers = #tpu.dot_dimension_numbers<[1], [0], [0], [1], [0, 0, 1, 1], [], []>} : vector<16x256xf32>, vector<256x128xf32>, vector<16x128xf32> -> vector<16x128xf32>
    %230 = arith.addf %200, %229 : vector<16x128xf32>
    %c1 = arith.constant 1 : index
    %c0_94 = arith.constant 0 : index
    %c0_95 = arith.constant 0 : index
    %231 = vector.load %arg8[%c1, %c0_94, %c0_95] : memref<2x1x128xf32, #tpu.memory_space<vmem>>, vector<1x1x128xf32>
    %232 = vector.shape_cast %231 : vector<1x1x128xf32> to vector<1x128xf32>
    %233 = arith.mulf %230, %230 : vector<16x128xf32>
    %cst_96 = arith.constant dense<0.000000e+00> : vector<16xf32>
    %234 = vector.multi_reduction <add>, %233, %cst_96 [1] : vector<16x128xf32> to vector<16xf32>
    %235 = vector.shape_cast %234 : vector<16xf32> to vector<16x1xf32>
    %cst_97 = arith.constant 1.280000e+02 : f32
    %236 = vector.broadcast %cst_97 : f32 to vector<16x1xf32>
    %237 = arith.divf %235, %236 : vector<16x1xf32>
    %cst_98 = arith.constant 9.99999997E-7 : f32
    %238 = vector.broadcast %cst_98 : f32 to vector<16x1xf32>
    %239 = arith.addf %237, %238 : vector<16x1xf32>
    %240 = math.rsqrt %239 : vector<16x1xf32>
    %241 = vector.broadcast %240 : vector<16x1xf32> to vector<16x128xf32>
    %242 = arith.mulf %230, %241 : vector<16x128xf32>
    %243 = vector.broadcast %232 : vector<1x128xf32> to vector<16x128xf32>
    %244 = arith.mulf %242, %243 : vector<16x128xf32>
    %c1_99 = arith.constant 1 : index
    %c0_100 = arith.constant 0 : index
    %c0_101 = arith.constant 0 : index
    %245 = vector.load %arg9[%c1_99, %c0_100, %c0_101] : memref<2x128x384xf32, #tpu.memory_space<vmem>>, vector<1x128x384xf32>
    %246 = vector.shape_cast %245 : vector<1x128x384xf32> to vector<128x384xf32>
    %cst_102 = arith.constant dense<0.000000e+00> : vector<16x384xf32>
    %247 = tpu.matmul %244, %246, %cst_102 {dimension_numbers = #tpu.dot_dimension_numbers<[1], [0], [0], [1], [0, 0, 1, 1], [], []>} : vector<16x128xf32>, vector<128x384xf32>, vector<16x384xf32> -> vector<16x384xf32>
    %248 = vector.extract_strided_slice %247 {offsets = [0, 0], sizes = [16, 128], strides = [1, 1]} : vector<16x384xf32> to vector<16x128xf32>
    %249 = vector.extract_strided_slice %247 {offsets = [0, 128], sizes = [16, 128], strides = [1, 1]} : vector<16x384xf32> to vector<16x128xf32>
    %250 = vector.extract_strided_slice %247 {offsets = [0, 256], sizes = [16, 128], strides = [1, 1]} : vector<16x384xf32> to vector<16x128xf32>
    %251 = arith.mulf %248, %10 : vector<16x128xf32>
    %cst_103 = arith.constant dense<0.000000e+00> : vector<16x128xf32>
    %252 = tpu.matmul %248, %12, %cst_103 {dimension_numbers = #tpu.dot_dimension_numbers<[1], [0], [0], [1], [0, 0, 1, 1], [], []>} : vector<16x128xf32>, vector<128x128xf32>, vector<16x128xf32> -> vector<16x128xf32>
    %253 = arith.mulf %252, %11 : vector<16x128xf32>
    %254 = arith.addf %251, %253 : vector<16x128xf32>
    %255 = arith.mulf %249, %10 : vector<16x128xf32>
    %cst_104 = arith.constant dense<0.000000e+00> : vector<16x128xf32>
    %256 = tpu.matmul %249, %12, %cst_104 {dimension_numbers = #tpu.dot_dimension_numbers<[1], [0], [0], [1], [0, 0, 1, 1], [], []>} : vector<16x128xf32>, vector<128x128xf32>, vector<16x128xf32> -> vector<16x128xf32>
    %257 = arith.mulf %256, %11 : vector<16x128xf32>
    %258 = arith.addf %255, %257 : vector<16x128xf32>
    %259 = vector.extract_strided_slice %254 {offsets = [0, 0], sizes = [8, 128], strides = [1, 1]} : vector<16x128xf32> to vector<8x128xf32>
    %260 = vector.extract_strided_slice %258 {offsets = [0, 0], sizes = [8, 128], strides = [1, 1]} : vector<16x128xf32> to vector<8x128xf32>
    %261 = vector.extract_strided_slice %250 {offsets = [0, 0], sizes = [8, 128], strides = [1, 1]} : vector<16x128xf32> to vector<8x128xf32>
    %262 = vector.extract_strided_slice %259 {offsets = [0, 0], sizes = [8, 32], strides = [1, 1]} : vector<8x128xf32> to vector<8x32xf32>
    %263 = vector.extract_strided_slice %260 {offsets = [0, 0], sizes = [8, 32], strides = [1, 1]} : vector<8x128xf32> to vector<8x32xf32>
    %264 = vector.extract_strided_slice %261 {offsets = [0, 0], sizes = [8, 32], strides = [1, 1]} : vector<8x128xf32> to vector<8x32xf32>
    %cst_105 = arith.constant dense<0.000000e+00> : vector<8x8xf32>
    %265 = tpu.matmul %262, %263, %cst_105 {dimension_numbers = #tpu.dot_dimension_numbers<[1], [1], [0], [0], [0, 0, 1, 0], [], []>} : vector<8x32xf32>, vector<8x32xf32>, vector<8x8xf32> -> vector<8x8xf32>
    %cst_106 = arith.constant 0.176776692 : f32
    %266 = vector.broadcast %cst_106 : f32 to vector<8x8xf32>
    %267 = arith.mulf %265, %266 : vector<8x8xf32>
    %cst_107 = arith.constant -1.000000e+30 : f32
    %268 = vector.broadcast %cst_107 : f32 to vector<8x8xf32>
    %269 = arith.select %15, %267, %268 : vector<8x8xi1>, vector<8x8xf32>
    %cst_108 = arith.constant dense<0xFF800000> : vector<8xf32>
    %270 = vector.multi_reduction <maximumf>, %269, %cst_108 [1] : vector<8x8xf32> to vector<8xf32>
    %271 = vector.shape_cast %270 : vector<8xf32> to vector<8x1xf32>
    %272 = vector.broadcast %271 : vector<8x1xf32> to vector<8x8xf32>
    %273 = arith.subf %269, %272 : vector<8x8xf32>
    %274 = math.exp %273 : vector<8x8xf32>
    %cst_109 = arith.constant dense<0.000000e+00> : vector<8xf32>
    %275 = vector.multi_reduction <add>, %274, %cst_109 [1] : vector<8x8xf32> to vector<8xf32>
    %276 = vector.shape_cast %275 : vector<8xf32> to vector<8x1xf32>
    %277 = vector.broadcast %276 : vector<8x1xf32> to vector<8x8xf32>
    %278 = arith.divf %274, %277 : vector<8x8xf32>
    %cst_110 = arith.constant dense<0.000000e+00> : vector<8x32xf32>
    %279 = tpu.matmul %278, %264, %cst_110 {dimension_numbers = #tpu.dot_dimension_numbers<[1], [0], [0], [1], [0, 0, 1, 1], [], []>} : vector<8x8xf32>, vector<8x32xf32>, vector<8x32xf32> -> vector<8x32xf32>
    %280 = vector.extract_strided_slice %259 {offsets = [0, 32], sizes = [8, 32], strides = [1, 1]} : vector<8x128xf32> to vector<8x32xf32>
    %281 = vector.extract_strided_slice %260 {offsets = [0, 32], sizes = [8, 32], strides = [1, 1]} : vector<8x128xf32> to vector<8x32xf32>
    %282 = vector.extract_strided_slice %261 {offsets = [0, 32], sizes = [8, 32], strides = [1, 1]} : vector<8x128xf32> to vector<8x32xf32>
    %cst_111 = arith.constant dense<0.000000e+00> : vector<8x8xf32>
    %283 = tpu.matmul %280, %281, %cst_111 {dimension_numbers = #tpu.dot_dimension_numbers<[1], [1], [0], [0], [0, 0, 1, 0], [], []>} : vector<8x32xf32>, vector<8x32xf32>, vector<8x8xf32> -> vector<8x8xf32>
    %cst_112 = arith.constant 0.176776692 : f32
    %284 = vector.broadcast %cst_112 : f32 to vector<8x8xf32>
    %285 = arith.mulf %283, %284 : vector<8x8xf32>
    %cst_113 = arith.constant -1.000000e+30 : f32
    %286 = vector.broadcast %cst_113 : f32 to vector<8x8xf32>
    %287 = arith.select %15, %285, %286 : vector<8x8xi1>, vector<8x8xf32>
    %cst_114 = arith.constant dense<0xFF800000> : vector<8xf32>
    %288 = vector.multi_reduction <maximumf>, %287, %cst_114 [1] : vector<8x8xf32> to vector<8xf32>
    %289 = vector.shape_cast %288 : vector<8xf32> to vector<8x1xf32>
    %290 = vector.broadcast %289 : vector<8x1xf32> to vector<8x8xf32>
    %291 = arith.subf %287, %290 : vector<8x8xf32>
    %292 = math.exp %291 : vector<8x8xf32>
    %cst_115 = arith.constant dense<0.000000e+00> : vector<8xf32>
    %293 = vector.multi_reduction <add>, %292, %cst_115 [1] : vector<8x8xf32> to vector<8xf32>
    %294 = vector.shape_cast %293 : vector<8xf32> to vector<8x1xf32>
    %295 = vector.broadcast %294 : vector<8x1xf32> to vector<8x8xf32>
    %296 = arith.divf %292, %295 : vector<8x8xf32>
    %cst_116 = arith.constant dense<0.000000e+00> : vector<8x32xf32>
    %297 = tpu.matmul %296, %282, %cst_116 {dimension_numbers = #tpu.dot_dimension_numbers<[1], [0], [0], [1], [0, 0, 1, 1], [], []>} : vector<8x8xf32>, vector<8x32xf32>, vector<8x32xf32> -> vector<8x32xf32>
    %298 = vector.extract_strided_slice %259 {offsets = [0, 64], sizes = [8, 32], strides = [1, 1]} : vector<8x128xf32> to vector<8x32xf32>
    %299 = vector.extract_strided_slice %260 {offsets = [0, 64], sizes = [8, 32], strides = [1, 1]} : vector<8x128xf32> to vector<8x32xf32>
    %300 = vector.extract_strided_slice %261 {offsets = [0, 64], sizes = [8, 32], strides = [1, 1]} : vector<8x128xf32> to vector<8x32xf32>
    %cst_117 = arith.constant dense<0.000000e+00> : vector<8x8xf32>
    %301 = tpu.matmul %298, %299, %cst_117 {dimension_numbers = #tpu.dot_dimension_numbers<[1], [1], [0], [0], [0, 0, 1, 0], [], []>} : vector<8x32xf32>, vector<8x32xf32>, vector<8x8xf32> -> vector<8x8xf32>
    %cst_118 = arith.constant 0.176776692 : f32
    %302 = vector.broadcast %cst_118 : f32 to vector<8x8xf32>
    %303 = arith.mulf %301, %302 : vector<8x8xf32>
    %cst_119 = arith.constant -1.000000e+30 : f32
    %304 = vector.broadcast %cst_119 : f32 to vector<8x8xf32>
    %305 = arith.select %15, %303, %304 : vector<8x8xi1>, vector<8x8xf32>
    %cst_120 = arith.constant dense<0xFF800000> : vector<8xf32>
    %306 = vector.multi_reduction <maximumf>, %305, %cst_120 [1] : vector<8x8xf32> to vector<8xf32>
    %307 = vector.shape_cast %306 : vector<8xf32> to vector<8x1xf32>
    %308 = vector.broadcast %307 : vector<8x1xf32> to vector<8x8xf32>
    %309 = arith.subf %305, %308 : vector<8x8xf32>
    %310 = math.exp %309 : vector<8x8xf32>
    %cst_121 = arith.constant dense<0.000000e+00> : vector<8xf32>
    %311 = vector.multi_reduction <add>, %310, %cst_121 [1] : vector<8x8xf32> to vector<8xf32>
    %312 = vector.shape_cast %311 : vector<8xf32> to vector<8x1xf32>
    %313 = vector.broadcast %312 : vector<8x1xf32> to vector<8x8xf32>
    %314 = arith.divf %310, %313 : vector<8x8xf32>
    %cst_122 = arith.constant dense<0.000000e+00> : vector<8x32xf32>
    %315 = tpu.matmul %314, %300, %cst_122 {dimension_numbers = #tpu.dot_dimension_numbers<[1], [0], [0], [1], [0, 0, 1, 1], [], []>} : vector<8x8xf32>, vector<8x32xf32>, vector<8x32xf32> -> vector<8x32xf32>
    %316 = vector.extract_strided_slice %259 {offsets = [0, 96], sizes = [8, 32], strides = [1, 1]} : vector<8x128xf32> to vector<8x32xf32>
    %317 = vector.extract_strided_slice %260 {offsets = [0, 96], sizes = [8, 32], strides = [1, 1]} : vector<8x128xf32> to vector<8x32xf32>
    %318 = vector.extract_strided_slice %261 {offsets = [0, 96], sizes = [8, 32], strides = [1, 1]} : vector<8x128xf32> to vector<8x32xf32>
    %cst_123 = arith.constant dense<0.000000e+00> : vector<8x8xf32>
    %319 = tpu.matmul %316, %317, %cst_123 {dimension_numbers = #tpu.dot_dimension_numbers<[1], [1], [0], [0], [0, 0, 1, 0], [], []>} : vector<8x32xf32>, vector<8x32xf32>, vector<8x8xf32> -> vector<8x8xf32>
    %cst_124 = arith.constant 0.176776692 : f32
    %320 = vector.broadcast %cst_124 : f32 to vector<8x8xf32>
    %321 = arith.mulf %319, %320 : vector<8x8xf32>
    %cst_125 = arith.constant -1.000000e+30 : f32
    %322 = vector.broadcast %cst_125 : f32 to vector<8x8xf32>
    %323 = arith.select %15, %321, %322 : vector<8x8xi1>, vector<8x8xf32>
    %cst_126 = arith.constant dense<0xFF800000> : vector<8xf32>
    %324 = vector.multi_reduction <maximumf>, %323, %cst_126 [1] : vector<8x8xf32> to vector<8xf32>
    %325 = vector.shape_cast %324 : vector<8xf32> to vector<8x1xf32>
    %326 = vector.broadcast %325 : vector<8x1xf32> to vector<8x8xf32>
    %327 = arith.subf %323, %326 : vector<8x8xf32>
    %328 = math.exp %327 : vector<8x8xf32>
    %cst_127 = arith.constant dense<0.000000e+00> : vector<8xf32>
    %329 = vector.multi_reduction <add>, %328, %cst_127 [1] : vector<8x8xf32> to vector<8xf32>
    %330 = vector.shape_cast %329 : vector<8xf32> to vector<8x1xf32>
    %331 = vector.broadcast %330 : vector<8x1xf32> to vector<8x8xf32>
    %332 = arith.divf %328, %331 : vector<8x8xf32>
    %cst_128 = arith.constant dense<0.000000e+00> : vector<8x32xf32>
    %333 = tpu.matmul %332, %318, %cst_128 {dimension_numbers = #tpu.dot_dimension_numbers<[1], [0], [0], [1], [0, 0, 1, 1], [], []>} : vector<8x8xf32>, vector<8x32xf32>, vector<8x32xf32> -> vector<8x32xf32>
    %334 = tpu.concatenate %279, %297, %315, %333 in 1 : vector<8x32xf32>, vector<8x32xf32>, vector<8x32xf32>, vector<8x32xf32> -> vector<8x128xf32>
    %335 = vector.extract_strided_slice %254 {offsets = [8, 0], sizes = [8, 128], strides = [1, 1]} : vector<16x128xf32> to vector<8x128xf32>
    %336 = vector.extract_strided_slice %258 {offsets = [8, 0], sizes = [8, 128], strides = [1, 1]} : vector<16x128xf32> to vector<8x128xf32>
    %337 = vector.extract_strided_slice %250 {offsets = [8, 0], sizes = [8, 128], strides = [1, 1]} : vector<16x128xf32> to vector<8x128xf32>
    %338 = vector.extract_strided_slice %335 {offsets = [0, 0], sizes = [8, 32], strides = [1, 1]} : vector<8x128xf32> to vector<8x32xf32>
    %339 = vector.extract_strided_slice %336 {offsets = [0, 0], sizes = [8, 32], strides = [1, 1]} : vector<8x128xf32> to vector<8x32xf32>
    %340 = vector.extract_strided_slice %337 {offsets = [0, 0], sizes = [8, 32], strides = [1, 1]} : vector<8x128xf32> to vector<8x32xf32>
    %cst_129 = arith.constant dense<0.000000e+00> : vector<8x8xf32>
    %341 = tpu.matmul %338, %339, %cst_129 {dimension_numbers = #tpu.dot_dimension_numbers<[1], [1], [0], [0], [0, 0, 1, 0], [], []>} : vector<8x32xf32>, vector<8x32xf32>, vector<8x8xf32> -> vector<8x8xf32>
    %cst_130 = arith.constant 0.176776692 : f32
    %342 = vector.broadcast %cst_130 : f32 to vector<8x8xf32>
    %343 = arith.mulf %341, %342 : vector<8x8xf32>
    %cst_131 = arith.constant -1.000000e+30 : f32
    %344 = vector.broadcast %cst_131 : f32 to vector<8x8xf32>
    %345 = arith.select %15, %343, %344 : vector<8x8xi1>, vector<8x8xf32>
    %cst_132 = arith.constant dense<0xFF800000> : vector<8xf32>
    %346 = vector.multi_reduction <maximumf>, %345, %cst_132 [1] : vector<8x8xf32> to vector<8xf32>
    %347 = vector.shape_cast %346 : vector<8xf32> to vector<8x1xf32>
    %348 = vector.broadcast %347 : vector<8x1xf32> to vector<8x8xf32>
    %349 = arith.subf %345, %348 : vector<8x8xf32>
    %350 = math.exp %349 : vector<8x8xf32>
    %cst_133 = arith.constant dense<0.000000e+00> : vector<8xf32>
    %351 = vector.multi_reduction <add>, %350, %cst_133 [1] : vector<8x8xf32> to vector<8xf32>
    %352 = vector.shape_cast %351 : vector<8xf32> to vector<8x1xf32>
    %353 = vector.broadcast %352 : vector<8x1xf32> to vector<8x8xf32>
    %354 = arith.divf %350, %353 : vector<8x8xf32>
    %cst_134 = arith.constant dense<0.000000e+00> : vector<8x32xf32>
    %355 = tpu.matmul %354, %340, %cst_134 {dimension_numbers = #tpu.dot_dimension_numbers<[1], [0], [0], [1], [0, 0, 1, 1], [], []>} : vector<8x8xf32>, vector<8x32xf32>, vector<8x32xf32> -> vector<8x32xf32>
    %356 = vector.extract_strided_slice %335 {offsets = [0, 32], sizes = [8, 32], strides = [1, 1]} : vector<8x128xf32> to vector<8x32xf32>
    %357 = vector.extract_strided_slice %336 {offsets = [0, 32], sizes = [8, 32], strides = [1, 1]} : vector<8x128xf32> to vector<8x32xf32>
    %358 = vector.extract_strided_slice %337 {offsets = [0, 32], sizes = [8, 32], strides = [1, 1]} : vector<8x128xf32> to vector<8x32xf32>
    %cst_135 = arith.constant dense<0.000000e+00> : vector<8x8xf32>
    %359 = tpu.matmul %356, %357, %cst_135 {dimension_numbers = #tpu.dot_dimension_numbers<[1], [1], [0], [0], [0, 0, 1, 0], [], []>} : vector<8x32xf32>, vector<8x32xf32>, vector<8x8xf32> -> vector<8x8xf32>
    %cst_136 = arith.constant 0.176776692 : f32
    %360 = vector.broadcast %cst_136 : f32 to vector<8x8xf32>
    %361 = arith.mulf %359, %360 : vector<8x8xf32>
    %cst_137 = arith.constant -1.000000e+30 : f32
    %362 = vector.broadcast %cst_137 : f32 to vector<8x8xf32>
    %363 = arith.select %15, %361, %362 : vector<8x8xi1>, vector<8x8xf32>
    %cst_138 = arith.constant dense<0xFF800000> : vector<8xf32>
    %364 = vector.multi_reduction <maximumf>, %363, %cst_138 [1] : vector<8x8xf32> to vector<8xf32>
    %365 = vector.shape_cast %364 : vector<8xf32> to vector<8x1xf32>
    %366 = vector.broadcast %365 : vector<8x1xf32> to vector<8x8xf32>
    %367 = arith.subf %363, %366 : vector<8x8xf32>
    %368 = math.exp %367 : vector<8x8xf32>
    %cst_139 = arith.constant dense<0.000000e+00> : vector<8xf32>
    %369 = vector.multi_reduction <add>, %368, %cst_139 [1] : vector<8x8xf32> to vector<8xf32>
    %370 = vector.shape_cast %369 : vector<8xf32> to vector<8x1xf32>
    %371 = vector.broadcast %370 : vector<8x1xf32> to vector<8x8xf32>
    %372 = arith.divf %368, %371 : vector<8x8xf32>
    %cst_140 = arith.constant dense<0.000000e+00> : vector<8x32xf32>
    %373 = tpu.matmul %372, %358, %cst_140 {dimension_numbers = #tpu.dot_dimension_numbers<[1], [0], [0], [1], [0, 0, 1, 1], [], []>} : vector<8x8xf32>, vector<8x32xf32>, vector<8x32xf32> -> vector<8x32xf32>
    %374 = vector.extract_strided_slice %335 {offsets = [0, 64], sizes = [8, 32], strides = [1, 1]} : vector<8x128xf32> to vector<8x32xf32>
    %375 = vector.extract_strided_slice %336 {offsets = [0, 64], sizes = [8, 32], strides = [1, 1]} : vector<8x128xf32> to vector<8x32xf32>
    %376 = vector.extract_strided_slice %337 {offsets = [0, 64], sizes = [8, 32], strides = [1, 1]} : vector<8x128xf32> to vector<8x32xf32>
    %cst_141 = arith.constant dense<0.000000e+00> : vector<8x8xf32>
    %377 = tpu.matmul %374, %375, %cst_141 {dimension_numbers = #tpu.dot_dimension_numbers<[1], [1], [0], [0], [0, 0, 1, 0], [], []>} : vector<8x32xf32>, vector<8x32xf32>, vector<8x8xf32> -> vector<8x8xf32>
    %cst_142 = arith.constant 0.176776692 : f32
    %378 = vector.broadcast %cst_142 : f32 to vector<8x8xf32>
    %379 = arith.mulf %377, %378 : vector<8x8xf32>
    %cst_143 = arith.constant -1.000000e+30 : f32
    %380 = vector.broadcast %cst_143 : f32 to vector<8x8xf32>
    %381 = arith.select %15, %379, %380 : vector<8x8xi1>, vector<8x8xf32>
    %cst_144 = arith.constant dense<0xFF800000> : vector<8xf32>
    %382 = vector.multi_reduction <maximumf>, %381, %cst_144 [1] : vector<8x8xf32> to vector<8xf32>
    %383 = vector.shape_cast %382 : vector<8xf32> to vector<8x1xf32>
    %384 = vector.broadcast %383 : vector<8x1xf32> to vector<8x8xf32>
    %385 = arith.subf %381, %384 : vector<8x8xf32>
    %386 = math.exp %385 : vector<8x8xf32>
    %cst_145 = arith.constant dense<0.000000e+00> : vector<8xf32>
    %387 = vector.multi_reduction <add>, %386, %cst_145 [1] : vector<8x8xf32> to vector<8xf32>
    %388 = vector.shape_cast %387 : vector<8xf32> to vector<8x1xf32>
    %389 = vector.broadcast %388 : vector<8x1xf32> to vector<8x8xf32>
    %390 = arith.divf %386, %389 : vector<8x8xf32>
    %cst_146 = arith.constant dense<0.000000e+00> : vector<8x32xf32>
    %391 = tpu.matmul %390, %376, %cst_146 {dimension_numbers = #tpu.dot_dimension_numbers<[1], [0], [0], [1], [0, 0, 1, 1], [], []>} : vector<8x8xf32>, vector<8x32xf32>, vector<8x32xf32> -> vector<8x32xf32>
    %392 = vector.extract_strided_slice %335 {offsets = [0, 96], sizes = [8, 32], strides = [1, 1]} : vector<8x128xf32> to vector<8x32xf32>
    %393 = vector.extract_strided_slice %336 {offsets = [0, 96], sizes = [8, 32], strides = [1, 1]} : vector<8x128xf32> to vector<8x32xf32>
    %394 = vector.extract_strided_slice %337 {offsets = [0, 96], sizes = [8, 32], strides = [1, 1]} : vector<8x128xf32> to vector<8x32xf32>
    %cst_147 = arith.constant dense<0.000000e+00> : vector<8x8xf32>
    %395 = tpu.matmul %392, %393, %cst_147 {dimension_numbers = #tpu.dot_dimension_numbers<[1], [1], [0], [0], [0, 0, 1, 0], [], []>} : vector<8x32xf32>, vector<8x32xf32>, vector<8x8xf32> -> vector<8x8xf32>
    %cst_148 = arith.constant 0.176776692 : f32
    %396 = vector.broadcast %cst_148 : f32 to vector<8x8xf32>
    %397 = arith.mulf %395, %396 : vector<8x8xf32>
    %cst_149 = arith.constant -1.000000e+30 : f32
    %398 = vector.broadcast %cst_149 : f32 to vector<8x8xf32>
    %399 = arith.select %15, %397, %398 : vector<8x8xi1>, vector<8x8xf32>
    %cst_150 = arith.constant dense<0xFF800000> : vector<8xf32>
    %400 = vector.multi_reduction <maximumf>, %399, %cst_150 [1] : vector<8x8xf32> to vector<8xf32>
    %401 = vector.shape_cast %400 : vector<8xf32> to vector<8x1xf32>
    %402 = vector.broadcast %401 : vector<8x1xf32> to vector<8x8xf32>
    %403 = arith.subf %399, %402 : vector<8x8xf32>
    %404 = math.exp %403 : vector<8x8xf32>
    %cst_151 = arith.constant dense<0.000000e+00> : vector<8xf32>
    %405 = vector.multi_reduction <add>, %404, %cst_151 [1] : vector<8x8xf32> to vector<8xf32>
    %406 = vector.shape_cast %405 : vector<8xf32> to vector<8x1xf32>
    %407 = vector.broadcast %406 : vector<8x1xf32> to vector<8x8xf32>
    %408 = arith.divf %404, %407 : vector<8x8xf32>
    %cst_152 = arith.constant dense<0.000000e+00> : vector<8x32xf32>
    %409 = tpu.matmul %408, %394, %cst_152 {dimension_numbers = #tpu.dot_dimension_numbers<[1], [0], [0], [1], [0, 0, 1, 1], [], []>} : vector<8x8xf32>, vector<8x32xf32>, vector<8x32xf32> -> vector<8x32xf32>
    %410 = tpu.concatenate %355, %373, %391, %409 in 1 : vector<8x32xf32>, vector<8x32xf32>, vector<8x32xf32>, vector<8x32xf32> -> vector<8x128xf32>
    %411 = tpu.concatenate %334, %410 in 0 : vector<8x128xf32>, vector<8x128xf32> -> vector<16x128xf32>
    %c1_153 = arith.constant 1 : index
    %c0_154 = arith.constant 0 : index
    %c0_155 = arith.constant 0 : index
    %412 = vector.load %arg10[%c1_153, %c0_154, %c0_155] : memref<2x128x128xf32, #tpu.memory_space<vmem>>, vector<1x128x128xf32>
    %413 = vector.shape_cast %412 : vector<1x128x128xf32> to vector<128x128xf32>
    %cst_156 = arith.constant dense<0.000000e+00> : vector<16x128xf32>
    %414 = tpu.matmul %411, %413, %cst_156 {dimension_numbers = #tpu.dot_dimension_numbers<[1], [0], [0], [1], [0, 0, 1, 1], [], []>} : vector<16x128xf32>, vector<128x128xf32>, vector<16x128xf32> -> vector<16x128xf32>
    %415 = arith.addf %230, %414 : vector<16x128xf32>
    %c1_157 = arith.constant 1 : index
    %c0_158 = arith.constant 0 : index
    %c0_159 = arith.constant 0 : index
    %416 = vector.load %arg11[%c1_157, %c0_158, %c0_159] : memref<2x1x128xf32, #tpu.memory_space<vmem>>, vector<1x1x128xf32>
    %417 = vector.shape_cast %416 : vector<1x1x128xf32> to vector<1x128xf32>
    %418 = arith.mulf %415, %415 : vector<16x128xf32>
    %cst_160 = arith.constant dense<0.000000e+00> : vector<16xf32>
    %419 = vector.multi_reduction <add>, %418, %cst_160 [1] : vector<16x128xf32> to vector<16xf32>
    %420 = vector.shape_cast %419 : vector<16xf32> to vector<16x1xf32>
    %cst_161 = arith.constant 1.280000e+02 : f32
    %421 = vector.broadcast %cst_161 : f32 to vector<16x1xf32>
    %422 = arith.divf %420, %421 : vector<16x1xf32>
    %cst_162 = arith.constant 9.99999997E-7 : f32
    %423 = vector.broadcast %cst_162 : f32 to vector<16x1xf32>
    %424 = arith.addf %422, %423 : vector<16x1xf32>
    %425 = math.rsqrt %424 : vector<16x1xf32>
    %426 = vector.broadcast %425 : vector<16x1xf32> to vector<16x128xf32>
    %427 = arith.mulf %415, %426 : vector<16x128xf32>
    %428 = vector.broadcast %417 : vector<1x128xf32> to vector<16x128xf32>
    %429 = arith.mulf %427, %428 : vector<16x128xf32>
    %c1_163 = arith.constant 1 : index
    %c0_164 = arith.constant 0 : index
    %c0_165 = arith.constant 0 : index
    %430 = vector.load %arg12[%c1_163, %c0_164, %c0_165] : memref<2x128x512xf32, #tpu.memory_space<vmem>>, vector<1x128x512xf32>
    %431 = vector.shape_cast %430 : vector<1x128x512xf32> to vector<128x512xf32>
    %cst_166 = arith.constant dense<0.000000e+00> : vector<16x512xf32>
    %432 = tpu.matmul %429, %431, %cst_166 {dimension_numbers = #tpu.dot_dimension_numbers<[1], [0], [0], [1], [0, 0, 1, 1], [], []>} : vector<16x128xf32>, vector<128x512xf32>, vector<16x512xf32> -> vector<16x512xf32>
    %433 = vector.extract_strided_slice %432 {offsets = [0, 0], sizes = [16, 256], strides = [1, 1]} : vector<16x512xf32> to vector<16x256xf32>
    %434 = vector.extract_strided_slice %432 {offsets = [0, 256], sizes = [16, 256], strides = [1, 1]} : vector<16x512xf32> to vector<16x256xf32>
    %435 = arith.negf %433 : vector<16x256xf32>
    %436 = math.exp %435 : vector<16x256xf32>
    %cst_167 = arith.constant 1.000000e+00 : f32
    %437 = vector.broadcast %cst_167 : f32 to vector<16x256xf32>
    %438 = arith.addf %437, %436 : vector<16x256xf32>
    %439 = arith.divf %437, %438 : vector<16x256xf32>
    %440 = arith.mulf %433, %439 : vector<16x256xf32>
    %441 = arith.mulf %440, %434 : vector<16x256xf32>
    %c1_168 = arith.constant 1 : index
    %c0_169 = arith.constant 0 : index
    %c0_170 = arith.constant 0 : index
    %442 = vector.load %arg13[%c1_168, %c0_169, %c0_170] : memref<2x256x128xf32, #tpu.memory_space<vmem>>, vector<1x256x128xf32>
    %443 = vector.shape_cast %442 : vector<1x256x128xf32> to vector<256x128xf32>
    %cst_171 = arith.constant dense<0.000000e+00> : vector<16x128xf32>
    %444 = tpu.matmul %441, %443, %cst_171 {dimension_numbers = #tpu.dot_dimension_numbers<[1], [0], [0], [1], [0, 0, 1, 1], [], []>} : vector<16x256xf32>, vector<256x128xf32>, vector<16x128xf32> -> vector<16x128xf32>
    %445 = arith.addf %415, %444 : vector<16x128xf32>
    %c0_172 = arith.constant 0 : index
    %c0_173 = arith.constant 0 : index
    %446 = vector.load %arg14[%c0_172, %c0_173] : memref<16x128xf32, #tpu.memory_space<vmem>>, vector<16x128xf32>
    tpu.vector_store %arg14[%c0_172, %c0_173], %445 {strides = array<i32>} : memref<16x128xf32, #tpu.memory_space<vmem>>, vector<16x128xf32>,
    return
  }
}

</mosaic_0001>

<llo_original>
// kernel: tile.19
$region0: #{tile.19}
  %s0 = inlined_call_operand.vmem [shape: f32[2,1,8,4,32], index: 0, kind: input, shape index: {}]
  %s1 = inlined_call_operand.vmem [shape: f32[16,128], index: 1, kind: output, shape index: {}]
  $region1: #{tile.19} parent=0
    #allocation0 [shape = 'u8[65536]{0}', space=vmem, size = 0x10000, scoped, tag = 'scoped mem for input reshape']
    %s3 = ssub.s32 16, 1
    %s4 = scalar_lea.vmem %s0, 60
    %v5 = vld [vmem:[%s4] sm:%s3]
    %s6 = scalar_lea.vmem [#allocation0], 120
    %7 = vst [vmem:[%s6] sm:%s3] %v5
    %s8 = scalar_lea.vmem %s0, 56
    %v9 = vld [vmem:[%s8] sm:%s3]
    %s10 = scalar_lea.vmem [#allocation0], 112
    %11 = vst [vmem:[%s10] sm:%s3] %v9
    %s12 = scalar_lea.vmem %s0, 52
    %v13 = vld [vmem:[%s12] sm:%s3]
    %s14 = scalar_lea.vmem [#allocation0], 104
    %15 = vst [vmem:[%s14] sm:%s3] %v13
    %s16 = scalar_lea.vmem %s0, 48
    %v17 = vld [vmem:[%s16] sm:%s3]
    %s18 = scalar_lea.vmem [#allocation0], 96
    %19 = vst [vmem:[%s18] sm:%s3] %v17
    %s20 = scalar_lea.vmem %s0, 44
    %v21 = vld [vmem:[%s20] sm:%s3]
    %s22 = scalar_lea.vmem [#allocation0], 88
    %23 = vst [vmem:[%s22] sm:%s3] %v21
    %s24 = scalar_lea.vmem %s0, 40
    %v25 = vld [vmem:[%s24] sm:%s3]
    %s26 = scalar_lea.vmem [#allocation0], 80
    %27 = vst [vmem:[%s26] sm:%s3] %v25
    %s28 = scalar_lea.vmem %s0, 36
    %v29 = vld [vmem:[%s28] sm:%s3]
    %s30 = scalar_lea.vmem [#allocation0], 72
    %31 = vst [vmem:[%s30] sm:%s3] %v29
    %s32 = scalar_lea.vmem %s0, 32
    %v33 = vld [vmem:[%s32] sm:%s3]
    %s34 = scalar_lea.vmem [#allocation0], 64
    %35 = vst [vmem:[%s34] sm:%s3] %v33
    %s36 = scalar_lea.vmem %s0, 28
    %v37 = vld [vmem:[%s36] sm:%s3]
    %s38 = scalar_lea.vmem [#allocation0], 56
    %39 = vst [vmem:[%s38] sm:%s3] %v37
    %s40 = scalar_lea.vmem %s0, 24
    %v41 = vld [vmem:[%s40] sm:%s3]
    %s42 = scalar_lea.vmem [#allocation0], 48
    %43 = vst [vmem:[%s42] sm:%s3] %v41
    %s44 = scalar_lea.vmem %s0, 20
    %v45 = vld [vmem:[%s44] sm:%s3]
    %s46 = scalar_lea.vmem [#allocation0], 40
    %47 = vst [vmem:[%s46] sm:%s3] %v45
    %s48 = scalar_lea.vmem %s0, 16
    %v49 = vld [vmem:[%s48] sm:%s3]
    %s50 = scalar_lea.vmem [#allocation0], 32
    %51 = vst [vmem:[%s50] sm:%s3] %v49
    %s52 = scalar_lea.vmem %s0, 12
    %v53 = vld [vmem:[%s52] sm:%s3]
    %s54 = scalar_lea.vmem [#allocation0], 24
    %55 = vst [vmem:[%s54] sm:%s3] %v53
    %s56 = scalar_lea.vmem %s0, 8
    %v57 = vld [vmem:[%s56] sm:%s3]
    %s58 = scalar_lea.vmem [#allocation0], 16
    %59 = vst [vmem:[%s58] sm:%s3] %v57
    %s60 = scalar_lea.vmem %s0, 4
    %v61 = vld [vmem:[%s60] sm:%s3]
    %s62 = scalar_lea.vmem [#allocation0], 8
    %63 = vst [vmem:[%s62] sm:%s3] %v61
    %v64 = vld [vmem:[%s0] sm:%s3]
    %65 = vst [vmem:[#allocation0] sm:%s3] %v64
    %v66 = vld [vmem:[#allocation0] ss:$8 sm:$0xf]
    %v67 = vld [vmem:[#allocation0] ss:$8 sm:$0xf0]
    %vm68 = vcmask 1047556
    %v69 = vsel %vm68, %v67, %v66
    %vm70 = vcmask 261120
    %71 = vst.msk [vmem:[%s1] sm:$0xff] %vm70, %v69
    %s72 = scalar_lea.vmem [#allocation0], 64
    %v73 = vld [vmem:[%s72] ss:$8 sm:$0xf]
    %s74 = scalar_lea.vmem [#allocation0], 64
    %v75 = vld [vmem:[%s74] ss:$8 sm:$0xf0]
    %vm76 = vcmask 1047556
    %v77 = vsel %vm76, %v75, %v73
    %vm78 = vcmask 261120
    %s79 = scalar_lea.vmem %s1, 8
    %80 = vst.msk [vmem:[%s79] sm:$0xff] %vm78, %v77
    %s81 = scalar_lea.vmem [#allocation0], 3
    %v82 = vld [vmem:[%s81] ss:$8 sm:$0xf]
    %s83 = scalar_lea.vmem [#allocation0], 3
    %v84 = vld [vmem:[%s83] ss:$8 sm:$0xf0]
    %vm85 = vcmask 1047556
    %v86 = vsel %vm85, %v84, %v82
    %87 = vrot.lane.b32.xlu0 %v86, 96
    %v88 = vpop.permute.xlu0 %87
    %vm89 = vcmask 1048320
    %90 = vst.msk [vmem:[%s1] sm:$0xff] %vm89, %v88
    %s91 = scalar_lea.vmem [#allocation0], 67
    %v92 = vld [vmem:[%s91] ss:$8 sm:$0xf]
    %s93 = scalar_lea.vmem [#allocation0], 67
    %v94 = vld [vmem:[%s93] ss:$8 sm:$0xf0]
    %vm95 = vcmask 1047556
    %v96 = vsel %vm95, %v94, %v92
    %97 = vrot.lane.b32.xlu0 %v96, 96
    %v98 = vpop.permute.xlu0 %97
    %vm99 = vcmask 1048320
    %s100 = scalar_lea.vmem %s1, 8
    %101 = vst.msk [vmem:[%s100] sm:$0xff] %vm99, %v98
    %s102 = scalar_lea.vmem [#allocation0], 2
    %v103 = vld [vmem:[%s102] ss:$8 sm:$0xf]
    %s104 = scalar_lea.vmem [#allocation0], 2
    %v105 = vld [vmem:[%s104] ss:$8 sm:$0xf0]
    %vm106 = vcmask 1047556
    %v107 = vsel %vm106, %v105, %v103
    %108 = vrot.lane.b32.xlu0 %v107, 64
    %v109 = vpop.permute.xlu0 %108
    %vm110 = vcmask 785920
    %111 = vst.msk [vmem:[%s1] sm:$0xff] %vm110, %v109
    %s112 = scalar_lea.vmem [#allocation0], 66
    %v113 = vld [vmem:[%s112] ss:$8 sm:$0xf]
    %s114 = scalar_lea.vmem [#allocation0], 66
    %v115 = vld [vmem:[%s114] ss:$8 sm:$0xf0]
    %vm116 = vcmask 1047556
    %v117 = vsel %vm116, %v115, %v113
    %118 = vrot.lane.b32.xlu0 %v117, 64
    %v119 = vpop.permute.xlu0 %118
    %vm120 = vcmask 785920
    %s121 = scalar_lea.vmem %s1, 8
    %122 = vst.msk [vmem:[%s121] sm:$0xff] %vm120, %v119
    %s123 = scalar_lea.vmem [#allocation0], 1
    %v124 = vld [vmem:[%s123] ss:$8 sm:$0xf]
    %s125 = scalar_lea.vmem [#allocation0], 1
    %v126 = vld [vmem:[%s125] ss:$8 sm:$0xf0]
    %vm127 = vcmask 1047556
    %v128 = vsel %vm127, %v126, %v124
    %129 = vrot.lane.b32.xlu0 %v128, 32
    %v130 = vpop.permute.xlu0 %129
    %vm131 = vcmask 523520
    %132 = vst.msk [vmem:[%s1] sm:$0xff] %vm131, %v130
    %s133 = scalar_lea.vmem [#allocation0], 65
    %v134 = vld [vmem:[%s133] ss:$8 sm:$0xf]
    %s135 = scalar_lea.vmem [#allocation0], 65
    %v136 = vld [vmem:[%s135] ss:$8 sm:$0xf0]
    %vm137 = vcmask 1047556
    %v138 = vsel %vm137, %v136, %v134
    %139 = vrot.lane.b32.xlu0 %v138, 32
    %v140 = vpop.permute.xlu0 %139
    %vm141 = vcmask 523520
    %s142 = scalar_lea.vmem %s1, 8
    %143 = vst.msk [vmem:[%s142] sm:$0xff] %vm141, %v140

// kernel: eagle_head_forward.1
$region0: #{eagle_head_forward.1}
  #allocation0 [shape = 'u32[]', space=smem, size = 0x4, offset = 0x4, fixed_abs, tag = 'smem constant byte address 0x4 - core index']
  #allocation1 [shape = 'u32[72,128]{1,0:T(1,128)}', space=vmem, size = 0x9000, scoped, tag = 'internal scratch']
  %s0 = inlined_call_operand.vmem [shape: f32[16,128], index: 0, kind: input, shape index: {}]
  %s1 = inlined_call_operand.vmem [shape: f32[16,128], index: 1, kind: input, shape index: {}]
  %s2 = inlined_call_operand.vmem [shape: f32[16,128], index: 2, kind: input, shape index: {}]
  %s3 = inlined_call_operand.vmem [shape: f32[16,128], index: 3, kind: input, shape index: {}]
  %s4 = inlined_call_operand.vmem [shape: f32[16,128], index: 4, kind: input, shape index: {}]
  %s5 = inlined_call_operand.vmem [shape: f32[128,128], index: 5, kind: input, shape index: {}]
  %s6 = inlined_call_operand.vmem [shape: f32[256,128], index: 6, kind: input, shape index: {}]
  %s7 = inlined_call_operand.vmem [shape: f32[1,128], index: 7, kind: input, shape index: {}]
  %s8 = inlined_call_operand.vmem [shape: f32[2,1,128], index: 8, kind: input, shape index: {}]
  %s9 = inlined_call_operand.vmem [shape: f32[2,128,384], index: 9, kind: input, shape index: {}]
  %s10 = inlined_call_operand.vmem [shape: f32[2,128,128], index: 10, kind: input, shape index: {}]
  %s11 = inlined_call_operand.vmem [shape: f32[2,1,128], index: 11, kind: input, shape index: {}]
  %s12 = inlined_call_operand.vmem [shape: f32[2,128,512], index: 12, kind: input, shape index: {}]
  %s13 = inlined_call_operand.vmem [shape: f32[2,256,128], index: 13, kind: input, shape index: {}]
  %s14 = inlined_call_operand.hbm [shape: f32[16,128], index: 14, kind: output, shape index: {}]
  %s15 = sld [smem:[#allocation0]]
  $region66: #{eagle_head_forward.1} parent=0
    _
  %s17 = ssub.s32 1, %s15
  %s18 = scalar_select 0, %s17, %s15
  $region1: #{eagle_head_forward.1} parent=0
    #allocation2 [shape = 'u8[8192]{0}', space=vmem, size = 0x2000, scoped, tag = 'output window, operand 0, single buffered']
    #allocation3 [shape = 's32[1]{0}', space=sflag, size = 0x4, scoped, tag = 'scoped memory for eagle_head_forward.1']
    %19 = vsyncpa [#allocation3], 0
    // Predicated region
    $region2: #{eagle_head_forward.1} parent=1 // pred_check
      _
    $region3: #{eagle_head_forward.1} parent=1 // pred_check_branch
      %21 = sbr.rel (0) target = $region5
    $region4: #{eagle_head_forward.1} parent=1 // pred_region
      _
    $region5: #{eagle_head_forward.1} parent=1 // pred_fallthru
      _
    // Predicated region
    $region6: #{eagle_head_forward.1} parent=1 // pred_check
      _
    $region7: #{eagle_head_forward.1} parent=1 // pred_check_branch
      %23 = sbr.rel (0) target = $region9
    $region8: #{eagle_head_forward.1} parent=1 // pred_region
      _
    $region9: #{eagle_head_forward.1} parent=1 // pred_fallthru
      _
    // Predicated region
    $region10: #{eagle_head_forward.1} parent=1 // pred_check
      _
    $region11: #{eagle_head_forward.1} parent=1 // pred_check_branch
      %25 = sbr.rel (0) target = $region13
    $region12: #{eagle_head_forward.1} parent=1 // pred_region
      _
    $region13: #{eagle_head_forward.1} parent=1 // pred_fallthru
      _
    // Predicated region
    $region14: #{eagle_head_forward.1} parent=1 // pred_check
      _
    $region15: #{eagle_head_forward.1} parent=1 // pred_check_branch
      %27 = sbr.rel (0) target = $region17
    $region16: #{eagle_head_forward.1} parent=1 // pred_region
      _
    $region17: #{eagle_head_forward.1} parent=1 // pred_fallthru
      _
    // Predicated region
    $region18: #{eagle_head_forward.1} parent=1 // pred_check
      _
    $region19: #{eagle_head_forward.1} parent=1 // pred_check_branch
      %29 = sbr.rel (0) target = $region21
    $region20: #{eagle_head_forward.1} parent=1 // pred_region
      _
    $region21: #{eagle_head_forward.1} parent=1 // pred_fallthru
      _
    // Predicated region
    $region22: #{eagle_head_forward.1} parent=1 // pred_check
      _
    $region23: #{eagle_head_forward.1} parent=1 // pred_check_branch
      %31 = sbr.rel (0) target = $region25
    $region24: #{eagle_head_forward.1} parent=1 // pred_region
      _
    $region25: #{eagle_head_forward.1} parent=1 // pred_fallthru
      _
    // Predicated region
    $region26: #{eagle_head_forward.1} parent=1 // pred_check
      _
    $region27: #{eagle_head_forward.1} parent=1 // pred_check_branch
      %33 = sbr.rel (0) target = $region29
    $region28: #{eagle_head_forward.1} parent=1 // pred_region
      _
    $region29: #{eagle_head_forward.1} parent=1 // pred_fallthru
      _
    // Predicated region
    $region30: #{eagle_head_forward.1} parent=1 // pred_check
      _
    $region31: #{eagle_head_forward.1} parent=1 // pred_check_branch
      %35 = sbr.rel (0) target = $region33
    $region32: #{eagle_head_forward.1} parent=1 // pred_region
      _
    $region33: #{eagle_head_forward.1} parent=1 // pred_fallthru
      _
    // Predicated region
    $region34: #{eagle_head_forward.1} parent=1 // pred_check
      _
    $region35: #{eagle_head_forward.1} parent=1 // pred_check_branch
      %37 = sbr.rel (0) target = $region37
    $region36: #{eagle_head_forward.1} parent=1 // pred_region
      _
    $region37: #{eagle_head_forward.1} parent=1 // pred_fallthru
      _
    // Predicated region
    $region38: #{eagle_head_forward.1} parent=1 // pred_check
      _
    $region39: #{eagle_head_forward.1} parent=1 // pred_check_branch
      %39 = sbr.rel (0) target = $region41
    $region40: #{eagle_head_forward.1} parent=1 // pred_region
      _
    $region41: #{eagle_head_forward.1} parent=1 // pred_fallthru
      _
    // Predicated region
    $region42: #{eagle_head_forward.1} parent=1 // pred_check
      _
    $region43: #{eagle_head_forward.1} parent=1 // pred_check_branch
      %41 = sbr.rel (0) target = $region45
    $region44: #{eagle_head_forward.1} parent=1 // pred_region
      _
    $region45: #{eagle_head_forward.1} parent=1 // pred_fallthru
      _
    // Predicated region
    $region46: #{eagle_head_forward.1} parent=1 // pred_check
      _
    $region47: #{eagle_head_forward.1} parent=1 // pred_check_branch
      %43 = sbr.rel (0) target = $region49
    $region48: #{eagle_head_forward.1} parent=1 // pred_region
      _
    $region49: #{eagle_head_forward.1} parent=1 // pred_fallthru
      _
    // Predicated region
    $region50: #{eagle_head_forward.1} parent=1 // pred_check
      _
    $region51: #{eagle_head_forward.1} parent=1 // pred_check_branch
      %45 = sbr.rel (0) target = $region53
    $region52: #{eagle_head_forward.1} parent=1 // pred_region
      _
    $region53: #{eagle_head_forward.1} parent=1 // pred_fallthru
      _
    // Predicated region
    $region54: #{eagle_head_forward.1} parent=1 // pred_check
      _
    $region55: #{eagle_head_forward.1} parent=1 // pred_check_branch
      %47 = sbr.rel (0) target = $region57
    $region56: #{eagle_head_forward.1} parent=1 // pred_region
      _
    $region57: #{eagle_head_forward.1} parent=1 // pred_fallthru
      _
    %v48 = vld [vmem:[%s1] sm:$0xff]
    %v49 = vld [vmem:[%s1 + $0x8] sm:$0xff]
    %v50 = vld [vmem:[%s2] sm:$0xff]
    %v51 = vld [vmem:[%s2 + $0x8] sm:$0xff]
    %v52 = vadd.f32 %v48, %v50
    %v53 = vadd.f32 %v49, %v51
    %v54 = vld [vmem:[%s0] sm:$0xff]
    %v55 = vld [vmem:[%s0 + $0x8] sm:$0xff]
    %v56 = vld [vmem:[%s6] sm:$0xff]
    %v57 = vld [vmem:[%s6 + $0x8] sm:$0xff]
    %v58 = vld [vmem:[%s6 + $0x10] sm:$0xff]
    %v59 = vld [vmem:[%s6 + $0x18] sm:$0xff]
    %v60 = vld [vmem:[%s6 + $0x20] sm:$0xff]
    %v61 = vld [vmem:[%s6 + $0x28] sm:$0xff]
    %v62 = vld [vmem:[%s6 + $0x30] sm:$0xff]
    %v63 = vld [vmem:[%s6 + $0x38] sm:$0xff]
    %v64 = vld [vmem:[%s6 + $0x40] sm:$0xff]
    %v65 = vld [vmem:[%s6 + $0x48] sm:$0xff]
    %v66 = vld [vmem:[%s6 + $0x50] sm:$0xff]
    %v67 = vld [vmem:[%s6 + $0x58] sm:$0xff]
    %v68 = vld [vmem:[%s6 + $0x60] sm:$0xff]
    %v69 = vld [vmem:[%s6 + $0x68] sm:$0xff]
    %v70 = vld [vmem:[%s6 + $0x70] sm:$0xff]
    %v71 = vld [vmem:[%s6 + $0x78] sm:$0xff]
    %v72 = vld [vmem:[%s6 + $0x80] sm:$0xff]
    %v73 = vld [vmem:[%s6 + $0x88] sm:$0xff]
    %v74 = vld [vmem:[%s6 + $0x90] sm:$0xff]
    %v75 = vld [vmem:[%s6 + $0x98] sm:$0xff]
    %v76 = vld [vmem:[%s6 + $0xa0] sm:$0xff]
    %v77 = vld [vmem:[%s6 + $0xa8] sm:$0xff]
    %v78 = vld [vmem:[%s6 + $0xb0] sm:$0xff]
    %v79 = vld [vmem:[%s6 + $0xb8] sm:$0xff]
    %v80 = vld [vmem:[%s6 + $0xc0] sm:$0xff]
    %v81 = vld [vmem:[%s6 + $0xc8] sm:$0xff]
    %v82 = vld [vmem:[%s6 + $0xd0] sm:$0xff]
    %v83 = vld [vmem:[%s6 + $0xd8] sm:$0xff]
    %v84 = vld [vmem:[%s6 + $0xe0] sm:$0xff]
    %v85 = vld [vmem:[%s6 + $0xe8] sm:$0xff]
    %v86 = vld [vmem:[%s6 + $0xf0] sm:$0xff]
    %v87 = vld [vmem:[%s6 + $0xf8] sm:$0xff]
    %v88 = vld [vmem:[%s7] sm:$0x1]
    %v90 = vperm.slane %v88, 0
    %92 = vmatpush.msra.mxu0 %v71
    %93 = vmatpush.msra.mxu0 %v70
    %94 = vmatpush.msra.mxu0 %v69
    %95 = vmatpush.msra.mxu0 %v68
    %96 = vmatpush.msra.mxu0 %v67
    %97 = vmatpush.msra.mxu0 %v66
    %98 = vmatpush.msra.mxu0 %v65
    %99 = vmatpush.msra.mxu0 %v64
    %100 = vmatpush.msra.mxu0 %v63
    %101 = vmatpush.msra.mxu0 %v62
    %102 = vmatpush.msra.mxu0 %v61
    %103 = vmatpush.msra.mxu0 %v60
    %104 = vmatpush.msra.mxu0 %v59
    %105 = vmatpush.msra.mxu0 %v58
    %106 = vmatpush.msra.mxu0 %v57
    %107 = vmatpush.msra.mxu0 %v56
    %108 = vmatmul.f32.gmra.mxu0 %v54
    %v109 = vpop.f32.mrf.mxu0
    %v110 = vadd.f32 %v90, %v109
    %111 = vmatmul.f32.gmra.mxu0 %v55
    %v112 = vpop.f32.mrf.mxu0
    %v113 = vadd.f32 %v90, %v112
    %114 = vdwg.mxu0
    %115 = vmatpush.msra.mxu0 %v87
    %116 = vmatpush.msra.mxu0 %v86
    %117 = vmatpush.msra.mxu0 %v85
    %118 = vmatpush.msra.mxu0 %v84
    %119 = vmatpush.msra.mxu0 %v83
    %120 = vmatpush.msra.mxu0 %v82
    %121 = vmatpush.msra.mxu0 %v81
    %122 = vmatpush.msra.mxu0 %v80
    %123 = vmatpush.msra.mxu0 %v79
    %124 = vmatpush.msra.mxu0 %v78
    %125 = vmatpush.msra.mxu0 %v77
    %126 = vmatpush.msra.mxu0 %v76
    %127 = vmatpush.msra.mxu0 %v75
    %128 = vmatpush.msra.mxu0 %v74
    %129 = vmatpush.msra.mxu0 %v73
    %130 = vmatpush.msra.mxu0 %v72
    %131 = vmatmul.f32.gmra.mxu0 %v52
    %v132 = vpop.f32.mrf.mxu0
    %v133 = vadd.f32 %v110, %v132
    %134 = vmatmul.f32.gmra.mxu0 %v53
    %v135 = vpop.f32.mrf.mxu0
    %v136 = vadd.f32 %v113, %v135
    %137 = vdwg.mxu0
    %v138 = vld [vmem:[%s3] sm:$0xff]
    %v139 = vld [vmem:[%s3 + $0x8] sm:$0xff]
    %v140 = vld [vmem:[%s4] sm:$0xff]
    %v141 = vld [vmem:[%s4 + $0x8] sm:$0xff]
    %v142 = vld [vmem:[%s5] sm:$0xff]
    %v143 = vld [vmem:[%s5 + $0x8] sm:$0xff]
    %v144 = vld [vmem:[%s5 + $0x10] sm:$0xff]
    %v145 = vld [vmem:[%s5 + $0x18] sm:$0xff]
    %v146 = vld [vmem:[%s5 + $0x20] sm:$0xff]
    %v147 = vld [vmem:[%s5 + $0x28] sm:$0xff]
    %v148 = vld [vmem:[%s5 + $0x30] sm:$0xff]
    %v149 = vld [vmem:[%s5 + $0x38] sm:$0xff]
    %v150 = vld [vmem:[%s5 + $0x40] sm:$0xff]
    %v151 = vld [vmem:[%s5 + $0x48] sm:$0xff]
    %v152 = vld [vmem:[%s5 + $0x50] sm:$0xff]
    %v153 = vld [vmem:[%s5 + $0x58] sm:$0xff]
    %v154 = vld [vmem:[%s5 + $0x60] sm:$0xff]
    %v155 = vld [vmem:[%s5 + $0x68] sm:$0xff]
    %v156 = vld [vmem:[%s5 + $0x70] sm:$0xff]
    %v157 = vld [vmem:[%s5 + $0x78] sm:$0xff]
    %v158 = vlaneseq
    %v159 = vshrl.u32 %v158, 7
    %v160 = vlaneseq
    %v161 = vand.u32 %v160, 127
    %vm162 = vcmp.ge.s32.totalorder %v159, %v161
    %v163 = vld [vmem:[%s8] sm:$0x1]
    %v164 = vmul.f32 %v133, %v133
    %v165 = vmul.f32 %v136, %v136
    %166 = vadd.xlane.f32.xlu0 %v164
    %v167 = vpop.xlane.xlu0 %166
    %168 = vadd.xlane.f32.xlu0 %v165
    %v169 = vpop.xlane.xlu0 %168
    %v170 = vrcp.pop 128.0
    %v171 = vmul.f32 128.0, %v170
    %v172 = vsub.f32 1.0, %v171
    %v173 = vmul.f32 %v170, %v172
    %v174 = vadd.f32 %v170, %v173
    %vm175 = vweird.f32 %v170
    %v176 = vsel %vm175, %v170, %v174
    %v177 = vmul.f32 %v167, %v176
    %v178 = vmul.f32 %v169, %v176
    %v179 = vadd.f32 %v177, 1e-06
    %v180 = vadd.f32 %v178, 1e-06
    %v181 = vrsqrt.pop %v179
    %v182 = vmul.f32 %v181, %v179
    %v183 = vmul.f32 %v182, %v181
    %v184 = vmul.f32 0.5, %v183
    %v185 = vsub.f32 1.5, %v184
    %v186 = vmul.f32 %v181, %v185
    %vm187 = vweird.f32 %v179
    %vm188 = vweird.f32 %v181
    %vm189 = vmor %vm187, %vm188
    %v190 = vsel %vm189, %v181, %v186
    %v191 = vrsqrt.pop %v180
    %v192 = vmul.f32 %v191, %v180
    %v193 = vmul.f32 %v192, %v191
    %v194 = vmul.f32 0.5, %v193
    %v195 = vsub.f32 1.5, %v194
    %v196 = vmul.f32 %v191, %v195
    %vm197 = vweird.f32 %v180
    %vm198 = vweird.f32 %v191
    %vm199 = vmor %vm197, %vm198
    %v200 = vsel %vm199, %v191, %v196
    %v201 = vmul.f32 %v133, %v190
    %v202 = vmul.f32 %v136, %v200
    %v204 = vperm.slane %v163, 0
    %v206 = vmul.f32 %v201, %v204
    %v207 = vmul.f32 %v202, %v204
    %v208 = vld [vmem:[%s9] sm:$0xff]
    %v209 = vld [vmem:[%s9 + $0x8] sm:$0xff]
    %v210 = vld [vmem:[%s9 + $0x10] sm:$0xff]
    %v211 = vld [vmem:[%s9 + $0x18] sm:$0xff]
    %v212 = vld [vmem:[%s9 + $0x20] sm:$0xff]
    %v213 = vld [vmem:[%s9 + $0x28] sm:$0xff]
    %v214 = vld [vmem:[%s9 + $0x30] sm:$0xff]
    %v215 = vld [vmem:[%s9 + $0x38] sm:$0xff]
    %v216 = vld [vmem:[%s9 + $0x40] sm:$0xff]
    %v217 = vld [vmem:[%s9 + $0x48] sm:$0xff]
    %v218 = vld [vmem:[%s9 + $0x50] sm:$0xff]
    %v219 = vld [vmem:[%s9 + $0x58] sm:$0xff]
    %v220 = vld [vmem:[%s9 + $0x60] sm:$0xff]
    %v221 = vld [vmem:[%s9 + $0x68] sm:$0xff]
    %v222 = vld [vmem:[%s9 + $0x70] sm:$0xff]
    %v223 = vld [vmem:[%s9 + $0x78] sm:$0xff]
    %v224 = vld [vmem:[%s9 + $0x80] sm:$0xff]
    %v225 = vld [vmem:[%s9 + $0x88] sm:$0xff]
    %v226 = vld [vmem:[%s9 + $0x90] sm:$0xff]
    %v227 = vld [vmem:[%s9 + $0x98] sm:$0xff]
    %v228 = vld [vmem:[%s9 + $0xa0] sm:$0xff]
    %v229 = vld [vmem:[%s9 + $0xa8] sm:$0xff]
    %v230 = vld [vmem:[%s9 + $0xb0] sm:$0xff]
    %v231 = vld [vmem:[%s9 + $0xb8] sm:$0xff]
    %v232 = vld [vmem:[%s9 + $0xc0] sm:$0xff]
    %v233 = vld [vmem:[%s9 + $0xc8] sm:$0xff]
    %v234 = vld [vmem:[%s9 + $0xd0] sm:$0xff]
    %v235 = vld [vmem:[%s9 + $0xd8] sm:$0xff]
    %v236 = vld [vmem:[%s9 + $0xe0] sm:$0xff]
    %v237 = vld [vmem:[%s9 + $0xe8] sm:$0xff]
    %v238 = vld [vmem:[%s9 + $0xf0] sm:$0xff]
    %v239 = vld [vmem:[%s9 + $0xf8] sm:$0xff]
    %v240 = vld [vmem:[%s9 + $0x100] sm:$0xff]
    %v241 = vld [vmem:[%s9 + $0x108] sm:$0xff]
    %v242 = vld [vmem:[%s9 + $0x110] sm:$0xff]
    %v243 = vld [vmem:[%s9 + $0x118] sm:$0xff]
    %v244 = vld [vmem:[%s9 + $0x120] sm:$0xff]
    %v245 = vld [vmem:[%s9 + $0x128] sm:$0xff]
    %v246 = vld [vmem:[%s9 + $0x130] sm:$0xff]
    %v247 = vld [vmem:[%s9 + $0x138] sm:$0xff]
    %v248 = vld [vmem:[%s9 + $0x140] sm:$0xff]
    %v249 = vld [vmem:[%s9 + $0x148] sm:$0xff]
    %v250 = vld [vmem:[%s9 + $0x150] sm:$0xff]
    %v251 = vld [vmem:[%s9 + $0x158] sm:$0xff]
    %v252 = vld [vmem:[%s9 + $0x160] sm:$0xff]
    %v253 = vld [vmem:[%s9 + $0x168] sm:$0xff]
    %v254 = vld [vmem:[%s9 + $0x170] sm:$0xff]
    %v255 = vld [vmem:[%s9 + $0x178] sm:$0xff]
    %256 = vmatpush.msra.mxu0 %v253
    %257 = vmatpush.msra.mxu0 %v250
    %258 = vmatpush.msra.mxu0 %v247
    %259 = vmatpush.msra.mxu0 %v244
    %260 = vmatpush.msra.mxu0 %v241
    %261 = vmatpush.msra.mxu0 %v238
    %262 = vmatpush.msra.mxu0 %v235
    %263 = vmatpush.msra.mxu0 %v232
    %264 = vmatpush.msra.mxu0 %v229
    %265 = vmatpush.msra.mxu0 %v226
    %266 = vmatpush.msra.mxu0 %v223
    %267 = vmatpush.msra.mxu0 %v220
    %268 = vmatpush.msra.mxu0 %v217
    %269 = vmatpush.msra.mxu0 %v214
    %270 = vmatpush.msra.mxu0 %v211
    %271 = vmatpush.msra.mxu0 %v208
    %272 = vmatmul.f32.gmra.mxu0 %v206
    %v273 = vpop.f32.mrf.mxu0
    %v274 = vadd.f32 0.0, %v273
    %275 = vmatmul.f32.gmra.mxu0 %v207
    %v276 = vpop.f32.mrf.mxu0
    %v277 = vadd.f32 0.0, %v276
    %278 = vdwg.mxu0
    %279 = vmatpush.msra.mxu0 %v254
    %280 = vmatpush.msra.mxu0 %v251
    %281 = vmatpush.msra.mxu0 %v248
    %282 = vmatpush.msra.mxu0 %v245
    %283 = vmatpush.msra.mxu0 %v242
    %284 = vmatpush.msra.mxu0 %v239
    %285 = vmatpush.msra.mxu0 %v236
    %286 = vmatpush.msra.mxu0 %v233
    %287 = vmatpush.msra.mxu0 %v230
    %288 = vmatpush.msra.mxu0 %v227
    %289 = vmatpush.msra.mxu0 %v224
    %290 = vmatpush.msra.mxu0 %v221
    %291 = vmatpush.msra.mxu0 %v218
    %292 = vmatpush.msra.mxu0 %v215
    %293 = vmatpush.msra.mxu0 %v212
    %294 = vmatpush.msra.mxu0 %v209
    %295 = vmatmul.f32.gmra.mxu0 %v206
    %v296 = vpop.f32.mrf.mxu0
    %v297 = vadd.f32 0.0, %v296
    %298 = vmatmul.f32.gmra.mxu0 %v207
    %v299 = vpop.f32.mrf.mxu0
    %v300 = vadd.f32 0.0, %v299
    %301 = vdwg.mxu0
    %302 = vmatpush.msra.mxu0 %v255
    %303 = vmatpush.msra.mxu0 %v252
    %304 = vmatpush.msra.mxu0 %v249
    %305 = vmatpush.msra.mxu0 %v246
    %306 = vmatpush.msra.mxu0 %v243
    %307 = vmatpush.msra.mxu0 %v240
    %308 = vmatpush.msra.mxu0 %v237
    %309 = vmatpush.msra.mxu0 %v234
    %310 = vmatpush.msra.mxu0 %v231
    %311 = vmatpush.msra.mxu0 %v228
    %312 = vmatpush.msra.mxu0 %v225
    %313 = vmatpush.msra.mxu0 %v222
    %314 = vmatpush.msra.mxu0 %v219
    %315 = vmatpush.msra.mxu0 %v216
    %316 = vmatpush.msra.mxu0 %v213
    %317 = vmatpush.msra.mxu0 %v210
    %318 = vmatmul.f32.gmra.mxu0 %v206
    %v319 = vpop.f32.mrf.mxu0
    %v320 = vadd.f32 0.0, %v319
    %321 = vmatmul.f32.gmra.mxu0 %v207
    %v322 = vpop.f32.mrf.mxu0
    %v323 = vadd.f32 0.0, %v322
    %324 = vdwg.mxu0
    %v325 = vmul.f32 %v274, %v138
    %v326 = vmul.f32 %v277, %v139
    %327 = vmatpush.msra.mxu0 %v157
    %328 = vmatpush.msra.mxu0 %v156
    %329 = vmatpush.msra.mxu0 %v155
    %330 = vmatpush.msra.mxu0 %v154
    %331 = vmatpush.msra.mxu0 %v153
    %332 = vmatpush.msra.mxu0 %v152
    %333 = vmatpush.msra.mxu0 %v151
    %334 = vmatpush.msra.mxu0 %v150
    %335 = vmatpush.msra.mxu0 %v149
    %336 = vmatpush.msra.mxu0 %v148
    %337 = vmatpush.msra.mxu0 %v147
    %338 = vmatpush.msra.mxu0 %v146
    %339 = vmatpush.msra.mxu0 %v145
    %340 = vmatpush.msra.mxu0 %v144
    %341 = vmatpush.msra.mxu0 %v143
    %342 = vmatpush.msra.mxu0 %v142
    %343 = vmatmul.f32.gmra.mxu0 %v274
    %v344 = vpop.f32.mrf.mxu0
    %v345 = vadd.f32 0.0, %v344
    %346 = vmatmul.f32.gmra.mxu0 %v277
    %v347 = vpop.f32.mrf.mxu0
    %v348 = vadd.f32 0.0, %v347
    %349 = vdwg.mxu0
    %v350 = vmul.f32 %v345, %v140
    %v351 = vmul.f32 %v348, %v141
    %v352 = vadd.f32 %v325, %v350
    %v353 = vadd.f32 %v326, %v351
    %v354 = vmul.f32 %v297, %v138
    %v355 = vmul.f32 %v300, %v139
    %356 = vmatpush.msra.mxu0 %v157
    %357 = vmatpush.msra.mxu0 %v156
    %358 = vmatpush.msra.mxu0 %v155
    %359 = vmatpush.msra.mxu0 %v154
    %360 = vmatpush.msra.mxu0 %v153
    %361 = vmatpush.msra.mxu0 %v152
    %362 = vmatpush.msra.mxu0 %v151
    %363 = vmatpush.msra.mxu0 %v150
    %364 = vmatpush.msra.mxu0 %v149
    %365 = vmatpush.msra.mxu0 %v148
    %366 = vmatpush.msra.mxu0 %v147
    %367 = vmatpush.msra.mxu0 %v146
    %368 = vmatpush.msra.mxu0 %v145
    %369 = vmatpush.msra.mxu0 %v144
    %370 = vmatpush.msra.mxu0 %v143
    %371 = vmatpush.msra.mxu0 %v142
    %372 = vmatmul.f32.gmra.mxu0 %v297
    %v373 = vpop.f32.mrf.mxu0
    %v374 = vadd.f32 0.0, %v373
    %375 = vmatmul.f32.gmra.mxu0 %v300
    %v376 = vpop.f32.mrf.mxu0
    %v377 = vadd.f32 0.0, %v376
    %378 = vdwg.mxu0
    %v379 = vmul.f32 %v374, %v140
    %v380 = vmul.f32 %v377, %v141
    %v381 = vadd.f32 %v354, %v379
    %v382 = vadd.f32 %v355, %v380
    %vm383 = vcmask 261120
    %v385 = vsel %vm383, %v352, 0
    %v388 = vsel %vm383, %v381, 0
    %390 = vmatpush.xpose.msra.mxu0 0.0
    %391 = vmatpush.xpose.msra.mxu0 0.0
    %392 = vmatpush.xpose.msra.mxu0 0.0
    %393 = vmatpush.xpose.msra.mxu0 0.0
    %394 = vmatpush.xpose.msra.mxu0 0.0
    %395 = vmatpush.xpose.msra.mxu0 0.0
    %396 = vmatpush.xpose.msra.mxu0 0.0
    %397 = vmatpush.xpose.msra.mxu0 0.0
    %398 = vmatpush.xpose.msra.mxu0 0.0
    %399 = vmatpush.xpose.msra.mxu0 0.0
    %400 = vmatpush.xpose.msra.mxu0 0.0
    %401 = vmatpush.xpose.msra.mxu0 0.0
    %402 = vmatpush.xpose.msra.mxu0 0.0
    %403 = vmatpush.xpose.msra.mxu0 0.0
    %404 = vmatpush.xpose.msra.mxu0 0.0
    %405 = vmatpush.xpose.msra.mxu0 %v388
    %406 = vmatmul.f32.gmra.mxu0 %v385
    %v407 = vpop.f32.mrf.mxu0
    %v408 = vadd.f32 0.0, %v407
    %409 = vdwg.mxu0
    %v410 = vmul.f32 %v408, 0.17677669
    %v411 = vsel %vm162, %v410, -1e+30
    %vm412 = vcmask 64512
    %v413 = vsel %vm412, %v411, -inf
    %414 = vmax.xlane.f32.xlu0 %v413
    %v415 = vpop.xlane.xlu0 %414
    %v416 = vsub.f32 %v411, %v415
    %v417 = vmul.f32 %v416, 1.442695
    %v418 = vpow.pop %v417
    %v419 = vsel %vm412, %v418, 0.0
    %420 = vadd.xlane.f32.xlu0 %v419
    %v421 = vpop.xlane.xlu0 %420
    %v422 = vrcp.pop %v421
    %v423 = vmul.f32 %v421, %v422
    %v424 = vsub.f32 1.0, %v423
    %v425 = vmul.f32 %v422, %v424
    %v426 = vadd.f32 %v422, %v425
    %vm427 = vweird.f32 %v421
    %vm428 = vweird.f32 %v422
    %vm429 = vmor %vm427, %vm428
    %v430 = vsel %vm429, %v422, %v426
    %v431 = vand.u32 2147483647, %v421
    %vm432 = vcmp.eq.f32.partialorder %v431, 8.507059e+37
    %v433 = vand.u32 %v421, 2147483648
    %v434 = vor.u32 1.1754944e-38, %v433
    %v435 = vsel %vm432, %v434, %v430
    %v436 = vmul.f32 %v418, %v435
    %v438 = vsel %vm412, %v436, 0
    %440 = vmatpush.msra.mxu0 0.0
    %441 = vmatpush.msra.mxu0 0.0
    %442 = vmatpush.msra.mxu0 0.0
    %443 = vmatpush.msra.mxu0 0.0
    %444 = vmatpush.msra.mxu0 0.0
    %445 = vmatpush.msra.mxu0 0.0
    %446 = vmatpush.msra.mxu0 0.0
    %447 = vmatpush.msra.mxu0 0.0
    %448 = vmatpush.msra.mxu0 0.0
    %449 = vmatpush.msra.mxu0 0.0
    %450 = vmatpush.msra.mxu0 0.0
    %451 = vmatpush.msra.mxu0 0.0
    %452 = vmatpush.msra.mxu0 0.0
    %453 = vmatpush.msra.mxu0 0.0
    %454 = vmatpush.msra.mxu0 0.0
    %455 = vmatpush.msra.mxu0 %v320
    %456 = vmatmul.f32.gmra.mxu0 %v438
    %v457 = vpop.f32.mrf.mxu0
    %v458 = vadd.f32 0.0, %v457
    %459 = vdwg.mxu0
    %460 = vrot.lane.b32.xlu0 %v352, 96
    %v461 = vpop.permute.xlu0 %460
    %462 = vrot.lane.b32.xlu0 %v381, 96
    %v463 = vpop.permute.xlu0 %462
    %v464 = vsel %vm383, %v461, 0
    %v466 = vsel %vm383, %v463, 0
    %468 = vmatpush.xpose.msra.mxu0 0.0
    %469 = vmatpush.xpose.msra.mxu0 0.0
    %470 = vmatpush.xpose.msra.mxu0 0.0
    %471 = vmatpush.xpose.msra.mxu0 0.0
    %472 = vmatpush.xpose.msra.mxu0 0.0
    %473 = vmatpush.xpose.msra.mxu0 0.0
    %474 = vmatpush.xpose.msra.mxu0 0.0
    %475 = vmatpush.xpose.msra.mxu0 0.0
    %476 = vmatpush.xpose.msra.mxu0 0.0
    %477 = vmatpush.xpose.msra.mxu0 0.0
    %478 = vmatpush.xpose.msra.mxu0 0.0
    %479 = vmatpush.xpose.msra.mxu0 0.0
    %480 = vmatpush.xpose.msra.mxu0 0.0
    %481 = vmatpush.xpose.msra.mxu0 0.0
    %482 = vmatpush.xpose.msra.mxu0 0.0
    %483 = vmatpush.xpose.msra.mxu0 %v466
    %484 = vmatmul.f32.gmra.mxu0 %v464
    %v485 = vpop.f32.mrf.mxu0
    %v486 = vadd.f32 0.0, %v485
    %487 = vdwg.mxu0
    %v488 = vmul.f32 %v486, 0.17677669
    %v489 = vsel %vm162, %v488, -1e+30
    %v490 = vsel %vm412, %v489, -inf
    %491 = vmax.xlane.f32.xlu0 %v490
    %v492 = vpop.xlane.xlu0 %491
    %v493 = vsub.f32 %v489, %v492
    %v494 = vmul.f32 %v493, 1.442695
    %v495 = vpow.pop %v494
    %v496 = vsel %vm412, %v495, 0.0
    %497 = vadd.xlane.f32.xlu0 %v496
    %v498 = vpop.xlane.xlu0 %497
    %v499 = vrcp.pop %v498
    %v500 = vmul.f32 %v498, %v499
    %v501 = vsub.f32 1.0, %v500
    %v502 = vmul.f32 %v499, %v501
    %v503 = vadd.f32 %v499, %v502
    %vm504 = vweird.f32 %v498
    %vm505 = vweird.f32 %v499
    %vm506 = vmor %vm504, %vm505
    %v507 = vsel %vm506, %v499, %v503
    %v508 = vand.u32 2147483647, %v498
    %vm509 = vcmp.eq.f32.partialorder %v508, 8.507059e+37
    %v510 = vand.u32 %v498, 2147483648
    %v511 = vor.u32 1.1754944e-38, %v510
    %v512 = vsel %vm509, %v511, %v507
    %v513 = vmul.f32 %v495, %v512
    %515 = vrot.lane.b32.xlu0 %v320, 96
    %v516 = vpop.permute.xlu0 %515
    %v519 = vsel %vm412, %v513, 0
    %521 = vmatpush.msra.mxu0 0.0
    %522 = vmatpush.msra.mxu0 0.0
    %523 = vmatpush.msra.mxu0 0.0
    %524 = vmatpush.msra.mxu0 0.0
    %525 = vmatpush.msra.mxu0 0.0
    %526 = vmatpush.msra.mxu0 0.0
    %527 = vmatpush.msra.mxu0 0.0
    %528 = vmatpush.msra.mxu0 0.0
    %529 = vmatpush.msra.mxu0 0.0
    %530 = vmatpush.msra.mxu0 0.0
    %531 = vmatpush.msra.mxu0 0.0
    %532 = vmatpush.msra.mxu0 0.0
    %533 = vmatpush.msra.mxu0 0.0
    %534 = vmatpush.msra.mxu0 0.0
    %535 = vmatpush.msra.mxu0 0.0
    %536 = vmatpush.msra.mxu0 %v516
    %537 = vmatmul.f32.gmra.mxu0 %v519
    %v538 = vpop.f32.mrf.mxu0
    %v539 = vadd.f32 0.0, %v538
    %540 = vdwg.mxu0
    %541 = vrot.lane.b32.xlu0 %v352, 64
    %v542 = vpop.permute.xlu0 %541
    %543 = vrot.lane.b32.xlu0 %v381, 64
    %v544 = vpop.permute.xlu0 %543
    %v545 = vsel %vm383, %v542, 0
    %v547 = vsel %vm383, %v544, 0
    %549 = vmatpush.xpose.msra.mxu0 0.0
    %550 = vmatpush.xpose.msra.mxu0 0.0
    %551 = vmatpush.xpose.msra.mxu0 0.0
    %552 = vmatpush.xpose.msra.mxu0 0.0
    %553 = vmatpush.xpose.msra.mxu0 0.0
    %554 = vmatpush.xpose.msra.mxu0 0.0
    %555 = vmatpush.xpose.msra.mxu0 0.0
    %556 = vmatpush.xpose.msra.mxu0 0.0
    %557 = vmatpush.xpose.msra.mxu0 0.0
    %558 = vmatpush.xpose.msra.mxu0 0.0
    %559 = vmatpush.xpose.msra.mxu0 0.0
    %560 = vmatpush.xpose.msra.mxu0 0.0
    %561 = vmatpush.xpose.msra.mxu0 0.0
    %562 = vmatpush.xpose.msra.mxu0 0.0
    %563 = vmatpush.xpose.msra.mxu0 0.0
    %564 = vmatpush.xpose.msra.mxu0 %v547
    %565 = vmatmul.f32.gmra.mxu0 %v545
    %v566 = vpop.f32.mrf.mxu0
    %v567 = vadd.f32 0.0, %v566
    %568 = vdwg.mxu0
    %v569 = vmul.f32 %v567, 0.17677669
    %v570 = vsel %vm162, %v569, -1e+30
    %v571 = vsel %vm412, %v570, -inf
    %572 = vmax.xlane.f32.xlu0 %v571
    %v573 = vpop.xlane.xlu0 %572
    %v574 = vsub.f32 %v570, %v573
    %v575 = vmul.f32 %v574, 1.442695
    %v576 = vpow.pop %v575
    %v577 = vsel %vm412, %v576, 0.0
    %578 = vadd.xlane.f32.xlu0 %v577
    %v579 = vpop.xlane.xlu0 %578
    %v580 = vrcp.pop %v579
    %v581 = vmul.f32 %v579, %v580
    %v582 = vsub.f32 1.0, %v581
    %v583 = vmul.f32 %v580, %v582
    %v584 = vadd.f32 %v580, %v583
    %vm585 = vweird.f32 %v579
    %vm586 = vweird.f32 %v580
    %vm587 = vmor %vm585, %vm586
    %v588 = vsel %vm587, %v580, %v584
    %v589 = vand.u32 2147483647, %v579
    %vm590 = vcmp.eq.f32.partialorder %v589, 8.507059e+37
    %v591 = vand.u32 %v579, 2147483648
    %v592 = vor.u32 1.1754944e-38, %v591
    %v593 = vsel %vm590, %v592, %v588
    %v594 = vmul.f32 %v576, %v593
    %595 = vrot.lane.b32.xlu0 %v320, 64
    %v596 = vpop.permute.xlu0 %595
    %v599 = vsel %vm412, %v594, 0
    %601 = vmatpush.msra.mxu0 0.0
    %602 = vmatpush.msra.mxu0 0.0
    %603 = vmatpush.msra.mxu0 0.0
    %604 = vmatpush.msra.mxu0 0.0
    %605 = vmatpush.msra.mxu0 0.0
    %606 = vmatpush.msra.mxu0 0.0
    %607 = vmatpush.msra.mxu0 0.0
    %608 = vmatpush.msra.mxu0 0.0
    %609 = vmatpush.msra.mxu0 0.0
    %610 = vmatpush.msra.mxu0 0.0
    %611 = vmatpush.msra.mxu0 0.0
    %612 = vmatpush.msra.mxu0 0.0
    %613 = vmatpush.msra.mxu0 0.0
    %614 = vmatpush.msra.mxu0 0.0
    %615 = vmatpush.msra.mxu0 0.0
    %616 = vmatpush.msra.mxu0 %v596
    %617 = vmatmul.f32.gmra.mxu0 %v599
    %v618 = vpop.f32.mrf.mxu0
    %v619 = vadd.f32 0.0, %v618
    %620 = vdwg.mxu0
    %621 = vrot.lane.b32.xlu0 %v352, 32
    %v622 = vpop.permute.xlu0 %621
    %623 = vrot.lane.b32.xlu0 %v381, 32
    %v624 = vpop.permute.xlu0 %623
    %v625 = vsel %vm383, %v622, 0
    %v627 = vsel %vm383, %v624, 0
    %629 = vmatpush.xpose.msra.mxu0 0.0
    %630 = vmatpush.xpose.msra.mxu0 0.0
    %631 = vmatpush.xpose.msra.mxu0 0.0
    %632 = vmatpush.xpose.msra.mxu0 0.0
    %633 = vmatpush.xpose.msra.mxu0 0.0
    %634 = vmatpush.xpose.msra.mxu0 0.0
    %635 = vmatpush.xpose.msra.mxu0 0.0
    %636 = vmatpush.xpose.msra.mxu0 0.0
    %637 = vmatpush.xpose.msra.mxu0 0.0
    %638 = vmatpush.xpose.msra.mxu0 0.0
    %639 = vmatpush.xpose.msra.mxu0 0.0
    %640 = vmatpush.xpose.msra.mxu0 0.0
    %641 = vmatpush.xpose.msra.mxu0 0.0
    %642 = vmatpush.xpose.msra.mxu0 0.0
    %643 = vmatpush.xpose.msra.mxu0 0.0
    %644 = vmatpush.xpose.msra.mxu0 %v627
    %645 = vmatmul.f32.gmra.mxu0 %v625
    %v646 = vpop.f32.mrf.mxu0
    %v647 = vadd.f32 0.0, %v646
    %648 = vdwg.mxu0
    %v649 = vmul.f32 %v647, 0.17677669
    %v650 = vsel %vm162, %v649, -1e+30
    %v651 = vsel %vm412, %v650, -inf
    %652 = vmax.xlane.f32.xlu0 %v651
    %v653 = vpop.xlane.xlu0 %652
    %v654 = vsub.f32 %v650, %v653
    %v655 = vmul.f32 %v654, 1.442695
    %v656 = vpow.pop %v655
    %v657 = vsel %vm412, %v656, 0.0
    %658 = vadd.xlane.f32.xlu0 %v657
    %v659 = vpop.xlane.xlu0 %658
    %v660 = vrcp.pop %v659
    %v661 = vmul.f32 %v659, %v660
    %v662 = vsub.f32 1.0, %v661
    %v663 = vmul.f32 %v660, %v662
    %v664 = vadd.f32 %v660, %v663
    %vm665 = vweird.f32 %v659
    %vm666 = vweird.f32 %v660
    %vm667 = vmor %vm665, %vm666
    %v668 = vsel %vm667, %v660, %v664
    %v669 = vand.u32 2147483647, %v659
    %vm670 = vcmp.eq.f32.partialorder %v669, 8.507059e+37
    %v671 = vand.u32 %v659, 2147483648
    %v672 = vor.u32 1.1754944e-38, %v671
    %v673 = vsel %vm670, %v672, %v668
    %v674 = vmul.f32 %v656, %v673
    %675 = vrot.lane.b32.xlu0 %v320, 32
    %v676 = vpop.permute.xlu0 %675
    %v679 = vsel %vm412, %v674, 0
    %681 = vmatpush.msra.mxu0 0.0
    %682 = vmatpush.msra.mxu0 0.0
    %683 = vmatpush.msra.mxu0 0.0
    %684 = vmatpush.msra.mxu0 0.0
    %685 = vmatpush.msra.mxu0 0.0
    %686 = vmatpush.msra.mxu0 0.0
    %687 = vmatpush.msra.mxu0 0.0
    %688 = vmatpush.msra.mxu0 0.0
    %689 = vmatpush.msra.mxu0 0.0
    %690 = vmatpush.msra.mxu0 0.0
    %691 = vmatpush.msra.mxu0 0.0
    %692 = vmatpush.msra.mxu0 0.0
    %693 = vmatpush.msra.mxu0 0.0
    %694 = vmatpush.msra.mxu0 0.0
    %695 = vmatpush.msra.mxu0 0.0
    %696 = vmatpush.msra.mxu0 %v676
    %697 = vmatmul.f32.gmra.mxu0 %v679
    %v698 = vpop.f32.mrf.mxu0
    %v699 = vadd.f32 0.0, %v698
    %700 = vdwg.mxu0
    %702 = vrot.lane.b32.xlu0 %v539, 32
    %v703 = vpop.permute.xlu0 %702
    %706 = vrot.lane.b32.xlu0 %v619, 64
    %v707 = vpop.permute.xlu0 %706
    %710 = vrot.lane.b32.xlu0 %v699, 96
    %v711 = vpop.permute.xlu0 %710
    %v713 = vsel %vm383, %v458, %v703
    %vm714 = vcmask 523264
    %v715 = vsel %vm714, %v713, %v707
    %vm716 = vcmask 785408
    %v717 = vsel %vm716, %v715, %v711
    %v719 = vsel %vm383, %v353, 0
    %v722 = vsel %vm383, %v382, 0
    %724 = vmatpush.xpose.msra.mxu0 0.0
    %725 = vmatpush.xpose.msra.mxu0 0.0
    %726 = vmatpush.xpose.msra.mxu0 0.0
    %727 = vmatpush.xpose.msra.mxu0 0.0
    %728 = vmatpush.xpose.msra.mxu0 0.0
    %729 = vmatpush.xpose.msra.mxu0 0.0
    %730 = vmatpush.xpose.msra.mxu0 0.0
    %731 = vmatpush.xpose.msra.mxu0 0.0
    %732 = vmatpush.xpose.msra.mxu0 0.0
    %733 = vmatpush.xpose.msra.mxu0 0.0
    %734 = vmatpush.xpose.msra.mxu0 0.0
    %735 = vmatpush.xpose.msra.mxu0 0.0
    %736 = vmatpush.xpose.msra.mxu0 0.0
    %737 = vmatpush.xpose.msra.mxu0 0.0
    %738 = vmatpush.xpose.msra.mxu0 0.0
    %739 = vmatpush.xpose.msra.mxu0 %v722
    %740 = vmatmul.f32.gmra.mxu0 %v719
    %v741 = vpop.f32.mrf.mxu0
    %v742 = vadd.f32 0.0, %v741
    %743 = vdwg.mxu0
    %v744 = vmul.f32 %v742, 0.17677669
    %v745 = vsel %vm162, %v744, -1e+30
    %v746 = vsel %vm412, %v745, -inf
    %747 = vmax.xlane.f32.xlu0 %v746
    %v748 = vpop.xlane.xlu0 %747
    %v749 = vsub.f32 %v745, %v748
    %v750 = vmul.f32 %v749, 1.442695
    %v751 = vpow.pop %v750
    %v752 = vsel %vm412, %v751, 0.0
    %753 = vadd.xlane.f32.xlu0 %v752
    %v754 = vpop.xlane.xlu0 %753
    %v755 = vrcp.pop %v754
    %v756 = vmul.f32 %v754, %v755
    %v757 = vsub.f32 1.0, %v756
    %v758 = vmul.f32 %v755, %v757
    %v759 = vadd.f32 %v755, %v758
    %vm760 = vweird.f32 %v754
    %vm761 = vweird.f32 %v755
    %vm762 = vmor %vm760, %vm761
    %v763 = vsel %vm762, %v755, %v759
    %v764 = vand.u32 2147483647, %v754
    %vm765 = vcmp.eq.f32.partialorder %v764, 8.507059e+37
    %v766 = vand.u32 %v754, 2147483648
    %v767 = vor.u32 1.1754944e-38, %v766
    %v768 = vsel %vm765, %v767, %v763
    %v769 = vmul.f32 %v751, %v768
    %v771 = vsel %vm412, %v769, 0
    %773 = vmatpush.msra.mxu0 0.0
    %774 = vmatpush.msra.mxu0 0.0
    %775 = vmatpush.msra.mxu0 0.0
    %776 = vmatpush.msra.mxu0 0.0
    %777 = vmatpush.msra.mxu0 0.0
    %778 = vmatpush.msra.mxu0 0.0
    %779 = vmatpush.msra.mxu0 0.0
    %780 = vmatpush.msra.mxu0 0.0
    %781 = vmatpush.msra.mxu0 0.0
    %782 = vmatpush.msra.mxu0 0.0
    %783 = vmatpush.msra.mxu0 0.0
    %784 = vmatpush.msra.mxu0 0.0
    %785 = vmatpush.msra.mxu0 0.0
    %786 = vmatpush.msra.mxu0 0.0
    %787 = vmatpush.msra.mxu0 0.0
    %788 = vmatpush.msra.mxu0 %v323
    %789 = vmatmul.f32.gmra.mxu0 %v771
    %v790 = vpop.f32.mrf.mxu0
    %v791 = vadd.f32 0.0, %v790
    %792 = vdwg.mxu0
    %793 = vrot.lane.b32.xlu0 %v353, 96
    %v794 = vpop.permute.xlu0 %793
    %795 = vrot.lane.b32.xlu0 %v382, 96
    %v796 = vpop.permute.xlu0 %795
    %v797 = vsel %vm383, %v794, 0
    %v799 = vsel %vm383, %v796, 0
    %801 = vmatpush.xpose.msra.mxu0 0.0
    %802 = vmatpush.xpose.msra.mxu0 0.0
    %803 = vmatpush.xpose.msra.mxu0 0.0
    %804 = vmatpush.xpose.msra.mxu0 0.0
    %805 = vmatpush.xpose.msra.mxu0 0.0
    %806 = vmatpush.xpose.msra.mxu0 0.0
    %807 = vmatpush.xpose.msra.mxu0 0.0
    %808 = vmatpush.xpose.msra.mxu0 0.0
    %809 = vmatpush.xpose.msra.mxu0 0.0
    %810 = vmatpush.xpose.msra.mxu0 0.0
    %811 = vmatpush.xpose.msra.mxu0 0.0
    %812 = vmatpush.xpose.msra.mxu0 0.0
    %813 = vmatpush.xpose.msra.mxu0 0.0
    %814 = vmatpush.xpose.msra.mxu0 0.0
    %815 = vmatpush.xpose.msra.mxu0 0.0
    %816 = vmatpush.xpose.msra.mxu0 %v799
    %817 = vmatmul.f32.gmra.mxu0 %v797
    %v818 = vpop.f32.mrf.mxu0
    %v819 = vadd.f32 0.0, %v818
    %820 = vdwg.mxu0
    %v821 = vmul.f32 %v819, 0.17677669
    %v822 = vsel %vm162, %v821, -1e+30
    %v823 = vsel %vm412, %v822, -inf
    %824 = vmax.xlane.f32.xlu0 %v823
    %v825 = vpop.xlane.xlu0 %824
    %v826 = vsub.f32 %v822, %v825
    %v827 = vmul.f32 %v826, 1.442695
    %v828 = vpow.pop %v827
    %v829 = vsel %vm412, %v828, 0.0
    %830 = vadd.xlane.f32.xlu0 %v829
    %v831 = vpop.xlane.xlu0 %830
    %v832 = vrcp.pop %v831
    %v833 = vmul.f32 %v831, %v832
    %v834 = vsub.f32 1.0, %v833
    %v835 = vmul.f32 %v832, %v834
    %v836 = vadd.f32 %v832, %v835
    %vm837 = vweird.f32 %v831
    %vm838 = vweird.f32 %v832
    %vm839 = vmor %vm837, %vm838
    %v840 = vsel %vm839, %v832, %v836
    %v841 = vand.u32 2147483647, %v831
    %vm842 = vcmp.eq.f32.partialorder %v841, 8.507059e+37
    %v843 = vand.u32 %v831, 2147483648
    %v844 = vor.u32 1.1754944e-38, %v843
    %v845 = vsel %vm842, %v844, %v840
    %v846 = vmul.f32 %v828, %v845
    %848 = vrot.lane.b32.xlu0 %v323, 96
    %v849 = vpop.permute.xlu0 %848
    %v852 = vsel %vm412, %v846, 0
    %854 = vmatpush.msra.mxu0 0.0
    %855 = vmatpush.msra.mxu0 0.0
    %856 = vmatpush.msra.mxu0 0.0
    %857 = vmatpush.msra.mxu0 0.0
    %858 = vmatpush.msra.mxu0 0.0
    %859 = vmatpush.msra.mxu0 0.0
    %860 = vmatpush.msra.mxu0 0.0
    %861 = vmatpush.msra.mxu0 0.0
    %862 = vmatpush.msra.mxu0 0.0
    %863 = vmatpush.msra.mxu0 0.0
    %864 = vmatpush.msra.mxu0 0.0
    %865 = vmatpush.msra.mxu0 0.0
    %866 = vmatpush.msra.mxu0 0.0
    %867 = vmatpush.msra.mxu0 0.0
    %868 = vmatpush.msra.mxu0 0.0
    %869 = vmatpush.msra.mxu0 %v849
    %870 = vmatmul.f32.gmra.mxu0 %v852
    %v871 = vpop.f32.mrf.mxu0
    %v872 = vadd.f32 0.0, %v871
    %873 = vdwg.mxu0
    %874 = vrot.lane.b32.xlu0 %v353, 64
    %v875 = vpop.permute.xlu0 %874
    %876 = vrot.lane.b32.xlu0 %v382, 64
    %v877 = vpop.permute.xlu0 %876
    %v878 = vsel %vm383, %v875, 0
    %v880 = vsel %vm383, %v877, 0
    %882 = vmatpush.xpose.msra.mxu0 0.0
    %883 = vmatpush.xpose.msra.mxu0 0.0
    %884 = vmatpush.xpose.msra.mxu0 0.0
    %885 = vmatpush.xpose.msra.mxu0 0.0
    %886 = vmatpush.xpose.msra.mxu0 0.0
    %887 = vmatpush.xpose.msra.mxu0 0.0
    %888 = vmatpush.xpose.msra.mxu0 0.0
    %889 = vmatpush.xpose.msra.mxu0 0.0
    %890 = vmatpush.xpose.msra.mxu0 0.0
    %891 = vmatpush.xpose.msra.mxu0 0.0
    %892 = vmatpush.xpose.msra.mxu0 0.0
    %893 = vmatpush.xpose.msra.mxu0 0.0
    %894 = vmatpush.xpose.msra.mxu0 0.0
    %895 = vmatpush.xpose.msra.mxu0 0.0
    %896 = vmatpush.xpose.msra.mxu0 0.0
    %897 = vmatpush.xpose.msra.mxu0 %v880
    %898 = vmatmul.f32.gmra.mxu0 %v878
    %v899 = vpop.f32.mrf.mxu0
    %v900 = vadd.f32 0.0, %v899
    %901 = vdwg.mxu0
    %v902 = vmul.f32 %v900, 0.17677669
    %v903 = vsel %vm162, %v902, -1e+30
    %v904 = vsel %vm412, %v903, -inf
    %905 = vmax.xlane.f32.xlu0 %v904
    %v906 = vpop.xlane.xlu0 %905
    %v907 = vsub.f32 %v903, %v906
    %v908 = vmul.f32 %v907, 1.442695
    %v909 = vpow.pop %v908
    %v910 = vsel %vm412, %v909, 0.0
    %911 = vadd.xlane.f32.xlu0 %v910
    %v912 = vpop.xlane.xlu0 %911
    %v913 = vrcp.pop %v912
    %v914 = vmul.f32 %v912, %v913
    %v915 = vsub.f32 1.0, %v914
    %v916 = vmul.f32 %v913, %v915
    %v917 = vadd.f32 %v913, %v916
    %vm918 = vweird.f32 %v912
    %vm919 = vweird.f32 %v913
    %vm920 = vmor %vm918, %vm919
    %v921 = vsel %vm920, %v913, %v917
    %v922 = vand.u32 2147483647, %v912
    %vm923 = vcmp.eq.f32.partialorder %v922, 8.507059e+37
    %v924 = vand.u32 %v912, 2147483648
    %v925 = vor.u32 1.1754944e-38, %v924
    %v926 = vsel %vm923, %v925, %v921
    %v927 = vmul.f32 %v909, %v926
    %928 = vrot.lane.b32.xlu0 %v323, 64
    %v929 = vpop.permute.xlu0 %928
    %v932 = vsel %vm412, %v927, 0
    %934 = vmatpush.msra.mxu0 0.0
    %935 = vmatpush.msra.mxu0 0.0
    %936 = vmatpush.msra.mxu0 0.0
    %937 = vmatpush.msra.mxu0 0.0
    %938 = vmatpush.msra.mxu0 0.0
    %939 = vmatpush.msra.mxu0 0.0
    %940 = vmatpush.msra.mxu0 0.0
    %941 = vmatpush.msra.mxu0 0.0
    %942 = vmatpush.msra.mxu0 0.0
    %943 = vmatpush.msra.mxu0 0.0
    %944 = vmatpush.msra.mxu0 0.0
    %945 = vmatpush.msra.mxu0 0.0
    %946 = vmatpush.msra.mxu0 0.0
    %947 = vmatpush.msra.mxu0 0.0
    %948 = vmatpush.msra.mxu0 0.0
    %949 = vmatpush.msra.mxu0 %v929
    %950 = vmatmul.f32.gmra.mxu0 %v932
    %v951 = vpop.f32.mrf.mxu0
    %v952 = vadd.f32 0.0, %v951
    %953 = vdwg.mxu0
    %954 = vrot.lane.b32.xlu0 %v353, 32
    %v955 = vpop.permute.xlu0 %954
    %956 = vrot.lane.b32.xlu0 %v382, 32
    %v957 = vpop.permute.xlu0 %956
    %v958 = vsel %vm383, %v955, 0
    %v960 = vsel %vm383, %v957, 0
    %962 = vmatpush.xpose.msra.mxu0 0.0
    %963 = vmatpush.xpose.msra.mxu0 0.0
    %964 = vmatpush.xpose.msra.mxu0 0.0
    %965 = vmatpush.xpose.msra.mxu0 0.0
    %966 = vmatpush.xpose.msra.mxu0 0.0
    %967 = vmatpush.xpose.msra.mxu0 0.0
    %968 = vmatpush.xpose.msra.mxu0 0.0
    %969 = vmatpush.xpose.msra.mxu0 0.0
    %970 = vmatpush.xpose.msra.mxu0 0.0
    %971 = vmatpush.xpose.msra.mxu0 0.0
    %972 = vmatpush.xpose.msra.mxu0 0.0
    %973 = vmatpush.xpose.msra.mxu0 0.0
    %974 = vmatpush.xpose.msra.mxu0 0.0
    %975 = vmatpush.xpose.msra.mxu0 0.0
    %976 = vmatpush.xpose.msra.mxu0 0.0
    %977 = vmatpush.xpose.msra.mxu0 %v960
    %978 = vmatmul.f32.gmra.mxu0 %v958
    %v979 = vpop.f32.mrf.mxu0
    %v980 = vadd.f32 0.0, %v979
    %981 = vdwg.mxu0
    %v982 = vmul.f32 %v980, 0.17677669
    %v983 = vsel %vm162, %v982, -1e+30
    %v984 = vsel %vm412, %v983, -inf
    %985 = vmax.xlane.f32.xlu0 %v984
    %v986 = vpop.xlane.xlu0 %985
    %v987 = vsub.f32 %v983, %v986
    %v988 = vmul.f32 %v987, 1.442695
    %v989 = vpow.pop %v988
    %v990 = vsel %vm412, %v989, 0.0
    %991 = vadd.xlane.f32.xlu0 %v990
    %v992 = vpop.xlane.xlu0 %991
    %v993 = vrcp.pop %v992
    %v994 = vmul.f32 %v992, %v993
    %v995 = vsub.f32 1.0, %v994
    %v996 = vmul.f32 %v993, %v995
    %v997 = vadd.f32 %v993, %v996
    %vm998 = vweird.f32 %v992
    %vm999 = vweird.f32 %v993
    %vm1000 = vmor %vm998, %vm999
    %v1001 = vsel %vm1000, %v993, %v997
    %v1002 = vand.u32 2147483647, %v992
    %vm1003 = vcmp.eq.f32.partialorder %v1002, 8.507059e+37
    %v1004 = vand.u32 %v992, 2147483648
    %v1005 = vor.u32 1.1754944e-38, %v1004
    %v1006 = vsel %vm1003, %v1005, %v1001
    %v1007 = vmul.f32 %v989, %v1006
    %1008 = vrot.lane.b32.xlu0 %v323, 32
    %v1009 = vpop.permute.xlu0 %1008
    %v1012 = vsel %vm412, %v1007, 0
    %1014 = vmatpush.msra.mxu0 0.0
    %1015 = vmatpush.msra.mxu0 0.0
    %1016 = vmatpush.msra.mxu0 0.0
    %1017 = vmatpush.msra.mxu0 0.0
    %1018 = vmatpush.msra.mxu0 0.0
    %1019 = vmatpush.msra.mxu0 0.0
    %1020 = vmatpush.msra.mxu0 0.0
    %1021 = vmatpush.msra.mxu0 0.0
    %1022 = vmatpush.msra.mxu0 0.0
    %1023 = vmatpush.msra.mxu0 0.0
    %1024 = vmatpush.msra.mxu0 0.0
    %1025 = vmatpush.msra.mxu0 0.0
    %1026 = vmatpush.msra.mxu0 0.0
    %1027 = vmatpush.msra.mxu0 0.0
    %1028 = vmatpush.msra.mxu0 0.0
    %1029 = vmatpush.msra.mxu0 %v1009
    %1030 = vmatmul.f32.gmra.mxu0 %v1012
    %v1031 = vpop.f32.mrf.mxu0
    %v1032 = vadd.f32 0.0, %v1031
    %1033 = vdwg.mxu0
    %1035 = vrot.lane.b32.xlu0 %v872, 32
    %v1036 = vpop.permute.xlu0 %1035
    %1039 = vrot.lane.b32.xlu0 %v952, 64
    %v1040 = vpop.permute.xlu0 %1039
    %1043 = vrot.lane.b32.xlu0 %v1032, 96
    %v1044 = vpop.permute.xlu0 %1043
    %v1046 = vsel %vm383, %v791, %v1036
    %v1047 = vsel %vm714, %v1046, %v1040
    %v1048 = vsel %vm716, %v1047, %v1044
    %v1049 = vld [vmem:[%s10] sm:$0xff]
    %v1050 = vld [vmem:[%s10 + $0x8] sm:$0xff]
    %v1051 = vld [vmem:[%s10 + $0x10] sm:$0xff]
    %v1052 = vld [vmem:[%s10 + $0x18] sm:$0xff]
    %v1053 = vld [vmem:[%s10 + $0x20] sm:$0xff]
    %v1054 = vld [vmem:[%s10 + $0x28] sm:$0xff]
    %v1055 = vld [vmem:[%s10 + $0x30] sm:$0xff]
    %v1056 = vld [vmem:[%s10 + $0x38] sm:$0xff]
    %v1057 = vld [vmem:[%s10 + $0x40] sm:$0xff]
    %v1058 = vld [vmem:[%s10 + $0x48] sm:$0xff]
    %v1059 = vld [vmem:[%s10 + $0x50] sm:$0xff]
    %v1060 = vld [vmem:[%s10 + $0x58] sm:$0xff]
    %v1061 = vld [vmem:[%s10 + $0x60] sm:$0xff]
    %v1062 = vld [vmem:[%s10 + $0x68] sm:$0xff]
    %v1063 = vld [vmem:[%s10 + $0x70] sm:$0xff]
    %v1064 = vld [vmem:[%s10 + $0x78] sm:$0xff]
    %1065 = vmatpush.msra.mxu0 %v1064
    %1066 = vmatpush.msra.mxu0 %v1063
    %1067 = vmatpush.msra.mxu0 %v1062
    %1068 = vmatpush.msra.mxu0 %v1061
    %1069 = vmatpush.msra.mxu0 %v1060
    %1070 = vmatpush.msra.mxu0 %v1059
    %1071 = vmatpush.msra.mxu0 %v1058
    %1072 = vmatpush.msra.mxu0 %v1057
    %1073 = vmatpush.msra.mxu0 %v1056
    %1074 = vmatpush.msra.mxu0 %v1055
    %1075 = vmatpush.msra.mxu0 %v1054
    %1076 = vmatpush.msra.mxu0 %v1053
    %1077 = vmatpush.msra.mxu0 %v1052
    %1078 = vmatpush.msra.mxu0 %v1051
    %1079 = vmatpush.msra.mxu0 %v1050
    %1080 = vmatpush.msra.mxu0 %v1049
    %1081 = vmatmul.f32.gmra.mxu0 %v717
    %v1082 = vpop.f32.mrf.mxu0
    %v1083 = vadd.f32 0.0, %v1082
    %1084 = vmatmul.f32.gmra.mxu0 %v1048
    %v1085 = vpop.f32.mrf.mxu0
    %v1086 = vadd.f32 0.0, %v1085
    %1087 = vdwg.mxu0
    %v1088 = vadd.f32 %v133, %v1083
    %v1089 = vadd.f32 %v136, %v1086
    %v1090 = vld [vmem:[%s11] sm:$0x1]
    %v1091 = vmul.f32 %v1088, %v1088
    %v1092 = vmul.f32 %v1089, %v1089
    %1093 = vadd.xlane.f32.xlu0 %v1091
    %v1094 = vpop.xlane.xlu0 %1093
    %1095 = vadd.xlane.f32.xlu0 %v1092
    %v1096 = vpop.xlane.xlu0 %1095
    %v1097 = vmul.f32 %v1094, %v176
    %v1098 = vmul.f32 %v1096, %v176
    %v1099 = vadd.f32 %v1097, 1e-06
    %v1100 = vadd.f32 %v1098, 1e-06
    %v1101 = vrsqrt.pop %v1099
    %v1102 = vmul.f32 %v1101, %v1099
    %v1103 = vmul.f32 %v1102, %v1101
    %v1104 = vmul.f32 0.5, %v1103
    %v1105 = vsub.f32 1.5, %v1104
    %v1106 = vmul.f32 %v1101, %v1105
    %vm1107 = vweird.f32 %v1099
    %vm1108 = vweird.f32 %v1101
    %vm1109 = vmor %vm1107, %vm1108
    %v1110 = vsel %vm1109, %v1101, %v1106
    %v1111 = vrsqrt.pop %v1100
    %v1112 = vmul.f32 %v1111, %v1100
    %v1113 = vmul.f32 %v1112, %v1111
    %v1114 = vmul.f32 0.5, %v1113
    %v1115 = vsub.f32 1.5, %v1114
    %v1116 = vmul.f32 %v1111, %v1115
    %vm1117 = vweird.f32 %v1100
    %vm1118 = vweird.f32 %v1111
    %vm1119 = vmor %vm1117, %vm1118
    %v1120 = vsel %vm1119, %v1111, %v1116
    %v1121 = vmul.f32 %v1088, %v1110
    %v1122 = vmul.f32 %v1089, %v1120
    %v1124 = vperm.slane %v1090, 0
    %v1126 = vmul.f32 %v1121, %v1124
    %v1127 = vmul.f32 %v1122, %v1124
    %v1128 = vld [vmem:[%s12] sm:$0xff]
    %v1129 = vld [vmem:[%s12 + $0x8] sm:$0xff]
    %v1130 = vld [vmem:[%s12 + $0x10] sm:$0xff]
    %v1131 = vld [vmem:[%s12 + $0x18] sm:$0xff]
    %v1132 = vld [vmem:[%s12 + $0x20] sm:$0xff]
    %v1133 = vld [vmem:[%s12 + $0x28] sm:$0xff]
    %v1134 = vld [vmem:[%s12 + $0x30] sm:$0xff]
    %v1135 = vld [vmem:[%s12 + $0x38] sm:$0xff]
    %v1136 = vld [vmem:[%s12 + $0x40] sm:$0xff]
    %v1137 = vld [vmem:[%s12 + $0x48] sm:$0xff]
    %v1138 = vld [vmem:[%s12 + $0x50] sm:$0xff]
    %v1139 = vld [vmem:[%s12 + $0x58] sm:$0xff]
    %v1140 = vld [vmem:[%s12 + $0x60] sm:$0xff]
    %v1141 = vld [vmem:[%s12 + $0x68] sm:$0xff]
    %v1142 = vld [vmem:[%s12 + $0x70] sm:$0xff]
    %v1143 = vld [vmem:[%s12 + $0x78] sm:$0xff]
    %v1144 = vld [vmem:[%s12 + $0x80] sm:$0xff]
    %v1145 = vld [vmem:[%s12 + $0x88] sm:$0xff]
    %v1146 = vld [vmem:[%s12 + $0x90] sm:$0xff]
    %v1147 = vld [vmem:[%s12 + $0x98] sm:$0xff]
    %v1148 = vld [vmem:[%s12 + $0xa0] sm:$0xff]
    %v1149 = vld [vmem:[%s12 + $0xa8] sm:$0xff]
    %v1150 = vld [vmem:[%s12 + $0xb0] sm:$0xff]
    %v1151 = vld [vmem:[%s12 + $0xb8] sm:$0xff]
    %v1152 = vld [vmem:[%s12 + $0xc0] sm:$0xff]
    %v1153 = vld [vmem:[%s12 + $0xc8] sm:$0xff]
    %v1154 = vld [vmem:[%s12 + $0xd0] sm:$0xff]
    %v1155 = vld [vmem:[%s12 + $0xd8] sm:$0xff]
    %v1156 = vld [vmem:[%s12 + $0xe0] sm:$0xff]
    %v1157 = vld [vmem:[%s12 + $0xe8] sm:$0xff]
    %v1158 = vld [vmem:[%s12 + $0xf0] sm:$0xff]
    %v1159 = vld [vmem:[%s12 + $0xf8] sm:$0xff]
    %v1160 = vld [vmem:[%s12 + $0x100] sm:$0xff]
    %v1161 = vld [vmem:[%s12 + $0x108] sm:$0xff]
    %v1162 = vld [vmem:[%s12 + $0x110] sm:$0xff]
    %v1163 = vld [vmem:[%s12 + $0x118] sm:$0xff]
    %v1164 = vld [vmem:[%s12 + $0x120] sm:$0xff]
    %v1165 = vld [vmem:[%s12 + $0x128] sm:$0xff]
    %v1166 = vld [vmem:[%s12 + $0x130] sm:$0xff]
    %v1167 = vld [vmem:[%s12 + $0x138] sm:$0xff]
    %v1168 = vld [vmem:[%s12 + $0x140] sm:$0xff]
    %v1169 = vld [vmem:[%s12 + $0x148] sm:$0xff]
    %v1170 = vld [vmem:[%s12 + $0x150] sm:$0xff]
    %v1171 = vld [vmem:[%s12 + $0x158] sm:$0xff]
    %v1172 = vld [vmem:[%s12 + $0x160] sm:$0xff]
    %v1173 = vld [vmem:[%s12 + $0x168] sm:$0xff]
    %v1174 = vld [vmem:[%s12 + $0x170] sm:$0xff]
    %v1175 = vld [vmem:[%s12 + $0x178] sm:$0xff]
    %v1176 = vld [vmem:[%s12 + $0x180] sm:$0xff]
    %v1177 = vld [vmem:[%s12 + $0x188] sm:$0xff]
    %v1178 = vld [vmem:[%s12 + $0x190] sm:$0xff]
    %v1179 = vld [vmem:[%s12 + $0x198] sm:$0xff]
    %v1180 = vld [vmem:[%s12 + $0x1a0] sm:$0xff]
    %v1181 = vld [vmem:[%s12 + $0x1a8] sm:$0xff]
    %v1182 = vld [vmem:[%s12 + $0x1b0] sm:$0xff]
    %v1183 = vld [vmem:[%s12 + $0x1b8] sm:$0xff]
    %v1184 = vld [vmem:[%s12 + $0x1c0] sm:$0xff]
    %v1185 = vld [vmem:[%s12 + $0x1c8] sm:$0xff]
    %v1186 = vld [vmem:[%s12 + $0x1d0] sm:$0xff]
    %v1187 = vld [vmem:[%s12 + $0x1d8] sm:$0xff]
    %v1188 = vld [vmem:[%s12 + $0x1e0] sm:$0xff]
    %v1189 = vld [vmem:[%s12 + $0x1e8] sm:$0xff]
    %v1190 = vld [vmem:[%s12 + $0x1f0] sm:$0xff]
    %v1191 = vld [vmem:[%s12 + $0x1f8] sm:$0xff]
    %1192 = vmatpush.msra.mxu0 %v1188
    %1193 = vmatpush.msra.mxu0 %v1184
    %1194 = vmatpush.msra.mxu0 %v1180
    %1195 = vmatpush.msra.mxu0 %v1176
    %1196 = vmatpush.msra.mxu0 %v1172
    %1197 = vmatpush.msra.mxu0 %v1168
    %1198 = vmatpush.msra.mxu0 %v1164
    %1199 = vmatpush.msra.mxu0 %v1160
    %1200 = vmatpush.msra.mxu0 %v1156
    %1201 = vmatpush.msra.mxu0 %v1152
    %1202 = vmatpush.msra.mxu0 %v1148
    %1203 = vmatpush.msra.mxu0 %v1144
    %1204 = vmatpush.msra.mxu0 %v1140
    %1205 = vmatpush.msra.mxu0 %v1136
    %1206 = vmatpush.msra.mxu0 %v1132
    %1207 = vmatpush.msra.mxu0 %v1128
    %1208 = vmatmul.f32.gmra.mxu0 %v1126
    %v1209 = vpop.f32.mrf.mxu0
    %v1210 = vadd.f32 0.0, %v1209
    %1211 = vmatmul.f32.gmra.mxu0 %v1127
    %v1212 = vpop.f32.mrf.mxu0
    %v1213 = vadd.f32 0.0, %v1212
    %1214 = vdwg.mxu0
    %1215 = vmatpush.msra.mxu0 %v1189
    %1216 = vmatpush.msra.mxu0 %v1185
    %1217 = vmatpush.msra.mxu0 %v1181
    %1218 = vmatpush.msra.mxu0 %v1177
    %1219 = vmatpush.msra.mxu0 %v1173
    %1220 = vmatpush.msra.mxu0 %v1169
    %1221 = vmatpush.msra.mxu0 %v1165
    %1222 = vmatpush.msra.mxu0 %v1161
    %1223 = vmatpush.msra.mxu0 %v1157
    %1224 = vmatpush.msra.mxu0 %v1153
    %1225 = vmatpush.msra.mxu0 %v1149
    %1226 = vmatpush.msra.mxu0 %v1145
    %1227 = vmatpush.msra.mxu0 %v1141
    %1228 = vmatpush.msra.mxu0 %v1137
    %1229 = vmatpush.msra.mxu0 %v1133
    %1230 = vmatpush.msra.mxu0 %v1129
    %1231 = vmatmul.f32.gmra.mxu0 %v1126
    %v1232 = vpop.f32.mrf.mxu0
    %v1233 = vadd.f32 0.0, %v1232
    %1234 = vmatmul.f32.gmra.mxu0 %v1127
    %v1235 = vpop.f32.mrf.mxu0
    %v1236 = vadd.f32 0.0, %v1235
    %1237 = vdwg.mxu0
    %1238 = vmatpush.msra.mxu0 %v1190
    %1239 = vmatpush.msra.mxu0 %v1186
    %1240 = vmatpush.msra.mxu0 %v1182
    %1241 = vmatpush.msra.mxu0 %v1178
    %1242 = vmatpush.msra.mxu0 %v1174
    %1243 = vmatpush.msra.mxu0 %v1170
    %1244 = vmatpush.msra.mxu0 %v1166
    %1245 = vmatpush.msra.mxu0 %v1162
    %1246 = vmatpush.msra.mxu0 %v1158
    %1247 = vmatpush.msra.mxu0 %v1154
    %1248 = vmatpush.msra.mxu0 %v1150
    %1249 = vmatpush.msra.mxu0 %v1146
    %1250 = vmatpush.msra.mxu0 %v1142
    %1251 = vmatpush.msra.mxu0 %v1138
    %1252 = vmatpush.msra.mxu0 %v1134
    %1253 = vmatpush.msra.mxu0 %v1130
    %1254 = vmatmul.f32.gmra.mxu0 %v1126
    %v1255 = vpop.f32.mrf.mxu0
    %v1256 = vadd.f32 0.0, %v1255
    %1257 = vmatmul.f32.gmra.mxu0 %v1127
    %v1258 = vpop.f32.mrf.mxu0
    %v1259 = vadd.f32 0.0, %v1258
    %1260 = vdwg.mxu0
    %1261 = vmatpush.msra.mxu0 %v1191
    %1262 = vmatpush.msra.mxu0 %v1187
    %1263 = vmatpush.msra.mxu0 %v1183
    %1264 = vmatpush.msra.mxu0 %v1179
    %1265 = vmatpush.msra.mxu0 %v1175
    %1266 = vmatpush.msra.mxu0 %v1171
    %1267 = vmatpush.msra.mxu0 %v1167
    %1268 = vmatpush.msra.mxu0 %v1163
    %1269 = vmatpush.msra.mxu0 %v1159
    %1270 = vmatpush.msra.mxu0 %v1155
    %1271 = vmatpush.msra.mxu0 %v1151
    %1272 = vmatpush.msra.mxu0 %v1147
    %1273 = vmatpush.msra.mxu0 %v1143
    %1274 = vmatpush.msra.mxu0 %v1139
    %1275 = vmatpush.msra.mxu0 %v1135
    %1276 = vmatpush.msra.mxu0 %v1131
    %1277 = vmatmul.f32.gmra.mxu0 %v1126
    %v1278 = vpop.f32.mrf.mxu0
    %v1279 = vadd.f32 0.0, %v1278
    %1280 = vmatmul.f32.gmra.mxu0 %v1127
    %v1281 = vpop.f32.mrf.mxu0
    %v1282 = vadd.f32 0.0, %v1281
    %1283 = vdwg.mxu0
    %v1284 = vxor.u32 %v1210, 2147483648
    %v1285 = vxor.u32 %v1233, 2147483648
    %v1286 = vxor.u32 %v1213, 2147483648
    %v1287 = vxor.u32 %v1236, 2147483648
    %v1288 = vmul.f32 %v1284, 1.442695
    %v1289 = vpow.pop %v1288
    %v1290 = vmul.f32 %v1285, 1.442695
    %v1291 = vpow.pop %v1290
    %v1292 = vmul.f32 %v1286, 1.442695
    %v1293 = vpow.pop %v1292
    %v1294 = vmul.f32 %v1287, 1.442695
    %v1295 = vpow.pop %v1294
    %v1296 = vadd.f32 %v1289, 1.0
    %v1297 = vadd.f32 %v1291, 1.0
    %v1298 = vadd.f32 %v1293, 1.0
    %v1299 = vadd.f32 %v1295, 1.0
    %v1300 = vrcp.pop %v1296
    %v1301 = vmul.f32 %v1296, %v1300
    %v1302 = vsub.f32 1.0, %v1301
    %v1303 = vmul.f32 %v1300, %v1302
    %v1304 = vadd.f32 %v1300, %v1303
    %vm1305 = vweird.f32 %v1296
    %vm1306 = vweird.f32 %v1300
    %vm1307 = vmor %vm1305, %vm1306
    %v1308 = vsel %vm1307, %v1300, %v1304
    %v1309 = vand.u32 2147483647, %v1296
    %vm1310 = vcmp.eq.f32.partialorder %v1309, 8.507059e+37
    %v1311 = vand.u32 %v1296, 2147483648
    %v1312 = vor.u32 1.1754944e-38, %v1311
    %v1313 = vsel %vm1310, %v1312, %v1308
    %v1314 = vmul.f32 1.0, %v1313
    %v1315 = vrcp.pop %v1297
    %v1316 = vmul.f32 %v1297, %v1315
    %v1317 = vsub.f32 1.0, %v1316
    %v1318 = vmul.f32 %v1315, %v1317
    %v1319 = vadd.f32 %v1315, %v1318
    %vm1320 = vweird.f32 %v1297
    %vm1321 = vweird.f32 %v1315
    %vm1322 = vmor %vm1320, %vm1321
    %v1323 = vsel %vm1322, %v1315, %v1319
    %v1324 = vand.u32 2147483647, %v1297
    %vm1325 = vcmp.eq.f32.partialorder %v1324, 8.507059e+37
    %v1326 = vand.u32 %v1297, 2147483648
    %v1327 = vor.u32 1.1754944e-38, %v1326
    %v1328 = vsel %vm1325, %v1327, %v1323
    %v1329 = vmul.f32 1.0, %v1328
    %v1330 = vrcp.pop %v1298
    %v1331 = vmul.f32 %v1298, %v1330
    %v1332 = vsub.f32 1.0, %v1331
    %v1333 = vmul.f32 %v1330, %v1332
    %v1334 = vadd.f32 %v1330, %v1333
    %vm1335 = vweird.f32 %v1298
    %vm1336 = vweird.f32 %v1330
    %vm1337 = vmor %vm1335, %vm1336
    %v1338 = vsel %vm1337, %v1330, %v1334
    %v1339 = vand.u32 2147483647, %v1298
    %vm1340 = vcmp.eq.f32.partialorder %v1339, 8.507059e+37
    %v1341 = vand.u32 %v1298, 2147483648
    %v1342 = vor.u32 1.1754944e-38, %v1341
    %v1343 = vsel %vm1340, %v1342, %v1338
    %v1344 = vmul.f32 1.0, %v1343
    %v1345 = vrcp.pop %v1299
    %v1346 = vmul.f32 %v1299, %v1345
    %v1347 = vsub.f32 1.0, %v1346
    %v1348 = vmul.f32 %v1345, %v1347
    %v1349 = vadd.f32 %v1345, %v1348
    %vm1350 = vweird.f32 %v1299
    %vm1351 = vweird.f32 %v1345
    %vm1352 = vmor %vm1350, %vm1351
    %v1353 = vsel %vm1352, %v1345, %v1349
    %v1354 = vand.u32 2147483647, %v1299
    %vm1355 = vcmp.eq.f32.partialorder %v1354, 8.507059e+37
    %v1356 = vand.u32 %v1299, 2147483648
    %v1357 = vor.u32 1.1754944e-38, %v1356
    %v1358 = vsel %vm1355, %v1357, %v1353
    %v1359 = vmul.f32 1.0, %v1358
    %v1360 = vmul.f32 %v1210, %v1314
    %v1361 = vmul.f32 %v1233, %v1329
    %v1362 = vmul.f32 %v1213, %v1344
    %v1363 = vmul.f32 %v1236, %v1359
    %v1364 = vmul.f32 %v1360, %v1256
    %v1365 = vmul.f32 %v1361, %v1279
    %v1366 = vmul.f32 %v1362, %v1259
    %v1367 = vmul.f32 %v1363, %v1282
    %v1368 = vld [vmem:[%s13] sm:$0xff]
    %v1369 = vld [vmem:[%s13 + $0x8] sm:$0xff]
    %v1370 = vld [vmem:[%s13 + $0x10] sm:$0xff]
    %v1371 = vld [vmem:[%s13 + $0x18] sm:$0xff]
    %v1372 = vld [vmem:[%s13 + $0x20] sm:$0xff]
    %v1373 = vld [vmem:[%s13 + $0x28] sm:$0xff]
    %v1374 = vld [vmem:[%s13 + $0x30] sm:$0xff]
    %v1375 = vld [vmem:[%s13 + $0x38] sm:$0xff]
    %v1376 = vld [vmem:[%s13 + $0x40] sm:$0xff]
    %v1377 = vld [vmem:[%s13 + $0x48] sm:$0xff]
    %v1378 = vld [vmem:[%s13 + $0x50] sm:$0xff]
    %v1379 = vld [vmem:[%s13 + $0x58] sm:$0xff]
    %v1380 = vld [vmem:[%s13 + $0x60] sm:$0xff]
    %v1381 = vld [vmem:[%s13 + $0x68] sm:$0xff]
    %v1382 = vld [vmem:[%s13 + $0x70] sm:$0xff]
    %v1383 = vld [vmem:[%s13 + $0x78] sm:$0xff]
    %v1384 = vld [vmem:[%s13 + $0x80] sm:$0xff]
    %v1385 = vld [vmem:[%s13 + $0x88] sm:$0xff]
    %v1386 = vld [vmem:[%s13 + $0x90] sm:$0xff]
    %v1387 = vld [vmem:[%s13 + $0x98] sm:$0xff]
    %v1388 = vld [vmem:[%s13 + $0xa0] sm:$0xff]
    %v1389 = vld [vmem:[%s13 + $0xa8] sm:$0xff]
    %v1390 = vld [vmem:[%s13 + $0xb0] sm:$0xff]
    %v1391 = vld [vmem:[%s13 + $0xb8] sm:$0xff]
    %v1392 = vld [vmem:[%s13 + $0xc0] sm:$0xff]
    %v1393 = vld [vmem:[%s13 + $0xc8] sm:$0xff]
    %v1394 = vld [vmem:[%s13 + $0xd0] sm:$0xff]
    %v1395 = vld [vmem:[%s13 + $0xd8] sm:$0xff]
    %v1396 = vld [vmem:[%s13 + $0xe0] sm:$0xff]
    %v1397 = vld [vmem:[%s13 + $0xe8] sm:$0xff]
    %v1398 = vld [vmem:[%s13 + $0xf0] sm:$0xff]
    %v1399 = vld [vmem:[%s13 + $0xf8] sm:$0xff]
    %1400 = vmatpush.msra.mxu0 %v1383
    %1401 = vmatpush.msra.mxu0 %v1382
    %1402 = vmatpush.msra.mxu0 %v1381
    %1403 = vmatpush.msra.mxu0 %v1380
    %1404 = vmatpush.msra.mxu0 %v1379
    %1405 = vmatpush.msra.mxu0 %v1378
    %1406 = vmatpush.msra.mxu0 %v1377
    %1407 = vmatpush.msra.mxu0 %v1376
    %1408 = vmatpush.msra.mxu0 %v1375
    %1409 = vmatpush.msra.mxu0 %v1374
    %1410 = vmatpush.msra.mxu0 %v1373
    %1411 = vmatpush.msra.mxu0 %v1372
    %1412 = vmatpush.msra.mxu0 %v1371
    %1413 = vmatpush.msra.mxu0 %v1370
    %1414 = vmatpush.msra.mxu0 %v1369
    %1415 = vmatpush.msra.mxu0 %v1368
    %1416 = vmatmul.f32.gmra.mxu0 %v1364
    %v1417 = vpop.f32.mrf.mxu0
    %v1418 = vadd.f32 0.0, %v1417
    %1419 = vmatmul.f32.gmra.mxu0 %v1366
    %v1420 = vpop.f32.mrf.mxu0
    %v1421 = vadd.f32 0.0, %v1420
    %1422 = vdwg.mxu0
    %1423 = vmatpush.msra.mxu0 %v1399
    %1424 = vmatpush.msra.mxu0 %v1398
    %1425 = vmatpush.msra.mxu0 %v1397
    %1426 = vmatpush.msra.mxu0 %v1396
    %1427 = vmatpush.msra.mxu0 %v1395
    %1428 = vmatpush.msra.mxu0 %v1394
    %1429 = vmatpush.msra.mxu0 %v1393
    %1430 = vmatpush.msra.mxu0 %v1392
    %1431 = vmatpush.msra.mxu0 %v1391
    %1432 = vmatpush.msra.mxu0 %v1390
    %1433 = vmatpush.msra.mxu0 %v1389
    %1434 = vmatpush.msra.mxu0 %v1388
    %1435 = vmatpush.msra.mxu0 %v1387
    %1436 = vmatpush.msra.mxu0 %v1386
    %1437 = vmatpush.msra.mxu0 %v1385
    %1438 = vmatpush.msra.mxu0 %v1384
    %1439 = vmatmul.f32.gmra.mxu0 %v1365
    %v1440 = vpop.f32.mrf.mxu0
    %v1441 = vadd.f32 %v1418, %v1440
    %1442 = vmatmul.f32.gmra.mxu0 %v1367
    %v1443 = vpop.f32.mrf.mxu0
    %v1444 = vadd.f32 %v1421, %v1443
    %1445 = vdwg.mxu0
    %v1446 = vadd.f32 %v1088, %v1441
    %v1447 = vadd.f32 %v1089, %v1444
    %s1448 = scalar_lea.vmem %s8, 1
    %v1449 = vld [vmem:[%s1448] sm:$0x1]
    %v1450 = vmul.f32 %v1446, %v1446
    %v1451 = vmul.f32 %v1447, %v1447
    %1452 = vadd.xlane.f32.xlu0 %v1450
    %v1453 = vpop.xlane.xlu0 %1452
    %1454 = vadd.xlane.f32.xlu0 %v1451
    %v1455 = vpop.xlane.xlu0 %1454
    %v1456 = vmul.f32 %v1453, %v176
    %v1457 = vmul.f32 %v1455, %v176
    %v1458 = vadd.f32 %v1456, 1e-06
    %v1459 = vadd.f32 %v1457, 1e-06
    %v1460 = vrsqrt.pop %v1458
    %v1461 = vmul.f32 %v1460, %v1458
    %v1462 = vmul.f32 %v1461, %v1460
    %v1463 = vmul.f32 0.5, %v1462
    %v1464 = vsub.f32 1.5, %v1463
    %v1465 = vmul.f32 %v1460, %v1464
    %vm1466 = vweird.f32 %v1458
    %vm1467 = vweird.f32 %v1460
    %vm1468 = vmor %vm1466, %vm1467
    %v1469 = vsel %vm1468, %v1460, %v1465
    %v1470 = vrsqrt.pop %v1459
    %v1471 = vmul.f32 %v1470, %v1459
    %v1472 = vmul.f32 %v1471, %v1470
    %v1473 = vmul.f32 0.5, %v1472
    %v1474 = vsub.f32 1.5, %v1473
    %v1475 = vmul.f32 %v1470, %v1474
    %vm1476 = vweird.f32 %v1459
    %vm1477 = vweird.f32 %v1470
    %vm1478 = vmor %vm1476, %vm1477
    %v1479 = vsel %vm1478, %v1470, %v1475
    %v1480 = vmul.f32 %v1446, %v1469
    %v1481 = vmul.f32 %v1447, %v1479
    %v1483 = vperm.slane %v1449, 0
    %v1485 = vmul.f32 %v1480, %v1483
    %v1486 = vmul.f32 %v1481, %v1483
    %s1487 = scalar_lea.vmem %s9, 384
    %v1488 = vld [vmem:[%s1487] sm:$0xff]
    %v1489 = vld [vmem:[%s1487 + $0x8] sm:$0xff]
    %v1490 = vld [vmem:[%s1487 + $0x10] sm:$0xff]
    %v1491 = vld [vmem:[%s1487 + $0x18] sm:$0xff]
    %v1492 = vld [vmem:[%s1487 + $0x20] sm:$0xff]
    %v1493 = vld [vmem:[%s1487 + $0x28] sm:$0xff]
    %v1494 = vld [vmem:[%s1487 + $0x30] sm:$0xff]
    %v1495 = vld [vmem:[%s1487 + $0x38] sm:$0xff]
    %v1496 = vld [vmem:[%s1487 + $0x40] sm:$0xff]
    %v1497 = vld [vmem:[%s1487 + $0x48] sm:$0xff]
    %v1498 = vld [vmem:[%s1487 + $0x50] sm:$0xff]
    %v1499 = vld [vmem:[%s1487 + $0x58] sm:$0xff]
    %v1500 = vld [vmem:[%s1487 + $0x60] sm:$0xff]
    %v1501 = vld [vmem:[%s1487 + $0x68] sm:$0xff]
    %v1502 = vld [vmem:[%s1487 + $0x70] sm:$0xff]
    %v1503 = vld [vmem:[%s1487 + $0x78] sm:$0xff]
    %v1504 = vld [vmem:[%s1487 + $0x80] sm:$0xff]
    %v1505 = vld [vmem:[%s1487 + $0x88] sm:$0xff]
    %v1506 = vld [vmem:[%s1487 + $0x90] sm:$0xff]
    %v1507 = vld [vmem:[%s1487 + $0x98] sm:$0xff]
    %v1508 = vld [vmem:[%s1487 + $0xa0] sm:$0xff]
    %v1509 = vld [vmem:[%s1487 + $0xa8] sm:$0xff]
    %v1510 = vld [vmem:[%s1487 + $0xb0] sm:$0xff]
    %v1511 = vld [vmem:[%s1487 + $0xb8] sm:$0xff]
    %v1512 = vld [vmem:[%s1487 + $0xc0] sm:$0xff]
    %v1513 = vld [vmem:[%s1487 + $0xc8] sm:$0xff]
    %v1514 = vld [vmem:[%s1487 + $0xd0] sm:$0xff]
    %v1515 = vld [vmem:[%s1487 + $0xd8] sm:$0xff]
    %v1516 = vld [vmem:[%s1487 + $0xe0] sm:$0xff]
    %v1517 = vld [vmem:[%s1487 + $0xe8] sm:$0xff]
    %v1518 = vld [vmem:[%s1487 + $0xf0] sm:$0xff]
    %v1519 = vld [vmem:[%s1487 + $0xf8] sm:$0xff]
    %v1520 = vld [vmem:[%s1487 + $0x100] sm:$0xff]
    %v1521 = vld [vmem:[%s1487 + $0x108] sm:$0xff]
    %v1522 = vld [vmem:[%s1487 + $0x110] sm:$0xff]
    %v1523 = vld [vmem:[%s1487 + $0x118] sm:$0xff]
    %v1524 = vld [vmem:[%s1487 + $0x120] sm:$0xff]
    %v1525 = vld [vmem:[%s1487 + $0x128] sm:$0xff]
    %v1526 = vld [vmem:[%s1487 + $0x130] sm:$0xff]
    %v1527 = vld [vmem:[%s1487 + $0x138] sm:$0xff]
    %v1528 = vld [vmem:[%s1487 + $0x140] sm:$0xff]
    %v1529 = vld [vmem:[%s1487 + $0x148] sm:$0xff]
    %v1530 = vld [vmem:[%s1487 + $0x150] sm:$0xff]
    %v1531 = vld [vmem:[%s1487 + $0x158] sm:$0xff]
    %v1532 = vld [vmem:[%s1487 + $0x160] sm:$0xff]
    %v1533 = vld [vmem:[%s1487 + $0x168] sm:$0xff]
    %v1534 = vld [vmem:[%s1487 + $0x170] sm:$0xff]
    %v1535 = vld [vmem:[%s1487 + $0x178] sm:$0xff]
    %1536 = vmatpush.msra.mxu0 %v1533
    %1537 = vmatpush.msra.mxu0 %v1530
    %1538 = vmatpush.msra.mxu0 %v1527
    %1539 = vmatpush.msra.mxu0 %v1524
    %1540 = vmatpush.msra.mxu0 %v1521
    %1541 = vmatpush.msra.mxu0 %v1518
    %1542 = vmatpush.msra.mxu0 %v1515
    %1543 = vmatpush.msra.mxu0 %v1512
    %1544 = vmatpush.msra.mxu0 %v1509
    %1545 = vmatpush.msra.mxu0 %v1506
    %1546 = vmatpush.msra.mxu0 %v1503
    %1547 = vmatpush.msra.mxu0 %v1500
    %1548 = vmatpush.msra.mxu0 %v1497
    %1549 = vmatpush.msra.mxu0 %v1494
    %1550 = vmatpush.msra.mxu0 %v1491
    %1551 = vmatpush.msra.mxu0 %v1488
    %1552 = vmatmul.f32.gmra.mxu0 %v1485
    %v1553 = vpop.f32.mrf.mxu0
    %v1554 = vadd.f32 0.0, %v1553
    %1555 = vmatmul.f32.gmra.mxu0 %v1486
    %v1556 = vpop.f32.mrf.mxu0
    %v1557 = vadd.f32 0.0, %v1556
    %1558 = vdwg.mxu0
    %1559 = vmatpush.msra.mxu0 %v1534
    %1560 = vmatpush.msra.mxu0 %v1531
    %1561 = vmatpush.msra.mxu0 %v1528
    %1562 = vmatpush.msra.mxu0 %v1525
    %1563 = vmatpush.msra.mxu0 %v1522
    %1564 = vmatpush.msra.mxu0 %v1519
    %1565 = vmatpush.msra.mxu0 %v1516
    %1566 = vmatpush.msra.mxu0 %v1513
    %1567 = vmatpush.msra.mxu0 %v1510
    %1568 = vmatpush.msra.mxu0 %v1507
    %1569 = vmatpush.msra.mxu0 %v1504
    %1570 = vmatpush.msra.mxu0 %v1501
    %1571 = vmatpush.msra.mxu0 %v1498
    %1572 = vmatpush.msra.mxu0 %v1495
    %1573 = vmatpush.msra.mxu0 %v1492
    %1574 = vmatpush.msra.mxu0 %v1489
    %1575 = vmatmul.f32.gmra.mxu0 %v1485
    %v1576 = vpop.f32.mrf.mxu0
    %v1577 = vadd.f32 0.0, %v1576
    %1578 = vmatmul.f32.gmra.mxu0 %v1486
    %v1579 = vpop.f32.mrf.mxu0
    %v1580 = vadd.f32 0.0, %v1579
    %1581 = vdwg.mxu0
    %1582 = vmatpush.msra.mxu0 %v1535
    %1583 = vmatpush.msra.mxu0 %v1532
    %1584 = vmatpush.msra.mxu0 %v1529
    %1585 = vmatpush.msra.mxu0 %v1526
    %1586 = vmatpush.msra.mxu0 %v1523
    %1587 = vmatpush.msra.mxu0 %v1520
    %1588 = vmatpush.msra.mxu0 %v1517
    %1589 = vmatpush.msra.mxu0 %v1514
    %1590 = vmatpush.msra.mxu0 %v1511
    %1591 = vmatpush.msra.mxu0 %v1508
    %1592 = vmatpush.msra.mxu0 %v1505
    %1593 = vmatpush.msra.mxu0 %v1502
    %1594 = vmatpush.msra.mxu0 %v1499
    %1595 = vmatpush.msra.mxu0 %v1496
    %1596 = vmatpush.msra.mxu0 %v1493
    %1597 = vmatpush.msra.mxu0 %v1490
    %1598 = vmatmul.f32.gmra.mxu0 %v1485
    %v1599 = vpop.f32.mrf.mxu0
    %v1600 = vadd.f32 0.0, %v1599
    %1601 = vmatmul.f32.gmra.mxu0 %v1486
    %v1602 = vpop.f32.mrf.mxu0
    %v1603 = vadd.f32 0.0, %v1602
    %1604 = vdwg.mxu0
    %v1605 = vmul.f32 %v1554, %v138
    %v1606 = vmul.f32 %v1557, %v139
    %1607 = vmatpush.msra.mxu0 %v157
    %1608 = vmatpush.msra.mxu0 %v156
    %1609 = vmatpush.msra.mxu0 %v155
    %1610 = vmatpush.msra.mxu0 %v154
    %1611 = vmatpush.msra.mxu0 %v153
    %1612 = vmatpush.msra.mxu0 %v152
    %1613 = vmatpush.msra.mxu0 %v151
    %1614 = vmatpush.msra.mxu0 %v150
    %1615 = vmatpush.msra.mxu0 %v149
    %1616 = vmatpush.msra.mxu0 %v148
    %1617 = vmatpush.msra.mxu0 %v147
    %1618 = vmatpush.msra.mxu0 %v146
    %1619 = vmatpush.msra.mxu0 %v145
    %1620 = vmatpush.msra.mxu0 %v144
    %1621 = vmatpush.msra.mxu0 %v143
    %1622 = vmatpush.msra.mxu0 %v142
    %1623 = vmatmul.f32.gmra.mxu0 %v1554
    %v1624 = vpop.f32.mrf.mxu0
    %v1625 = vadd.f32 0.0, %v1624
    %1626 = vmatmul.f32.gmra.mxu0 %v1557
    %v1627 = vpop.f32.mrf.mxu0
    %v1628 = vadd.f32 0.0, %v1627
    %1629 = vdwg.mxu0
    %v1630 = vmul.f32 %v1625, %v140
    %v1631 = vmul.f32 %v1628, %v141
    %v1632 = vadd.f32 %v1605, %v1630
    %v1633 = vadd.f32 %v1606, %v1631
    %v1634 = vmul.f32 %v1577, %v138
    %v1635 = vmul.f32 %v1580, %v139
    %1636 = vmatpush.msra.mxu0 %v157
    %1637 = vmatpush.msra.mxu0 %v156
    %1638 = vmatpush.msra.mxu0 %v155
    %1639 = vmatpush.msra.mxu0 %v154
    %1640 = vmatpush.msra.mxu0 %v153
    %1641 = vmatpush.msra.mxu0 %v152
    %1642 = vmatpush.msra.mxu0 %v151
    %1643 = vmatpush.msra.mxu0 %v150
    %1644 = vmatpush.msra.mxu0 %v149
    %1645 = vmatpush.msra.mxu0 %v148
    %1646 = vmatpush.msra.mxu0 %v147
    %1647 = vmatpush.msra.mxu0 %v146
    %1648 = vmatpush.msra.mxu0 %v145
    %1649 = vmatpush.msra.mxu0 %v144
    %1650 = vmatpush.msra.mxu0 %v143
    %1651 = vmatpush.msra.mxu0 %v142
    %1652 = vmatmul.f32.gmra.mxu0 %v1577
    %v1653 = vpop.f32.mrf.mxu0
    %v1654 = vadd.f32 0.0, %v1653
    %1655 = vmatmul.f32.gmra.mxu0 %v1580
    %v1656 = vpop.f32.mrf.mxu0
    %v1657 = vadd.f32 0.0, %v1656
    %1658 = vdwg.mxu0
    %v1659 = vmul.f32 %v1654, %v140
    %v1660 = vmul.f32 %v1657, %v141
    %v1661 = vadd.f32 %v1634, %v1659
    %v1662 = vadd.f32 %v1635, %v1660
    %v1664 = vsel %vm383, %v1632, 0
    %v1667 = vsel %vm383, %v1661, 0
    %1669 = vmatpush.xpose.msra.mxu0 0.0
    %1670 = vmatpush.xpose.msra.mxu0 0.0
    %1671 = vmatpush.xpose.msra.mxu0 0.0
    %1672 = vmatpush.xpose.msra.mxu0 0.0
    %1673 = vmatpush.xpose.msra.mxu0 0.0
    %1674 = vmatpush.xpose.msra.mxu0 0.0
    %1675 = vmatpush.xpose.msra.mxu0 0.0
    %1676 = vmatpush.xpose.msra.mxu0 0.0
    %1677 = vmatpush.xpose.msra.mxu0 0.0
    %1678 = vmatpush.xpose.msra.mxu0 0.0
    %1679 = vmatpush.xpose.msra.mxu0 0.0
    %1680 = vmatpush.xpose.msra.mxu0 0.0
    %1681 = vmatpush.xpose.msra.mxu0 0.0
    %1682 = vmatpush.xpose.msra.mxu0 0.0
    %1683 = vmatpush.xpose.msra.mxu0 0.0
    %1684 = vmatpush.xpose.msra.mxu0 %v1667
    %1685 = vmatmul.f32.gmra.mxu0 %v1664
    %v1686 = vpop.f32.mrf.mxu0
    %v1687 = vadd.f32 0.0, %v1686
    %1688 = vdwg.mxu0
    %v1689 = vmul.f32 %v1687, 0.17677669
    %v1690 = vsel %vm162, %v1689, -1e+30
    %v1691 = vsel %vm412, %v1690, -inf
    %1692 = vmax.xlane.f32.xlu0 %v1691
    %v1693 = vpop.xlane.xlu0 %1692
    %v1694 = vsub.f32 %v1690, %v1693
    %v1695 = vmul.f32 %v1694, 1.442695
    %v1696 = vpow.pop %v1695
    %v1697 = vsel %vm412, %v1696, 0.0
    %1698 = vadd.xlane.f32.xlu0 %v1697
    %v1699 = vpop.xlane.xlu0 %1698
    %v1700 = vrcp.pop %v1699
    %v1701 = vmul.f32 %v1699, %v1700
    %v1702 = vsub.f32 1.0, %v1701
    %v1703 = vmul.f32 %v1700, %v1702
    %v1704 = vadd.f32 %v1700, %v1703
    %vm1705 = vweird.f32 %v1699
    %vm1706 = vweird.f32 %v1700
    %vm1707 = vmor %vm1705, %vm1706
    %v1708 = vsel %vm1707, %v1700, %v1704
    %v1709 = vand.u32 2147483647, %v1699
    %vm1710 = vcmp.eq.f32.partialorder %v1709, 8.507059e+37
    %v1711 = vand.u32 %v1699, 2147483648
    %v1712 = vor.u32 1.1754944e-38, %v1711
    %v1713 = vsel %vm1710, %v1712, %v1708
    %v1714 = vmul.f32 %v1696, %v1713
    %v1716 = vsel %vm412, %v1714, 0
    %1718 = vmatpush.msra.mxu0 0.0
    %1719 = vmatpush.msra.mxu0 0.0
    %1720 = vmatpush.msra.mxu0 0.0
    %1721 = vmatpush.msra.mxu0 0.0
    %1722 = vmatpush.msra.mxu0 0.0
    %1723 = vmatpush.msra.mxu0 0.0
    %1724 = vmatpush.msra.mxu0 0.0
    %1725 = vmatpush.msra.mxu0 0.0
    %1726 = vmatpush.msra.mxu0 0.0
    %1727 = vmatpush.msra.mxu0 0.0
    %1728 = vmatpush.msra.mxu0 0.0
    %1729 = vmatpush.msra.mxu0 0.0
    %1730 = vmatpush.msra.mxu0 0.0
    %1731 = vmatpush.msra.mxu0 0.0
    %1732 = vmatpush.msra.mxu0 0.0
    %1733 = vmatpush.msra.mxu0 %v1600
    %1734 = vmatmul.f32.gmra.mxu0 %v1716
    %v1735 = vpop.f32.mrf.mxu0
    %v1736 = vadd.f32 0.0, %v1735
    %1737 = vdwg.mxu0
    %1738 = vrot.lane.b32.xlu0 %v1632, 96
    %v1739 = vpop.permute.xlu0 %1738
    %1740 = vrot.lane.b32.xlu0 %v1661, 96
    %v1741 = vpop.permute.xlu0 %1740
    %v1742 = vsel %vm383, %v1739, 0
    %v1744 = vsel %vm383, %v1741, 0
    %1746 = vmatpush.xpose.msra.mxu0 0.0
    %1747 = vmatpush.xpose.msra.mxu0 0.0
    %1748 = vmatpush.xpose.msra.mxu0 0.0
    %1749 = vmatpush.xpose.msra.mxu0 0.0
    %1750 = vmatpush.xpose.msra.mxu0 0.0
    %1751 = vmatpush.xpose.msra.mxu0 0.0
    %1752 = vmatpush.xpose.msra.mxu0 0.0
    %1753 = vmatpush.xpose.msra.mxu0 0.0
    %1754 = vmatpush.xpose.msra.mxu0 0.0
    %1755 = vmatpush.xpose.msra.mxu0 0.0
    %1756 = vmatpush.xpose.msra.mxu0 0.0
    %1757 = vmatpush.xpose.msra.mxu0 0.0
    %1758 = vmatpush.xpose.msra.mxu0 0.0
    %1759 = vmatpush.xpose.msra.mxu0 0.0
    %1760 = vmatpush.xpose.msra.mxu0 0.0
    %1761 = vmatpush.xpose.msra.mxu0 %v1744
    %1762 = vmatmul.f32.gmra.mxu0 %v1742
    %v1763 = vpop.f32.mrf.mxu0
    %v1764 = vadd.f32 0.0, %v1763
    %1765 = vdwg.mxu0
    %v1766 = vmul.f32 %v1764, 0.17677669
    %v1767 = vsel %vm162, %v1766, -1e+30
    %v1768 = vsel %vm412, %v1767, -inf
    %1769 = vmax.xlane.f32.xlu0 %v1768
    %v1770 = vpop.xlane.xlu0 %1769
    %v1771 = vsub.f32 %v1767, %v1770
    %v1772 = vmul.f32 %v1771, 1.442695
    %v1773 = vpow.pop %v1772
    %v1774 = vsel %vm412, %v1773, 0.0
    %1775 = vadd.xlane.f32.xlu0 %v1774
    %v1776 = vpop.xlane.xlu0 %1775
    %v1777 = vrcp.pop %v1776
    %v1778 = vmul.f32 %v1776, %v1777
    %v1779 = vsub.f32 1.0, %v1778
    %v1780 = vmul.f32 %v1777, %v1779
    %v1781 = vadd.f32 %v1777, %v1780
    %vm1782 = vweird.f32 %v1776
    %vm1783 = vweird.f32 %v1777
    %vm1784 = vmor %vm1782, %vm1783
    %v1785 = vsel %vm1784, %v1777, %v1781
    %v1786 = vand.u32 2147483647, %v1776
    %vm1787 = vcmp.eq.f32.partialorder %v1786, 8.507059e+37
    %v1788 = vand.u32 %v1776, 2147483648
    %v1789 = vor.u32 1.1754944e-38, %v1788
    %v1790 = vsel %vm1787, %v1789, %v1785
    %v1791 = vmul.f32 %v1773, %v1790
    %1793 = vrot.lane.b32.xlu0 %v1600, 96
    %v1794 = vpop.permute.xlu0 %1793
    %v1797 = vsel %vm412, %v1791, 0
    %1799 = vmatpush.msra.mxu0 0.0
    %1800 = vmatpush.msra.mxu0 0.0
    %1801 = vmatpush.msra.mxu0 0.0
    %1802 = vmatpush.msra.mxu0 0.0
    %1803 = vmatpush.msra.mxu0 0.0
    %1804 = vmatpush.msra.mxu0 0.0
    %1805 = vmatpush.msra.mxu0 0.0
    %1806 = vmatpush.msra.mxu0 0.0
    %1807 = vmatpush.msra.mxu0 0.0
    %1808 = vmatpush.msra.mxu0 0.0
    %1809 = vmatpush.msra.mxu0 0.0
    %1810 = vmatpush.msra.mxu0 0.0
    %1811 = vmatpush.msra.mxu0 0.0
    %1812 = vmatpush.msra.mxu0 0.0
    %1813 = vmatpush.msra.mxu0 0.0
    %1814 = vmatpush.msra.mxu0 %v1794
    %1815 = vmatmul.f32.gmra.mxu0 %v1797
    %v1816 = vpop.f32.mrf.mxu0
    %v1817 = vadd.f32 0.0, %v1816
    %1818 = vdwg.mxu0
    %1819 = vrot.lane.b32.xlu0 %v1632, 64
    %v1820 = vpop.permute.xlu0 %1819
    %1821 = vrot.lane.b32.xlu0 %v1661, 64
    %v1822 = vpop.permute.xlu0 %1821
    %v1823 = vsel %vm383, %v1820, 0
    %v1825 = vsel %vm383, %v1822, 0
    %1827 = vmatpush.xpose.msra.mxu0 0.0
    %1828 = vmatpush.xpose.msra.mxu0 0.0
    %1829 = vmatpush.xpose.msra.mxu0 0.0
    %1830 = vmatpush.xpose.msra.mxu0 0.0
    %1831 = vmatpush.xpose.msra.mxu0 0.0
    %1832 = vmatpush.xpose.msra.mxu0 0.0
    %1833 = vmatpush.xpose.msra.mxu0 0.0
    %1834 = vmatpush.xpose.msra.mxu0 0.0
    %1835 = vmatpush.xpose.msra.mxu0 0.0
    %1836 = vmatpush.xpose.msra.mxu0 0.0
    %1837 = vmatpush.xpose.msra.mxu0 0.0
    %1838 = vmatpush.xpose.msra.mxu0 0.0
    %1839 = vmatpush.xpose.msra.mxu0 0.0
    %1840 = vmatpush.xpose.msra.mxu0 0.0
    %1841 = vmatpush.xpose.msra.mxu0 0.0
    %1842 = vmatpush.xpose.msra.mxu0 %v1825
    %1843 = vmatmul.f32.gmra.mxu0 %v1823
    %v1844 = vpop.f32.mrf.mxu0
    %v1845 = vadd.f32 0.0, %v1844
    %1846 = vdwg.mxu0
    %v1847 = vmul.f32 %v1845, 0.17677669
    %v1848 = vsel %vm162, %v1847, -1e+30
    %v1849 = vsel %vm412, %v1848, -inf
    %1850 = vmax.xlane.f32.xlu0 %v1849
    %v1851 = vpop.xlane.xlu0 %1850
    %v1852 = vsub.f32 %v1848, %v1851
    %v1853 = vmul.f32 %v1852, 1.442695
    %v1854 = vpow.pop %v1853
    %v1855 = vsel %vm412, %v1854, 0.0
    %1856 = vadd.xlane.f32.xlu0 %v1855
    %v1857 = vpop.xlane.xlu0 %1856
    %v1858 = vrcp.pop %v1857
    %v1859 = vmul.f32 %v1857, %v1858
    %v1860 = vsub.f32 1.0, %v1859
    %v1861 = vmul.f32 %v1858, %v1860
    %v1862 = vadd.f32 %v1858, %v1861
    %vm1863 = vweird.f32 %v1857
    %vm1864 = vweird.f32 %v1858
    %vm1865 = vmor %vm1863, %vm1864
    %v1866 = vsel %vm1865, %v1858, %v1862
    %v1867 = vand.u32 2147483647, %v1857
    %vm1868 = vcmp.eq.f32.partialorder %v1867, 8.507059e+37
    %v1869 = vand.u32 %v1857, 2147483648
    %v1870 = vor.u32 1.1754944e-38, %v1869
    %v1871 = vsel %vm1868, %v1870, %v1866
    %v1872 = vmul.f32 %v1854, %v1871
    %1873 = vrot.lane.b32.xlu0 %v1600, 64
    %v1874 = vpop.permute.xlu0 %1873
    %v1877 = vsel %vm412, %v1872, 0
    %1879 = vmatpush.msra.mxu0 0.0
    %1880 = vmatpush.msra.mxu0 0.0
    %1881 = vmatpush.msra.mxu0 0.0
    %1882 = vmatpush.msra.mxu0 0.0
    %1883 = vmatpush.msra.mxu0 0.0
    %1884 = vmatpush.msra.mxu0 0.0
    %1885 = vmatpush.msra.mxu0 0.0
    %1886 = vmatpush.msra.mxu0 0.0
    %1887 = vmatpush.msra.mxu0 0.0
    %1888 = vmatpush.msra.mxu0 0.0
    %1889 = vmatpush.msra.mxu0 0.0
    %1890 = vmatpush.msra.mxu0 0.0
    %1891 = vmatpush.msra.mxu0 0.0
    %1892 = vmatpush.msra.mxu0 0.0
    %1893 = vmatpush.msra.mxu0 0.0
    %1894 = vmatpush.msra.mxu0 %v1874
    %1895 = vmatmul.f32.gmra.mxu0 %v1877
    %v1896 = vpop.f32.mrf.mxu0
    %v1897 = vadd.f32 0.0, %v1896
    %1898 = vdwg.mxu0
    %1899 = vrot.lane.b32.xlu0 %v1632, 32
    %v1900 = vpop.permute.xlu0 %1899
    %1901 = vrot.lane.b32.xlu0 %v1661, 32
    %v1902 = vpop.permute.xlu0 %1901
    %v1903 = vsel %vm383, %v1900, 0
    %v1905 = vsel %vm383, %v1902, 0
    %1907 = vmatpush.xpose.msra.mxu0 0.0
    %1908 = vmatpush.xpose.msra.mxu0 0.0
    %1909 = vmatpush.xpose.msra.mxu0 0.0
    %1910 = vmatpush.xpose.msra.mxu0 0.0
    %1911 = vmatpush.xpose.msra.mxu0 0.0
    %1912 = vmatpush.xpose.msra.mxu0 0.0
    %1913 = vmatpush.xpose.msra.mxu0 0.0
    %1914 = vmatpush.xpose.msra.mxu0 0.0
    %1915 = vmatpush.xpose.msra.mxu0 0.0
    %1916 = vmatpush.xpose.msra.mxu0 0.0
    %1917 = vmatpush.xpose.msra.mxu0 0.0
    %1918 = vmatpush.xpose.msra.mxu0 0.0
    %1919 = vmatpush.xpose.msra.mxu0 0.0
    %1920 = vmatpush.xpose.msra.mxu0 0.0
    %1921 = vmatpush.xpose.msra.mxu0 0.0
    %1922 = vmatpush.xpose.msra.mxu0 %v1905
    %1923 = vmatmul.f32.gmra.mxu0 %v1903
    %v1924 = vpop.f32.mrf.mxu0
    %v1925 = vadd.f32 0.0, %v1924
    %1926 = vdwg.mxu0
    %v1927 = vmul.f32 %v1925, 0.17677669
    %v1928 = vsel %vm162, %v1927, -1e+30
    %v1929 = vsel %vm412, %v1928, -inf
    %1930 = vmax.xlane.f32.xlu0 %v1929
    %v1931 = vpop.xlane.xlu0 %1930
    %v1932 = vsub.f32 %v1928, %v1931
    %v1933 = vmul.f32 %v1932, 1.442695
    %v1934 = vpow.pop %v1933
    %v1935 = vsel %vm412, %v1934, 0.0
    %1936 = vadd.xlane.f32.xlu0 %v1935
    %v1937 = vpop.xlane.xlu0 %1936
    %v1938 = vrcp.pop %v1937
    %v1939 = vmul.f32 %v1937, %v1938
    %v1940 = vsub.f32 1.0, %v1939
    %v1941 = vmul.f32 %v1938, %v1940
    %v1942 = vadd.f32 %v1938, %v1941
    %vm1943 = vweird.f32 %v1937
    %vm1944 = vweird.f32 %v1938
    %vm1945 = vmor %vm1943, %vm1944
    %v1946 = vsel %vm1945, %v1938, %v1942
    %v1947 = vand.u32 2147483647, %v1937
    %vm1948 = vcmp.eq.f32.partialorder %v1947, 8.507059e+37
    %v1949 = vand.u32 %v1937, 2147483648
    %v1950 = vor.u32 1.1754944e-38, %v1949
    %v1951 = vsel %vm1948, %v1950, %v1946
    %v1952 = vmul.f32 %v1934, %v1951
    %1953 = vrot.lane.b32.xlu0 %v1600, 32
    %v1954 = vpop.permute.xlu0 %1953
    %v1957 = vsel %vm412, %v1952, 0
    %1959 = vmatpush.msra.mxu0 0.0
    %1960 = vmatpush.msra.mxu0 0.0
    %1961 = vmatpush.msra.mxu0 0.0
    %1962 = vmatpush.msra.mxu0 0.0
    %1963 = vmatpush.msra.mxu0 0.0
    %1964 = vmatpush.msra.mxu0 0.0
    %1965 = vmatpush.msra.mxu0 0.0
    %1966 = vmatpush.msra.mxu0 0.0
    %1967 = vmatpush.msra.mxu0 0.0
    %1968 = vmatpush.msra.mxu0 0.0
    %1969 = vmatpush.msra.mxu0 0.0
    %1970 = vmatpush.msra.mxu0 0.0
    %1971 = vmatpush.msra.mxu0 0.0
    %1972 = vmatpush.msra.mxu0 0.0
    %1973 = vmatpush.msra.mxu0 0.0
    %1974 = vmatpush.msra.mxu0 %v1954
    %1975 = vmatmul.f32.gmra.mxu0 %v1957
    %v1976 = vpop.f32.mrf.mxu0
    %v1977 = vadd.f32 0.0, %v1976
    %1978 = vdwg.mxu0
    %1980 = vrot.lane.b32.xlu0 %v1817, 32
    %v1981 = vpop.permute.xlu0 %1980
    %1984 = vrot.lane.b32.xlu0 %v1897, 64
    %v1985 = vpop.permute.xlu0 %1984
    %1988 = vrot.lane.b32.xlu0 %v1977, 96
    %v1989 = vpop.permute.xlu0 %1988
    %v1991 = vsel %vm383, %v1736, %v1981
    %v1992 = vsel %vm714, %v1991, %v1985
    %v1993 = vsel %vm716, %v1992, %v1989
    %v1995 = vsel %vm383, %v1633, 0
    %v1998 = vsel %vm383, %v1662, 0
    %2000 = vmatpush.xpose.msra.mxu0 0.0
    %2001 = vmatpush.xpose.msra.mxu0 0.0
    %2002 = vmatpush.xpose.msra.mxu0 0.0
    %2003 = vmatpush.xpose.msra.mxu0 0.0
    %2004 = vmatpush.xpose.msra.mxu0 0.0
    %2005 = vmatpush.xpose.msra.mxu0 0.0
    %2006 = vmatpush.xpose.msra.mxu0 0.0
    %2007 = vmatpush.xpose.msra.mxu0 0.0
    %2008 = vmatpush.xpose.msra.mxu0 0.0
    %2009 = vmatpush.xpose.msra.mxu0 0.0
    %2010 = vmatpush.xpose.msra.mxu0 0.0
    %2011 = vmatpush.xpose.msra.mxu0 0.0
    %2012 = vmatpush.xpose.msra.mxu0 0.0
    %2013 = vmatpush.xpose.msra.mxu0 0.0
    %2014 = vmatpush.xpose.msra.mxu0 0.0
    %2015 = vmatpush.xpose.msra.mxu0 %v1998
    %2016 = vmatmul.f32.gmra.mxu0 %v1995
    %v2017 = vpop.f32.mrf.mxu0
    %v2018 = vadd.f32 0.0, %v2017
    %2019 = vdwg.mxu0
    %v2020 = vmul.f32 %v2018, 0.17677669
    %v2021 = vsel %vm162, %v2020, -1e+30
    %v2022 = vsel %vm412, %v2021, -inf
    %2023 = vmax.xlane.f32.xlu0 %v2022
    %v2024 = vpop.xlane.xlu0 %2023
    %v2025 = vsub.f32 %v2021, %v2024
    %v2026 = vmul.f32 %v2025, 1.442695
    %v2027 = vpow.pop %v2026
    %v2028 = vsel %vm412, %v2027, 0.0
    %2029 = vadd.xlane.f32.xlu0 %v2028
    %v2030 = vpop.xlane.xlu0 %2029
    %v2031 = vrcp.pop %v2030
    %v2032 = vmul.f32 %v2030, %v2031
    %v2033 = vsub.f32 1.0, %v2032
    %v2034 = vmul.f32 %v2031, %v2033
    %v2035 = vadd.f32 %v2031, %v2034
    %vm2036 = vweird.f32 %v2030
    %vm2037 = vweird.f32 %v2031
    %vm2038 = vmor %vm2036, %vm2037
    %v2039 = vsel %vm2038, %v2031, %v2035
    %v2040 = vand.u32 2147483647, %v2030
    %vm2041 = vcmp.eq.f32.partialorder %v2040, 8.507059e+37
    %v2042 = vand.u32 %v2030, 2147483648
    %v2043 = vor.u32 1.1754944e-38, %v2042
    %v2044 = vsel %vm2041, %v2043, %v2039
    %v2045 = vmul.f32 %v2027, %v2044
    %v2047 = vsel %vm412, %v2045, 0
    %2049 = vmatpush.msra.mxu0 0.0
    %2050 = vmatpush.msra.mxu0 0.0
    %2051 = vmatpush.msra.mxu0 0.0
    %2052 = vmatpush.msra.mxu0 0.0
    %2053 = vmatpush.msra.mxu0 0.0
    %2054 = vmatpush.msra.mxu0 0.0
    %2055 = vmatpush.msra.mxu0 0.0
    %2056 = vmatpush.msra.mxu0 0.0
    %2057 = vmatpush.msra.mxu0 0.0
    %2058 = vmatpush.msra.mxu0 0.0
    %2059 = vmatpush.msra.mxu0 0.0
    %2060 = vmatpush.msra.mxu0 0.0
    %2061 = vmatpush.msra.mxu0 0.0
    %2062 = vmatpush.msra.mxu0 0.0
    %2063 = vmatpush.msra.mxu0 0.0
    %2064 = vmatpush.msra.mxu0 %v1603
    %2065 = vmatmul.f32.gmra.mxu0 %v2047
    %v2066 = vpop.f32.mrf.mxu0
    %v2067 = vadd.f32 0.0, %v2066
    %2068 = vdwg.mxu0
    %2069 = vrot.lane.b32.xlu0 %v1633, 96
    %v2070 = vpop.permute.xlu0 %2069
    %2071 = vrot.lane.b32.xlu0 %v1662, 96
    %v2072 = vpop.permute.xlu0 %2071
    %v2073 = vsel %vm383, %v2070, 0
    %v2075 = vsel %vm383, %v2072, 0
    %2077 = vmatpush.xpose.msra.mxu0 0.0
    %2078 = vmatpush.xpose.msra.mxu0 0.0
    %2079 = vmatpush.xpose.msra.mxu0 0.0
    %2080 = vmatpush.xpose.msra.mxu0 0.0
    %2081 = vmatpush.xpose.msra.mxu0 0.0
    %2082 = vmatpush.xpose.msra.mxu0 0.0
    %2083 = vmatpush.xpose.msra.mxu0 0.0
    %2084 = vmatpush.xpose.msra.mxu0 0.0
    %2085 = vmatpush.xpose.msra.mxu0 0.0
    %2086 = vmatpush.xpose.msra.mxu0 0.0
    %2087 = vmatpush.xpose.msra.mxu0 0.0
    %2088 = vmatpush.xpose.msra.mxu0 0.0
    %2089 = vmatpush.xpose.msra.mxu0 0.0
    %2090 = vmatpush.xpose.msra.mxu0 0.0
    %2091 = vmatpush.xpose.msra.mxu0 0.0
    %2092 = vmatpush.xpose.msra.mxu0 %v2075
    %2093 = vmatmul.f32.gmra.mxu0 %v2073
    %v2094 = vpop.f32.mrf.mxu0
    %v2095 = vadd.f32 0.0, %v2094
    %2096 = vdwg.mxu0
    %v2097 = vmul.f32 %v2095, 0.17677669
    %v2098 = vsel %vm162, %v2097, -1e+30
    %v2099 = vsel %vm412, %v2098, -inf
    %2100 = vmax.xlane.f32.xlu0 %v2099
    %v2101 = vpop.xlane.xlu0 %2100
    %v2102 = vsub.f32 %v2098, %v2101
    %v2103 = vmul.f32 %v2102, 1.442695
    %v2104 = vpow.pop %v2103
    %v2105 = vsel %vm412, %v2104, 0.0
    %2106 = vadd.xlane.f32.xlu0 %v2105
    %v2107 = vpop.xlane.xlu0 %2106
    %v2108 = vrcp.pop %v2107
    %v2109 = vmul.f32 %v2107, %v2108
    %v2110 = vsub.f32 1.0, %v2109
    %v2111 = vmul.f32 %v2108, %v2110
    %v2112 = vadd.f32 %v2108, %v2111
    %vm2113 = vweird.f32 %v2107
    %vm2114 = vweird.f32 %v2108
    %vm2115 = vmor %vm2113, %vm2114
    %v2116 = vsel %vm2115, %v2108, %v2112
    %v2117 = vand.u32 2147483647, %v2107
    %vm2118 = vcmp.eq.f32.partialorder %v2117, 8.507059e+37
    %v2119 = vand.u32 %v2107, 2147483648
    %v2120 = vor.u32 1.1754944e-38, %v2119
    %v2121 = vsel %vm2118, %v2120, %v2116
    %v2122 = vmul.f32 %v2104, %v2121
    %2124 = vrot.lane.b32.xlu0 %v1603, 96
    %v2125 = vpop.permute.xlu0 %2124
    %v2128 = vsel %vm412, %v2122, 0
    %2130 = vmatpush.msra.mxu0 0.0
    %2131 = vmatpush.msra.mxu0 0.0
    %2132 = vmatpush.msra.mxu0 0.0
    %2133 = vmatpush.msra.mxu0 0.0
    %2134 = vmatpush.msra.mxu0 0.0
    %2135 = vmatpush.msra.mxu0 0.0
    %2136 = vmatpush.msra.mxu0 0.0
    %2137 = vmatpush.msra.mxu0 0.0
    %2138 = vmatpush.msra.mxu0 0.0
    %2139 = vmatpush.msra.mxu0 0.0
    %2140 = vmatpush.msra.mxu0 0.0
    %2141 = vmatpush.msra.mxu0 0.0
    %2142 = vmatpush.msra.mxu0 0.0
    %2143 = vmatpush.msra.mxu0 0.0
    %2144 = vmatpush.msra.mxu0 0.0
    %2145 = vmatpush.msra.mxu0 %v2125
    %2146 = vmatmul.f32.gmra.mxu0 %v2128
    %v2147 = vpop.f32.mrf.mxu0
    %v2148 = vadd.f32 0.0, %v2147
    %2149 = vdwg.mxu0
    %2150 = vrot.lane.b32.xlu0 %v1633, 64
    %v2151 = vpop.permute.xlu0 %2150
    %2152 = vrot.lane.b32.xlu0 %v1662, 64
    %v2153 = vpop.permute.xlu0 %2152
    %v2154 = vsel %vm383, %v2151, 0
    %v2156 = vsel %vm383, %v2153, 0
    %2158 = vmatpush.xpose.msra.mxu0 0.0
    %2159 = vmatpush.xpose.msra.mxu0 0.0
    %2160 = vmatpush.xpose.msra.mxu0 0.0
    %2161 = vmatpush.xpose.msra.mxu0 0.0
    %2162 = vmatpush.xpose.msra.mxu0 0.0
    %2163 = vmatpush.xpose.msra.mxu0 0.0
    %2164 = vmatpush.xpose.msra.mxu0 0.0
    %2165 = vmatpush.xpose.msra.mxu0 0.0
    %2166 = vmatpush.xpose.msra.mxu0 0.0
    %2167 = vmatpush.xpose.msra.mxu0 0.0
    %2168 = vmatpush.xpose.msra.mxu0 0.0
    %2169 = vmatpush.xpose.msra.mxu0 0.0
    %2170 = vmatpush.xpose.msra.mxu0 0.0
    %2171 = vmatpush.xpose.msra.mxu0 0.0
    %2172 = vmatpush.xpose.msra.mxu0 0.0
    %2173 = vmatpush.xpose.msra.mxu0 %v2156
    %2174 = vmatmul.f32.gmra.mxu0 %v2154
    %v2175 = vpop.f32.mrf.mxu0
    %v2176 = vadd.f32 0.0, %v2175
    %2177 = vdwg.mxu0
    %v2178 = vmul.f32 %v2176, 0.17677669
    %v2179 = vsel %vm162, %v2178, -1e+30
    %v2180 = vsel %vm412, %v2179, -inf
    %2181 = vmax.xlane.f32.xlu0 %v2180
    %v2182 = vpop.xlane.xlu0 %2181
    %v2183 = vsub.f32 %v2179, %v2182
    %v2184 = vmul.f32 %v2183, 1.442695
    %v2185 = vpow.pop %v2184
    %v2186 = vsel %vm412, %v2185, 0.0
    %2187 = vadd.xlane.f32.xlu0 %v2186
    %v2188 = vpop.xlane.xlu0 %2187
    %v2189 = vrcp.pop %v2188
    %v2190 = vmul.f32 %v2188, %v2189
    %v2191 = vsub.f32 1.0, %v2190
    %v2192 = vmul.f32 %v2189, %v2191
    %v2193 = vadd.f32 %v2189, %v2192
    %vm2194 = vweird.f32 %v2188
    %vm2195 = vweird.f32 %v2189
    %vm2196 = vmor %vm2194, %vm2195
    %v2197 = vsel %vm2196, %v2189, %v2193
    %v2198 = vand.u32 2147483647, %v2188
    %vm2199 = vcmp.eq.f32.partialorder %v2198, 8.507059e+37
    %v2200 = vand.u32 %v2188, 2147483648
    %v2201 = vor.u32 1.1754944e-38, %v2200
    %v2202 = vsel %vm2199, %v2201, %v2197
    %v2203 = vmul.f32 %v2185, %v2202
    %2204 = vrot.lane.b32.xlu0 %v1603, 64
    %v2205 = vpop.permute.xlu0 %2204
    %v2208 = vsel %vm412, %v2203, 0
    %2210 = vmatpush.msra.mxu0 0.0
    %2211 = vmatpush.msra.mxu0 0.0
    %2212 = vmatpush.msra.mxu0 0.0
    %2213 = vmatpush.msra.mxu0 0.0
    %2214 = vmatpush.msra.mxu0 0.0
    %2215 = vmatpush.msra.mxu0 0.0
    %2216 = vmatpush.msra.mxu0 0.0
    %2217 = vmatpush.msra.mxu0 0.0
    %2218 = vmatpush.msra.mxu0 0.0
    %2219 = vmatpush.msra.mxu0 0.0
    %2220 = vmatpush.msra.mxu0 0.0
    %2221 = vmatpush.msra.mxu0 0.0
    %2222 = vmatpush.msra.mxu0 0.0
    %2223 = vmatpush.msra.mxu0 0.0
    %2224 = vmatpush.msra.mxu0 0.0
    %2225 = vmatpush.msra.mxu0 %v2205
    %2226 = vmatmul.f32.gmra.mxu0 %v2208
    %v2227 = vpop.f32.mrf.mxu0
    %v2228 = vadd.f32 0.0, %v2227
    %2229 = vdwg.mxu0
    %2230 = vrot.lane.b32.xlu0 %v1633, 32
    %v2231 = vpop.permute.xlu0 %2230
    %2232 = vrot.lane.b32.xlu0 %v1662, 32
    %v2233 = vpop.permute.xlu0 %2232
    %v2234 = vsel %vm383, %v2231, 0
    %v2236 = vsel %vm383, %v2233, 0
    %2238 = vmatpush.xpose.msra.mxu0 0.0
    %2239 = vmatpush.xpose.msra.mxu0 0.0
    %2240 = vmatpush.xpose.msra.mxu0 0.0
    %2241 = vmatpush.xpose.msra.mxu0 0.0
    %2242 = vmatpush.xpose.msra.mxu0 0.0
    %2243 = vmatpush.xpose.msra.mxu0 0.0
    %2244 = vmatpush.xpose.msra.mxu0 0.0
    %2245 = vmatpush.xpose.msra.mxu0 0.0
    %2246 = vmatpush.xpose.msra.mxu0 0.0
    %2247 = vmatpush.xpose.msra.mxu0 0.0
    %2248 = vmatpush.xpose.msra.mxu0 0.0
    %2249 = vmatpush.xpose.msra.mxu0 0.0
    %2250 = vmatpush.xpose.msra.mxu0 0.0
    %2251 = vmatpush.xpose.msra.mxu0 0.0
    %2252 = vmatpush.xpose.msra.mxu0 0.0
    %2253 = vmatpush.xpose.msra.mxu0 %v2236
    %2254 = vmatmul.f32.gmra.mxu0 %v2234
    %v2255 = vpop.f32.mrf.mxu0
    %v2256 = vadd.f32 0.0, %v2255
    %2257 = vdwg.mxu0
    %v2258 = vmul.f32 %v2256, 0.17677669
    %v2259 = vsel %vm162, %v2258, -1e+30
    %v2260 = vsel %vm412, %v2259, -inf
    %2261 = vmax.xlane.f32.xlu0 %v2260
    %v2262 = vpop.xlane.xlu0 %2261
    %v2263 = vsub.f32 %v2259, %v2262
    %v2264 = vmul.f32 %v2263, 1.442695
    %v2265 = vpow.pop %v2264
    %v2266 = vsel %vm412, %v2265, 0.0
    %2267 = vadd.xlane.f32.xlu0 %v2266
    %v2268 = vpop.xlane.xlu0 %2267
    %v2269 = vrcp.pop %v2268
    %v2270 = vmul.f32 %v2268, %v2269
    %v2271 = vsub.f32 1.0, %v2270
    %v2272 = vmul.f32 %v2269, %v2271
    %v2273 = vadd.f32 %v2269, %v2272
    %vm2274 = vweird.f32 %v2268
    %vm2275 = vweird.f32 %v2269
    %vm2276 = vmor %vm2274, %vm2275
    %v2277 = vsel %vm2276, %v2269, %v2273
    %v2278 = vand.u32 2147483647, %v2268
    %vm2279 = vcmp.eq.f32.partialorder %v2278, 8.507059e+37
    %v2280 = vand.u32 %v2268, 2147483648
    %v2281 = vor.u32 1.1754944e-38, %v2280
    %v2282 = vsel %vm2279, %v2281, %v2277
    %v2283 = vmul.f32 %v2265, %v2282
    %2284 = vrot.lane.b32.xlu0 %v1603, 32
    %v2285 = vpop.permute.xlu0 %2284
    %v2288 = vsel %vm412, %v2283, 0
    %2290 = vmatpush.msra.mxu0 0.0
    %2291 = vmatpush.msra.mxu0 0.0
    %2292 = vmatpush.msra.mxu0 0.0
    %2293 = vmatpush.msra.mxu0 0.0
    %2294 = vmatpush.msra.mxu0 0.0
    %2295 = vmatpush.msra.mxu0 0.0
    %2296 = vmatpush.msra.mxu0 0.0
    %2297 = vmatpush.msra.mxu0 0.0
    %2298 = vmatpush.msra.mxu0 0.0
    %2299 = vmatpush.msra.mxu0 0.0
    %2300 = vmatpush.msra.mxu0 0.0
    %2301 = vmatpush.msra.mxu0 0.0
    %2302 = vmatpush.msra.mxu0 0.0
    %2303 = vmatpush.msra.mxu0 0.0
    %2304 = vmatpush.msra.mxu0 0.0
    %2305 = vmatpush.msra.mxu0 %v2285
    %2306 = vmatmul.f32.gmra.mxu0 %v2288
    %v2307 = vpop.f32.mrf.mxu0
    %v2308 = vadd.f32 0.0, %v2307
    %2309 = vdwg.mxu0
    %2311 = vrot.lane.b32.xlu0 %v2148, 32
    %v2312 = vpop.permute.xlu0 %2311
    %2315 = vrot.lane.b32.xlu0 %v2228, 64
    %v2316 = vpop.permute.xlu0 %2315
    %2319 = vrot.lane.b32.xlu0 %v2308, 96
    %v2320 = vpop.permute.xlu0 %2319
    %v2322 = vsel %vm383, %v2067, %v2312
    %v2323 = vsel %vm714, %v2322, %v2316
    %v2324 = vsel %vm716, %v2323, %v2320
    %s2325 = scalar_lea.vmem %s10, 128
    %v2326 = vld [vmem:[%s2325] sm:$0xff]
    %v2327 = vld [vmem:[%s2325 + $0x8] sm:$0xff]
    %v2328 = vld [vmem:[%s2325 + $0x10] sm:$0xff]
    %v2329 = vld [vmem:[%s2325 + $0x18] sm:$0xff]
    %v2330 = vld [vmem:[%s2325 + $0x20] sm:$0xff]
    %v2331 = vld [vmem:[%s2325 + $0x28] sm:$0xff]
    %v2332 = vld [vmem:[%s2325 + $0x30] sm:$0xff]
    %v2333 = vld [vmem:[%s2325 + $0x38] sm:$0xff]
    %v2334 = vld [vmem:[%s2325 + $0x40] sm:$0xff]
    %v2335 = vld [vmem:[%s2325 + $0x48] sm:$0xff]
    %v2336 = vld [vmem:[%s2325 + $0x50] sm:$0xff]
    %v2337 = vld [vmem:[%s2325 + $0x58] sm:$0xff]
    %v2338 = vld [vmem:[%s2325 + $0x60] sm:$0xff]
    %v2339 = vld [vmem:[%s2325 + $0x68] sm:$0xff]
    %v2340 = vld [vmem:[%s2325 + $0x70] sm:$0xff]
    %v2341 = vld [vmem:[%s2325 + $0x78] sm:$0xff]
    %2342 = vmatpush.msra.mxu0 %v2341
    %2343 = vmatpush.msra.mxu0 %v2340
    %2344 = vmatpush.msra.mxu0 %v2339
    %2345 = vmatpush.msra.mxu0 %v2338
    %2346 = vmatpush.msra.mxu0 %v2337
    %2347 = vmatpush.msra.mxu0 %v2336
    %2348 = vmatpush.msra.mxu0 %v2335
    %2349 = vmatpush.msra.mxu0 %v2334
    %2350 = vmatpush.msra.mxu0 %v2333
    %2351 = vmatpush.msra.mxu0 %v2332
    %2352 = vmatpush.msra.mxu0 %v2331
    %2353 = vmatpush.msra.mxu0 %v2330
    %2354 = vmatpush.msra.mxu0 %v2329
    %2355 = vmatpush.msra.mxu0 %v2328
    %2356 = vmatpush.msra.mxu0 %v2327
    %2357 = vmatpush.msra.mxu0 %v2326
    %2358 = vmatmul.f32.gmra.mxu0 %v1993
    %v2359 = vpop.f32.mrf.mxu0
    %v2360 = vadd.f32 0.0, %v2359
    %2361 = vmatmul.f32.gmra.mxu0 %v2324
    %v2362 = vpop.f32.mrf.mxu0
    %v2363 = vadd.f32 0.0, %v2362
    %2364 = vdwg.mxu0
    %v2365 = vadd.f32 %v1446, %v2360
    %v2366 = vadd.f32 %v1447, %v2363
    %s2367 = scalar_lea.vmem %s11, 1
    %v2368 = vld [vmem:[%s2367] sm:$0x1]
    %v2369 = vmul.f32 %v2365, %v2365
    %v2370 = vmul.f32 %v2366, %v2366
    %2371 = vadd.xlane.f32.xlu0 %v2369
    %v2372 = vpop.xlane.xlu0 %2371
    %2373 = vadd.xlane.f32.xlu0 %v2370
    %v2374 = vpop.xlane.xlu0 %2373
    %v2375 = vmul.f32 %v2372, %v176
    %v2376 = vmul.f32 %v2374, %v176
    %v2377 = vadd.f32 %v2375, 1e-06
    %v2378 = vadd.f32 %v2376, 1e-06
    %v2379 = vrsqrt.pop %v2377
    %v2380 = vmul.f32 %v2379, %v2377
    %v2381 = vmul.f32 %v2380, %v2379
    %v2382 = vmul.f32 0.5, %v2381
    %v2383 = vsub.f32 1.5, %v2382
    %v2384 = vmul.f32 %v2379, %v2383
    %vm2385 = vweird.f32 %v2377
    %vm2386 = vweird.f32 %v2379
    %vm2387 = vmor %vm2385, %vm2386
    %v2388 = vsel %vm2387, %v2379, %v2384
    %v2389 = vrsqrt.pop %v2378
    %v2390 = vmul.f32 %v2389, %v2378
    %v2391 = vmul.f32 %v2390, %v2389
    %v2392 = vmul.f32 0.5, %v2391
    %v2393 = vsub.f32 1.5, %v2392
    %v2394 = vmul.f32 %v2389, %v2393
    %vm2395 = vweird.f32 %v2378
    %vm2396 = vweird.f32 %v2389
    %vm2397 = vmor %vm2395, %vm2396
    %v2398 = vsel %vm2397, %v2389, %v2394
    %v2399 = vmul.f32 %v2365, %v2388
    %v2400 = vmul.f32 %v2366, %v2398
    %v2402 = vperm.slane %v2368, 0
    %v2404 = vmul.f32 %v2399, %v2402
    %v2405 = vmul.f32 %v2400, %v2402
    %s2406 = scalar_lea.vmem %s12, 512
    %v2407 = vld [vmem:[%s2406] sm:$0xff]
    %v2408 = vld [vmem:[%s2406 + $0x8] sm:$0xff]
    %v2409 = vld [vmem:[%s2406 + $0x10] sm:$0xff]
    %v2410 = vld [vmem:[%s2406 + $0x18] sm:$0xff]
    %v2411 = vld [vmem:[%s2406 + $0x20] sm:$0xff]
    %v2412 = vld [vmem:[%s2406 + $0x28] sm:$0xff]
    %v2413 = vld [vmem:[%s2406 + $0x30] sm:$0xff]
    %v2414 = vld [vmem:[%s2406 + $0x38] sm:$0xff]
    %v2415 = vld [vmem:[%s2406 + $0x40] sm:$0xff]
    %v2416 = vld [vmem:[%s2406 + $0x48] sm:$0xff]
    %v2417 = vld [vmem:[%s2406 + $0x50] sm:$0xff]
    %v2418 = vld [vmem:[%s2406 + $0x58] sm:$0xff]
    %v2419 = vld [vmem:[%s2406 + $0x60] sm:$0xff]
    %v2420 = vld [vmem:[%s2406 + $0x68] sm:$0xff]
    %v2421 = vld [vmem:[%s2406 + $0x70] sm:$0xff]
    %v2422 = vld [vmem:[%s2406 + $0x78] sm:$0xff]
    %v2423 = vld [vmem:[%s2406 + $0x80] sm:$0xff]
    %v2424 = vld [vmem:[%s2406 + $0x88] sm:$0xff]
    %v2425 = vld [vmem:[%s2406 + $0x90] sm:$0xff]
    %v2426 = vld [vmem:[%s2406 + $0x98] sm:$0xff]
    %v2427 = vld [vmem:[%s2406 + $0xa0] sm:$0xff]
    %v2428 = vld [vmem:[%s2406 + $0xa8] sm:$0xff]
    %v2429 = vld [vmem:[%s2406 + $0xb0] sm:$0xff]
    %v2430 = vld [vmem:[%s2406 + $0xb8] sm:$0xff]
    %v2431 = vld [vmem:[%s2406 + $0xc0] sm:$0xff]
    %v2432 = vld [vmem:[%s2406 + $0xc8] sm:$0xff]
    %v2433 = vld [vmem:[%s2406 + $0xd0] sm:$0xff]
    %v2434 = vld [vmem:[%s2406 + $0xd8] sm:$0xff]
    %v2435 = vld [vmem:[%s2406 + $0xe0] sm:$0xff]
    %v2436 = vld [vmem:[%s2406 + $0xe8] sm:$0xff]
    %v2437 = vld [vmem:[%s2406 + $0xf0] sm:$0xff]
    %v2438 = vld [vmem:[%s2406 + $0xf8] sm:$0xff]
    %v2439 = vld [vmem:[%s2406 + $0x100] sm:$0xff]
    %v2440 = vld [vmem:[%s2406 + $0x108] sm:$0xff]
    %v2441 = vld [vmem:[%s2406 + $0x110] sm:$0xff]
    %v2442 = vld [vmem:[%s2406 + $0x118] sm:$0xff]
    %v2443 = vld [vmem:[%s2406 + $0x120] sm:$0xff]
    %v2444 = vld [vmem:[%s2406 + $0x128] sm:$0xff]
    %v2445 = vld [vmem:[%s2406 + $0x130] sm:$0xff]
    %v2446 = vld [vmem:[%s2406 + $0x138] sm:$0xff]
    %v2447 = vld [vmem:[%s2406 + $0x140] sm:$0xff]
    %v2448 = vld [vmem:[%s2406 + $0x148] sm:$0xff]
    %v2449 = vld [vmem:[%s2406 + $0x150] sm:$0xff]
    %v2450 = vld [vmem:[%s2406 + $0x158] sm:$0xff]
    %v2451 = vld [vmem:[%s2406 + $0x160] sm:$0xff]
    %v2452 = vld [vmem:[%s2406 + $0x168] sm:$0xff]
    %v2453 = vld [vmem:[%s2406 + $0x170] sm:$0xff]
    %v2454 = vld [vmem:[%s2406 + $0x178] sm:$0xff]
    %v2455 = vld [vmem:[%s2406 + $0x180] sm:$0xff]
    %v2456 = vld [vmem:[%s2406 + $0x188] sm:$0xff]
    %v2457 = vld [vmem:[%s2406 + $0x190] sm:$0xff]
    %v2458 = vld [vmem:[%s2406 + $0x198] sm:$0xff]
    %v2459 = vld [vmem:[%s2406 + $0x1a0] sm:$0xff]
    %v2460 = vld [vmem:[%s2406 + $0x1a8] sm:$0xff]
    %v2461 = vld [vmem:[%s2406 + $0x1b0] sm:$0xff]
    %v2462 = vld [vmem:[%s2406 + $0x1b8] sm:$0xff]
    %v2463 = vld [vmem:[%s2406 + $0x1c0] sm:$0xff]
    %v2464 = vld [vmem:[%s2406 + $0x1c8] sm:$0xff]
    %v2465 = vld [vmem:[%s2406 + $0x1d0] sm:$0xff]
    %v2466 = vld [vmem:[%s2406 + $0x1d8] sm:$0xff]
    %v2467 = vld [vmem:[%s2406 + $0x1e0] sm:$0xff]
    %v2468 = vld [vmem:[%s2406 + $0x1e8] sm:$0xff]
    %v2469 = vld [vmem:[%s2406 + $0x1f0] sm:$0xff]
    %v2470 = vld [vmem:[%s2406 + $0x1f8] sm:$0xff]
    %2471 = vmatpush.msra.mxu0 %v2467
    %2472 = vmatpush.msra.mxu0 %v2463
    %2473 = vmatpush.msra.mxu0 %v2459
    %2474 = vmatpush.msra.mxu0 %v2455
    %2475 = vmatpush.msra.mxu0 %v2451
    %2476 = vmatpush.msra.mxu0 %v2447
    %2477 = vmatpush.msra.mxu0 %v2443
    %2478 = vmatpush.msra.mxu0 %v2439
    %2479 = vmatpush.msra.mxu0 %v2435
    %2480 = vmatpush.msra.mxu0 %v2431
    %2481 = vmatpush.msra.mxu0 %v2427
    %2482 = vmatpush.msra.mxu0 %v2423
    %2483 = vmatpush.msra.mxu0 %v2419
    %2484 = vmatpush.msra.mxu0 %v2415
    %2485 = vmatpush.msra.mxu0 %v2411
    %2486 = vmatpush.msra.mxu0 %v2407
    %2487 = vmatmul.f32.gmra.mxu0 %v2404
    %v2488 = vpop.f32.mrf.mxu0
    %v2489 = vadd.f32 0.0, %v2488
    %2490 = vmatmul.f32.gmra.mxu0 %v2405
    %v2491 = vpop.f32.mrf.mxu0
    %v2492 = vadd.f32 0.0, %v2491
    %2493 = vdwg.mxu0
    %2494 = vmatpush.msra.mxu0 %v2468
    %2495 = vmatpush.msra.mxu0 %v2464
    %2496 = vmatpush.msra.mxu0 %v2460
    %2497 = vmatpush.msra.mxu0 %v2456
    %2498 = vmatpush.msra.mxu0 %v2452
    %2499 = vmatpush.msra.mxu0 %v2448
    %2500 = vmatpush.msra.mxu0 %v2444
    %2501 = vmatpush.msra.mxu0 %v2440
    %2502 = vmatpush.msra.mxu0 %v2436
    %2503 = vmatpush.msra.mxu0 %v2432
    %2504 = vmatpush.msra.mxu0 %v2428
    %2505 = vmatpush.msra.mxu0 %v2424
    %2506 = vmatpush.msra.mxu0 %v2420
    %2507 = vmatpush.msra.mxu0 %v2416
    %2508 = vmatpush.msra.mxu0 %v2412
    %2509 = vmatpush.msra.mxu0 %v2408
    %2510 = vmatmul.f32.gmra.mxu0 %v2404
    %v2511 = vpop.f32.mrf.mxu0
    %v2512 = vadd.f32 0.0, %v2511
    %2513 = vmatmul.f32.gmra.mxu0 %v2405
    %v2514 = vpop.f32.mrf.mxu0
    %v2515 = vadd.f32 0.0, %v2514
    %2516 = vdwg.mxu0
    %2517 = vmatpush.msra.mxu0 %v2469
    %2518 = vmatpush.msra.mxu0 %v2465
    %2519 = vmatpush.msra.mxu0 %v2461
    %2520 = vmatpush.msra.mxu0 %v2457
    %2521 = vmatpush.msra.mxu0 %v2453
    %2522 = vmatpush.msra.mxu0 %v2449
    %2523 = vmatpush.msra.mxu0 %v2445
    %2524 = vmatpush.msra.mxu0 %v2441
    %2525 = vmatpush.msra.mxu0 %v2437
    %2526 = vmatpush.msra.mxu0 %v2433
    %2527 = vmatpush.msra.mxu0 %v2429
    %2528 = vmatpush.msra.mxu0 %v2425
    %2529 = vmatpush.msra.mxu0 %v2421
    %2530 = vmatpush.msra.mxu0 %v2417
    %2531 = vmatpush.msra.mxu0 %v2413
    %2532 = vmatpush.msra.mxu0 %v2409
    %2533 = vmatmul.f32.gmra.mxu0 %v2404
    %v2534 = vpop.f32.mrf.mxu0
    %v2535 = vadd.f32 0.0, %v2534
    %2536 = vmatmul.f32.gmra.mxu0 %v2405
    %v2537 = vpop.f32.mrf.mxu0
    %v2538 = vadd.f32 0.0, %v2537
    %2539 = vdwg.mxu0
    %2540 = vmatpush.msra.mxu0 %v2470
    %2541 = vmatpush.msra.mxu0 %v2466
    %2542 = vmatpush.msra.mxu0 %v2462
    %2543 = vmatpush.msra.mxu0 %v2458
    %2544 = vmatpush.msra.mxu0 %v2454
    %2545 = vmatpush.msra.mxu0 %v2450
    %2546 = vmatpush.msra.mxu0 %v2446
    %2547 = vmatpush.msra.mxu0 %v2442
    %2548 = vmatpush.msra.mxu0 %v2438
    %2549 = vmatpush.msra.mxu0 %v2434
    %2550 = vmatpush.msra.mxu0 %v2430
    %2551 = vmatpush.msra.mxu0 %v2426
    %2552 = vmatpush.msra.mxu0 %v2422
    %2553 = vmatpush.msra.mxu0 %v2418
    %2554 = vmatpush.msra.mxu0 %v2414
    %2555 = vmatpush.msra.mxu0 %v2410
    %2556 = vmatmul.f32.gmra.mxu0 %v2404
    %v2557 = vpop.f32.mrf.mxu0
    %v2558 = vadd.f32 0.0, %v2557
    %2559 = vmatmul.f32.gmra.mxu0 %v2405
    %v2560 = vpop.f32.mrf.mxu0
    %v2561 = vadd.f32 0.0, %v2560
    %2562 = vdwg.mxu0
    %v2563 = vxor.u32 %v2489, 2147483648
    %v2564 = vxor.u32 %v2512, 2147483648
    %v2565 = vxor.u32 %v2492, 2147483648
    %v2566 = vxor.u32 %v2515, 2147483648
    %v2567 = vmul.f32 %v2563, 1.442695
    %v2568 = vpow.pop %v2567
    %v2569 = vmul.f32 %v2564, 1.442695
    %v2570 = vpow.pop %v2569
    %v2571 = vmul.f32 %v2565, 1.442695
    %v2572 = vpow.pop %v2571
    %v2573 = vmul.f32 %v2566, 1.442695
    %v2574 = vpow.pop %v2573
    %v2575 = vadd.f32 %v2568, 1.0
    %v2576 = vadd.f32 %v2570, 1.0
    %v2577 = vadd.f32 %v2572, 1.0
    %v2578 = vadd.f32 %v2574, 1.0
    %v2579 = vrcp.pop %v2575
    %v2580 = vmul.f32 %v2575, %v2579
    %v2581 = vsub.f32 1.0, %v2580
    %v2582 = vmul.f32 %v2579, %v2581
    %v2583 = vadd.f32 %v2579, %v2582
    %vm2584 = vweird.f32 %v2575
    %vm2585 = vweird.f32 %v2579
    %vm2586 = vmor %vm2584, %vm2585
    %v2587 = vsel %vm2586, %v2579, %v2583
    %v2588 = vand.u32 2147483647, %v2575
    %vm2589 = vcmp.eq.f32.partialorder %v2588, 8.507059e+37
    %v2590 = vand.u32 %v2575, 2147483648
    %v2591 = vor.u32 1.1754944e-38, %v2590
    %v2592 = vsel %vm2589, %v2591, %v2587
    %v2593 = vmul.f32 1.0, %v2592
    %v2594 = vrcp.pop %v2576
    %v2595 = vmul.f32 %v2576, %v2594
    %v2596 = vsub.f32 1.0, %v2595
    %v2597 = vmul.f32 %v2594, %v2596
    %v2598 = vadd.f32 %v2594, %v2597
    %vm2599 = vweird.f32 %v2576
    %vm2600 = vweird.f32 %v2594
    %vm2601 = vmor %vm2599, %vm2600
    %v2602 = vsel %vm2601, %v2594, %v2598
    %v2603 = vand.u32 2147483647, %v2576
    %vm2604 = vcmp.eq.f32.partialorder %v2603, 8.507059e+37
    %v2605 = vand.u32 %v2576, 2147483648
    %v2606 = vor.u32 1.1754944e-38, %v2605
    %v2607 = vsel %vm2604, %v2606, %v2602
    %v2608 = vmul.f32 1.0, %v2607
    %v2609 = vrcp.pop %v2577
    %v2610 = vmul.f32 %v2577, %v2609
    %v2611 = vsub.f32 1.0, %v2610
    %v2612 = vmul.f32 %v2609, %v2611
    %v2613 = vadd.f32 %v2609, %v2612
    %vm2614 = vweird.f32 %v2577
    %vm2615 = vweird.f32 %v2609
    %vm2616 = vmor %vm2614, %vm2615
    %v2617 = vsel %vm2616, %v2609, %v2613
    %v2618 = vand.u32 2147483647, %v2577
    %vm2619 = vcmp.eq.f32.partialorder %v2618, 8.507059e+37
    %v2620 = vand.u32 %v2577, 2147483648
    %v2621 = vor.u32 1.1754944e-38, %v2620
    %v2622 = vsel %vm2619, %v2621, %v2617
    %v2623 = vmul.f32 1.0, %v2622
    %v2624 = vrcp.pop %v2578
    %v2625 = vmul.f32 %v2578, %v2624
    %v2626 = vsub.f32 1.0, %v2625
    %v2627 = vmul.f32 %v2624, %v2626
    %v2628 = vadd.f32 %v2624, %v2627
    %vm2629 = vweird.f32 %v2578
    %vm2630 = vweird.f32 %v2624
    %vm2631 = vmor %vm2629, %vm2630
    %v2632 = vsel %vm2631, %v2624, %v2628
    %v2633 = vand.u32 2147483647, %v2578
    %vm2634 = vcmp.eq.f32.partialorder %v2633, 8.507059e+37
    %v2635 = vand.u32 %v2578, 2147483648
    %v2636 = vor.u32 1.1754944e-38, %v2635
    %v2637 = vsel %vm2634, %v2636, %v2632
    %v2638 = vmul.f32 1.0, %v2637
    %v2639 = vmul.f32 %v2489, %v2593
    %v2640 = vmul.f32 %v2512, %v2608
    %v2641 = vmul.f32 %v2492, %v2623
    %v2642 = vmul.f32 %v2515, %v2638
    %v2643 = vmul.f32 %v2639, %v2535
    %v2644 = vmul.f32 %v2640, %v2558
    %v2645 = vmul.f32 %v2641, %v2538
    %v2646 = vmul.f32 %v2642, %v2561
    %s2647 = scalar_lea.vmem %s13, 256
    %v2648 = vld [vmem:[%s2647] sm:$0xff]
    %v2649 = vld [vmem:[%s2647 + $0x8] sm:$0xff]
    %v2650 = vld [vmem:[%s2647 + $0x10] sm:$0xff]
    %v2651 = vld [vmem:[%s2647 + $0x18] sm:$0xff]
    %v2652 = vld [vmem:[%s2647 + $0x20] sm:$0xff]
    %v2653 = vld [vmem:[%s2647 + $0x28] sm:$0xff]
    %v2654 = vld [vmem:[%s2647 + $0x30] sm:$0xff]
    %v2655 = vld [vmem:[%s2647 + $0x38] sm:$0xff]
    %v2656 = vld [vmem:[%s2647 + $0x40] sm:$0xff]
    %v2657 = vld [vmem:[%s2647 + $0x48] sm:$0xff]
    %v2658 = vld [vmem:[%s2647 + $0x50] sm:$0xff]
    %v2659 = vld [vmem:[%s2647 + $0x58] sm:$0xff]
    %v2660 = vld [vmem:[%s2647 + $0x60] sm:$0xff]
    %v2661 = vld [vmem:[%s2647 + $0x68] sm:$0xff]
    %v2662 = vld [vmem:[%s2647 + $0x70] sm:$0xff]
    %v2663 = vld [vmem:[%s2647 + $0x78] sm:$0xff]
    %v2664 = vld [vmem:[%s2647 + $0x80] sm:$0xff]
    %v2665 = vld [vmem:[%s2647 + $0x88] sm:$0xff]
    %v2666 = vld [vmem:[%s2647 + $0x90] sm:$0xff]
    %v2667 = vld [vmem:[%s2647 + $0x98] sm:$0xff]
    %v2668 = vld [vmem:[%s2647 + $0xa0] sm:$0xff]
    %v2669 = vld [vmem:[%s2647 + $0xa8] sm:$0xff]
    %v2670 = vld [vmem:[%s2647 + $0xb0] sm:$0xff]
    %v2671 = vld [vmem:[%s2647 + $0xb8] sm:$0xff]
    %v2672 = vld [vmem:[%s2647 + $0xc0] sm:$0xff]
    %v2673 = vld [vmem:[%s2647 + $0xc8] sm:$0xff]
    %v2674 = vld [vmem:[%s2647 + $0xd0] sm:$0xff]
    %v2675 = vld [vmem:[%s2647 + $0xd8] sm:$0xff]
    %v2676 = vld [vmem:[%s2647 + $0xe0] sm:$0xff]
    %v2677 = vld [vmem:[%s2647 + $0xe8] sm:$0xff]
    %v2678 = vld [vmem:[%s2647 + $0xf0] sm:$0xff]
    %v2679 = vld [vmem:[%s2647 + $0xf8] sm:$0xff]
    %2680 = vmatpush.msra.mxu0 %v2663
    %2681 = vmatpush.msra.mxu0 %v2662
    %2682 = vmatpush.msra.mxu0 %v2661
    %2683 = vmatpush.msra.mxu0 %v2660
    %2684 = vmatpush.msra.mxu0 %v2659
    %2685 = vmatpush.msra.mxu0 %v2658
    %2686 = vmatpush.msra.mxu0 %v2657
    %2687 = vmatpush.msra.mxu0 %v2656
    %2688 = vmatpush.msra.mxu0 %v2655
    %2689 = vmatpush.msra.mxu0 %v2654
    %2690 = vmatpush.msra.mxu0 %v2653
    %2691 = vmatpush.msra.mxu0 %v2652
    %2692 = vmatpush.msra.mxu0 %v2651
    %2693 = vmatpush.msra.mxu0 %v2650
    %2694 = vmatpush.msra.mxu0 %v2649
    %2695 = vmatpush.msra.mxu0 %v2648
    %2696 = vmatmul.f32.gmra.mxu0 %v2643
    %v2697 = vpop.f32.mrf.mxu0
    %v2698 = vadd.f32 0.0, %v2697
    %2699 = vmatmul.f32.gmra.mxu0 %v2645
    %v2700 = vpop.f32.mrf.mxu0
    %v2701 = vadd.f32 0.0, %v2700
    %2702 = vdwg.mxu0
    %2703 = vmatpush.msra.mxu0 %v2679
    %2704 = vmatpush.msra.mxu0 %v2678
    %2705 = vmatpush.msra.mxu0 %v2677
    %2706 = vmatpush.msra.mxu0 %v2676
    %2707 = vmatpush.msra.mxu0 %v2675
    %2708 = vmatpush.msra.mxu0 %v2674
    %2709 = vmatpush.msra.mxu0 %v2673
    %2710 = vmatpush.msra.mxu0 %v2672
    %2711 = vmatpush.msra.mxu0 %v2671
    %2712 = vmatpush.msra.mxu0 %v2670
    %2713 = vmatpush.msra.mxu0 %v2669
    %2714 = vmatpush.msra.mxu0 %v2668
    %2715 = vmatpush.msra.mxu0 %v2667
    %2716 = vmatpush.msra.mxu0 %v2666
    %2717 = vmatpush.msra.mxu0 %v2665
    %2718 = vmatpush.msra.mxu0 %v2664
    %2719 = vmatmul.f32.gmra.mxu0 %v2644
    %v2720 = vpop.f32.mrf.mxu0
    %v2721 = vadd.f32 %v2698, %v2720
    %2722 = vmatmul.f32.gmra.mxu0 %v2646
    %v2723 = vpop.f32.mrf.mxu0
    %v2724 = vadd.f32 %v2701, %v2723
    %2725 = vdwg.mxu0
    %v2726 = vadd.f32 %v2365, %v2721
    %v2727 = vadd.f32 %v2366, %v2724
    %2728 = vst [vmem:[#allocation2] sm:$0xff] %v2726
    %2729 = vst [vmem:[#allocation2 + $0x8] sm:$0xff] %v2727
    // Predicated region
    $region58: #{eagle_head_forward.1} parent=1 // pred_check
      _
    $region59: #{eagle_head_forward.1} parent=1 // pred_check_branch
      %2731 = sbr.rel (0) target = $region61
    $region60: #{eagle_head_forward.1} parent=1 // pred_region
      %2733 = vsyncadd [#allocation3], 0
      %s2734 = sshll.u32 [#allocation2], 4
      %s2735 = int_to_ptr.vmem [resolvable:$true] %s2734
      %s2736 = sshll.u32 %s14, 4
      %s2737 = int_to_ptr.hbm [resolvable:$true] %s2736
      %2742 = dma.vmem_to_hbm [thread:$0]  %s2735, 256, %s2737, [#allocation3], 128, 128, 8
    $region61: #{eagle_head_forward.1} parent=1 // pred_fallthru
      _
    // Predicated region
    $region62: #{eagle_head_forward.1} parent=1 // pred_check
      _
    $region63: #{eagle_head_forward.1} parent=1 // pred_check_branch
      %2744 = sbr.rel (0) target = $region65
    $region64: #{eagle_head_forward.1} parent=1 // pred_region
      %2746 = dma.done [#allocation3], 256
    $region65: #{eagle_head_forward.1} parent=1 // pred_fallthru
      _
    %2747 = vsyncpa [#allocation3], 1

</llo_original>
